<compile_context>
chip_gen: v5e
topology: v5e:2x2
jax: 0.10.0
libtpu: 0.0.40
codegen_flags: <defaults>
</compile_context>

<pallas_src>
import math

import jax
import jax.numpy as jnp
from jax.experimental import pallas as pl
from jax.experimental.pallas import tpu as pltpu

_GATE_LANES = 128  # one lane tile holds all three gates (requires 3*H <= 128)


# ----------------------------- fused Pallas kernel ------------------------------

def make_kernel(num_layers, T, Bp, H, Gp):
    n_in = 1 + 4 * num_layers + 4

    def kernel(*refs):
        feat_ref = refs[0]
        layer_refs = refs[1:1 + 4 * num_layers]
        w1_ref, b1_ref, w2_ref, b2_ref = refs[1 + 4 * num_layers:n_in]
        out_ref = refs[n_in]           # (Bp, C)
        gi0_ref = refs[n_in + 1]       # scratch (T*Bp, Gp): hoisted layer-0 gate slab

        # ---- hoisted, time-independent work ------------------------------------
        wih0_ref, _, bih0_ref, _ = layer_refs[0:4]
        gi0_ref[...] = (
            jnp.dot(feat_ref[...], wih0_ref[...], preferred_element_type=jnp.float32)
            + bih0_ref[...]
        )

        # Hoist all loop-invariant weight loads / bias broadcasts out of the unrolled loop
        # (JAX does not CSE broadcast_in_dim, so broadcasts must be hoisted explicitly).
        whh = []          # (H, Gp) recurrent weights, vreg-resident (4 vregs each)
        bhn_b = []        # (Bp, Gp) broadcast of b_hh_n (n-gate lanes only)
        wih = [None]      # (H, Gp) input weights for layers > 0
        bih_b = [None]    # (Bp, Gp) broadcast folded input bias for layers > 0
        for l in range(num_layers):
            wih_ref, whh_ref, bih_ref, bhn_ref = layer_refs[4 * l:4 * l + 4]
            whh.append(whh_ref[...])
            bhn_b.append(jnp.broadcast_to(bhn_ref[...], (Bp, Gp)))
            if l > 0:
                wih.append(wih_ref[...])
                bih_b.append(jnp.broadcast_to(bih_ref[...], (Bp, Gp)))

        def gru_step(gi, h, whh_v, bhn_v):
            # gi/gh hold the (r, z, n) gates at lanes [0:H), [H:2H), [2H:3H) of one lane tile.
            gh = jnp.dot(h, whh_v, preferred_element_type=jnp.float32)      # (Bp, Gp): 1 MXU tile
            sig = jax.nn.sigmoid(gi + gh)                  # r, z valid (b_hr/b_hz folded into gi)
            r_al = pltpu.roll(sig, shift=2 * H, axis=1)    # XLU: align r with the n-gate lanes
            n_full = jnp.tanh(gi + r_al * (gh + bhn_v))    # n valid at lanes [2H:3H)
            n = pltpu.roll(n_full, shift=Gp - 2 * H, axis=1)[:, :H]          # n -> lanes [0:H)
            z = sig[:, H:2 * H]
            return (1.0 - z) * n + z * h

        # ---- wavefront-interleaved recurrence (static unroll, T = 16) -----------
        h = [jnp.zeros((Bp, H), jnp.float32) for _ in range(num_layers)]    # torch zero h0
        for t in range(T):
            for l in range(num_layers):
                if l == 0:
                    gi = gi0_ref[t * Bp:(t + 1) * Bp, :]                     # tile-aligned slice
                else:
                    gi = (jnp.dot(h[l - 1], wih[l], preferred_element_type=jnp.float32)
                          + bih_b[l])
                h[l] = gru_step(gi, h[l], whh[l], bhn_b[l])

        # ---- head: relu(fc_add(h_T)) -> fc ---------------------------------------
        # TODO(synk): nn.Dropout(p=0.5) is a no-op in eval mode; training-mode dropout not implemented.
        y = jnp.dot(h[-1], w1_ref[...], preferred_element_type=jnp.float32) + b1_ref[...]
        y = jnp.maximum(y, 0.0)
        out_ref[...] = jnp.dot(y, w2_ref[...], preferred_element_type=jnp.float32) + b2_ref[...]

    return kernel


# ------------------------------ params & packing -----------------------------------

def init_params(key, input_size, ctx_hidden_size, hidden_size, fc_hidden_size,
                num_layers, num_classes):
    """Canonical PyTorch-style parameters (weight_ih: (3H, in), gate order r,z,n)."""
    params = {"gru": []}
    k = key
    bound = 1.0 / math.sqrt(hidden_size)
    for layer in range(num_layers):
        in_dim = (input_size + ctx_hidden_size) if layer == 0 else hidden_size
        k, k1, k2, k3, k4 = jax.random.split(k, 5)
        params["gru"].append(dict(
            w_ih=jax.random.uniform(k1, (3 * hidden_size, in_dim), jnp.float32, -bound, bound),
            w_hh=jax.random.uniform(k2, (3 * hidden_size, hidden_size), jnp.float32, -bound, bound),
            b_ih=jax.random.uniform(k3, (3 * hidden_size,), jnp.float32, -bound, bound),
            b_hh=jax.random.uniform(k4, (3 * hidden_size,), jnp.float32, -bound, bound),
        ))

    k, k1, k2 = jax.random.split(k, 3)
    b = 1.0 / math.sqrt(hidden_size)
    params["fc_add_w"] = jax.random.uniform(k1, (fc_hidden_size, hidden_size), jnp.float32, -b, b)
    params["fc_add_b"] = jax.random.uniform(k2, (fc_hidden_size,), jnp.float32, -b, b)

    k, k1, k2 = jax.random.split(k, 3)
    b = 1.0 / math.sqrt(fc_hidden_size)
    params["fc_w"] = jax.random.uniform(k1, (num_classes, fc_hidden_size), jnp.float32, -b, b)
    params["fc_b"] = jax.random.uniform(k2, (num_classes,), jnp.float32, -b, b)
    return params


def pack_params(params, hidden_size, Gp=_GATE_LANES):
    """Fuse + transpose the GRU gate weights into a single 128-lane tile per matrix,
    folding b_hh for the r and z gates into the input bias."""
    H = hidden_size
    assert 3 * H <= Gp, "single-lane-tile gate packing requires 3*hidden_size <= 128"
    packed = {"layers": []}
    for lp in params["gru"]:
        in_dim = lp["w_ih"].shape[1]
        wih_p = jnp.zeros((in_dim, Gp), jnp.float32)
        whh_p = jnp.zeros((H, Gp), jnp.float32)
        bih_p = jnp.zeros((1, Gp), jnp.float32)
        bhn_p = jnp.zeros((1, Gp), jnp.float32)
        for g in range(3):
            wih_p = wih_p.at[:, g * H:(g + 1) * H].set(lp["w_ih"][g * H:(g + 1) * H, :].T)
            whh_p = whh_p.at[:, g * H:(g + 1) * H].set(lp["w_hh"][g * H:(g + 1) * H, :].T)
        # Fold b_hh_r / b_hh_z into the hoisted input bias; keep b_hh_n separate
        # (it must stay inside r * (W_hn h + b_hn)).
        bih_p = bih_p.at[0, 0:H].set(lp["b_ih"][0:H] + lp["b_hh"][0:H])
        bih_p = bih_p.at[0, H:2 * H].set(lp["b_ih"][H:2 * H] + lp["b_hh"][H:2 * H])
        bih_p = bih_p.at[0, 2 * H:3 * H].set(lp["b_ih"][2 * H:3 * H])
        bhn_p = bhn_p.at[0, 2 * H:3 * H].set(lp["b_hh"][2 * H:3 * H])
        packed["layers"].append(dict(wih=wih_p, whh=whh_p, bih=bih_p, bhn=bhn_p))

    packed["w1"] = params["fc_add_w"].T              # (H, F)
    packed["b1"] = params["fc_add_b"][None, :]       # (1, F)
    packed["w2"] = params["fc_w"].T                  # (F, C)
    packed["b2"] = params["fc_b"][None, :]           # (1, C)
    return packed


# --------------------------------- wrapper --------------------------------------

def decoder_concat_rnn_forward(packed, v_features, i_features, hidden_size, Gp=_GATE_LANES):
    """v_features: (B, input_size), i_features: (B, 16, ctx_hidden_size) -> (B, num_classes)."""
    B, D_v = v_features.shape
    T = i_features.shape[1]                 # module hard-codes repeat(1, 16, 1) -> T must be 16
    D0 = D_v + i_features.shape[2]
    H = hidden_size
    Bp = ((B + 7) // 8) * 8                 # pad batch to a full sublane tile

    feat = jnp.concatenate(
        [jnp.broadcast_to(v_features[:, None, :], (B, T, D_v)), i_features],
        axis=2).astype(jnp.float32)                               # (B, T, D0)
    feat = jnp.pad(feat, ((0, Bp - B), (0, 0), (0, 0)))
    feat_flat = jnp.transpose(feat, (1, 0, 2)).reshape(T * Bp, D0)    # row = t*Bp + b

    num_layers = len(packed["layers"])
    C = packed["w2"].shape[1]

    args = [feat_flat]
    for lp in packed["layers"]:
        args += [lp["wih"], lp["whh"], lp["bih"], lp["bhn"]]
    args += [packed["w1"], packed["b1"], packed["w2"], packed["b2"]]

    # Single grid-less launch: whole working set (<< 1 MiB) is VMEM resident.
    # (If B ever grows, add a batch-tile grid axis with dimension_semantics=("parallel",)
    #  so v7x's second TensorCore gets work; at B=2 that would be pure overhead.)
    out_p = pl.pallas_call(
        make_kernel(num_layers, T, Bp, H, Gp),
        out_shape=jax.ShapeDtypeStruct((Bp, C), jnp.float32),
        in_specs=[pl.BlockSpec(memory_space=pltpu.MemorySpace.VMEM)] * len(args),
        out_specs=pl.BlockSpec(memory_space=pltpu.MemorySpace.VMEM),
        scratch_shapes=[
            pltpu.VMEM((T * Bp, Gp), jnp.float32),   # hoisted layer-0 gate slab GI0
        ],
    )(*args)
    return out_p[:B]


# --------------------------- pure-JAX reference -----------------------------

def reference_forward(params, v_features, i_features):
    prec = jax.lax.Precision.HIGHEST
    B = v_features.shape[0]
    T = i_features.shape[1]
    H = params["gru"][0]["w_hh"].shape[1]
    feat = jnp.concatenate(
        [jnp.broadcast_to(v_features[:, None, :], (B, T, v_features.shape[1])), i_features],
        axis=2).astype(jnp.float32)                               # (B, T, D0)
    x = feat
    for lp in params["gru"]:
        h = jnp.zeros((B, H), jnp.float32)
        outs = []
        for t in range(T):
            x_t = x[:, t, :]
            gi = jnp.dot(x_t, lp["w_ih"].T, precision=prec) + lp["b_ih"]
            gh = jnp.dot(h, lp["w_hh"].T, precision=prec) + lp["b_hh"]
            r = jax.nn.sigmoid(gi[:, :H] + gh[:, :H])
            z = jax.nn.sigmoid(gi[:, H:2 * H] + gh[:, H:2 * H])
            n = jnp.tanh(gi[:, 2 * H:] + r * gh[:, 2 * H:])
            h = (1.0 - z) * n + z * h
            outs.append(h)
        x = jnp.stack(outs, axis=1)
    h_last = x[:, -1, :]
    y = jnp.maximum(jnp.dot(h_last, params["fc_add_w"].T, precision=prec) + params["fc_add_b"], 0.0)
    return jnp.dot(y, params["fc_w"].T, precision=prec) + params["fc_b"]


# --------------------------------- main --------------------------------------

if __name__ == "__main__":
    B = 2
    input_size = 32          # dim of v_features
    ctx_hidden_size = 32     # dim of i_features per step
    hidden_size = 32
    fc_hidden_size = 32
    num_layers = 2
    num_classes = 7
    T = 16                   # fixed by .repeat(1, 16, 1) in the module

    key = jax.random.PRNGKey(0)
    kp, kv, ki = jax.random.split(key, 3)
    params = init_params(kp, input_size, ctx_hidden_size, hidden_size,
                         fc_hidden_size, num_layers, num_classes)
    packed = pack_params(params, hidden_size)

    v_features = jax.random.normal(kv, (B, input_size), jnp.float32)
    i_features = jax.random.normal(ki, (B, T, ctx_hidden_size), jnp.float32)

    out = decoder_concat_rnn_forward(packed, v_features, i_features, hidden_size)
    out = jax.block_until_ready(out)

    ref = reference_forward(params, v_features, i_features)
    assert out.shape == (B, num_classes), out.shape
    assert jnp.allclose(out, ref, atol=1e-4, rtol=1e-4), (out, ref)

    print("KERNEL_OK")
</pallas_src>

<mosaic_0001>
module attributes {stable_mosaic.version = 11 : i64} {
  func.func @kernel(%arg0: memref<128x64xf32, #tpu.memory_space<vmem>>, %arg1: memref<64x128xf32, #tpu.memory_space<vmem>>, %arg2: memref<32x128xf32, #tpu.memory_space<vmem>>, %arg3: memref<1x128xf32, #tpu.memory_space<vmem>>, %arg4: memref<1x128xf32, #tpu.memory_space<vmem>>, %arg5: memref<32x128xf32, #tpu.memory_space<vmem>>, %arg6: memref<32x128xf32, #tpu.memory_space<vmem>>, %arg7: memref<1x128xf32, #tpu.memory_space<vmem>>, %arg8: memref<1x128xf32, #tpu.memory_space<vmem>>, %arg9: memref<32x32xf32, #tpu.memory_space<vmem>>, %arg10: memref<1x32xf32, #tpu.memory_space<vmem>>, %arg11: memref<32x7xf32, #tpu.memory_space<vmem>>, %arg12: memref<1x7xf32, #tpu.memory_space<vmem>>, %arg13: memref<8x7xf32, #tpu.memory_space<vmem>>, %arg14: memref<128x128xf32, #tpu.memory_space<vmem>>) attributes {dimension_semantics = [], scalar_prefetch = 0 : i64, scratch_operands = 1 : i64, tpu.core_type = #tpu.core_type<tc>} {
    %c0 = arith.constant 0 : index
    %c0_0 = arith.constant 0 : index
    %0 = vector.load %arg0[%c0, %c0_0] : memref<128x64xf32, #tpu.memory_space<vmem>>, vector<128x64xf32>
    %c0_1 = arith.constant 0 : index
    %c0_2 = arith.constant 0 : index
    %1 = vector.load %arg1[%c0_1, %c0_2] : memref<64x128xf32, #tpu.memory_space<vmem>>, vector<64x128xf32>
    %cst = arith.constant dense<0.000000e+00> : vector<128x128xf32>
    %2 = tpu.matmul %0, %1, %cst {dimension_numbers = #tpu.dot_dimension_numbers<[1], [0], [0], [1], [0, 0, 1, 1], [], []>} : vector<128x64xf32>, vector<64x128xf32>, vector<128x128xf32> -> vector<128x128xf32>
    %c0_3 = arith.constant 0 : index
    %c0_4 = arith.constant 0 : index
    %3 = vector.load %arg3[%c0_3, %c0_4] : memref<1x128xf32, #tpu.memory_space<vmem>>, vector<1x128xf32>
    %4 = vector.broadcast %3 : vector<1x128xf32> to vector<128x128xf32>
    %5 = arith.addf %2, %4 : vector<128x128xf32>
    %c0_5 = arith.constant 0 : index
    %c0_6 = arith.constant 0 : index
    %6 = vector.load %arg14[%c0_5, %c0_6] : memref<128x128xf32, #tpu.memory_space<vmem>>, vector<128x128xf32>
    tpu.vector_store %arg14[%c0_5, %c0_6], %5 {strides = array<i32>} : memref<128x128xf32, #tpu.memory_space<vmem>>, vector<128x128xf32>,
    %c0_7 = arith.constant 0 : index
    %c0_8 = arith.constant 0 : index
    %7 = vector.load %arg2[%c0_7, %c0_8] : memref<32x128xf32, #tpu.memory_space<vmem>>, vector<32x128xf32>
    %c0_9 = arith.constant 0 : index
    %c0_10 = arith.constant 0 : index
    %8 = vector.load %arg4[%c0_9, %c0_10] : memref<1x128xf32, #tpu.memory_space<vmem>>, vector<1x128xf32>
    %9 = vector.shape_cast %8 : vector<1x128xf32> to vector<1x128xf32>
    %10 = vector.broadcast %9 : vector<1x128xf32> to vector<8x128xf32>
    %c0_11 = arith.constant 0 : index
    %c0_12 = arith.constant 0 : index
    %11 = vector.load %arg6[%c0_11, %c0_12] : memref<32x128xf32, #tpu.memory_space<vmem>>, vector<32x128xf32>
    %c0_13 = arith.constant 0 : index
    %c0_14 = arith.constant 0 : index
    %12 = vector.load %arg8[%c0_13, %c0_14] : memref<1x128xf32, #tpu.memory_space<vmem>>, vector<1x128xf32>
    %13 = vector.shape_cast %12 : vector<1x128xf32> to vector<1x128xf32>
    %14 = vector.broadcast %13 : vector<1x128xf32> to vector<8x128xf32>
    %c0_15 = arith.constant 0 : index
    %c0_16 = arith.constant 0 : index
    %15 = vector.load %arg5[%c0_15, %c0_16] : memref<32x128xf32, #tpu.memory_space<vmem>>, vector<32x128xf32>
    %c0_17 = arith.constant 0 : index
    %c0_18 = arith.constant 0 : index
    %16 = vector.load %arg7[%c0_17, %c0_18] : memref<1x128xf32, #tpu.memory_space<vmem>>, vector<1x128xf32>
    %17 = vector.shape_cast %16 : vector<1x128xf32> to vector<1x128xf32>
    %18 = vector.broadcast %17 : vector<1x128xf32> to vector<8x128xf32>
    %cst_19 = arith.constant 0.000000e+00 : f32
    %19 = vector.broadcast %cst_19 : f32 to vector<8x32xf32>
    %cst_20 = arith.constant 0.000000e+00 : f32
    %20 = vector.broadcast %cst_20 : f32 to vector<8x32xf32>
    %c0_21 = arith.constant 0 : index
    %c0_22 = arith.constant 0 : index
    %21 = vector.load %arg14[%c0_21, %c0_22] : memref<128x128xf32, #tpu.memory_space<vmem>>, vector<8x128xf32>
    %cst_23 = arith.constant dense<0.000000e+00> : vector<8x128xf32>
    %22 = tpu.matmul %19, %7, %cst_23 {dimension_numbers = #tpu.dot_dimension_numbers<[1], [0], [0], [1], [0, 0, 1, 1], [], []>} : vector<8x32xf32>, vector<32x128xf32>, vector<8x128xf32> -> vector<8x128xf32>
    %23 = arith.addf %21, %22 : vector<8x128xf32>
    %24 = arith.negf %23 : vector<8x128xf32>
    %25 = math.exp %24 : vector<8x128xf32>
    %cst_24 = arith.constant 1.000000e+00 : f32
    %26 = vector.broadcast %cst_24 : f32 to vector<8x128xf32>
    %27 = arith.addf %26, %25 : vector<8x128xf32>
    %28 = arith.divf %26, %27 : vector<8x128xf32>
    %c64_i32 = arith.constant 64 : i32
    %29 = tpu.dynamic_rotate %28 by %c64_i32 dim 1 : vector<8x128xf32>, i32 -> vector<8x128xf32>
    %30 = arith.addf %22, %10 : vector<8x128xf32>
    %31 = arith.mulf %29, %30 : vector<8x128xf32>
    %32 = arith.addf %21, %31 : vector<8x128xf32>
    %33 = math.tanh %32 : vector<8x128xf32>
    %c64_i32_25 = arith.constant 64 : i32
    %34 = tpu.dynamic_rotate %33 by %c64_i32_25 dim 1 : vector<8x128xf32>, i32 -> vector<8x128xf32>
    %35 = vector.extract_strided_slice %34 {offsets = [0, 0], sizes = [8, 32], strides = [1, 1]} : vector<8x128xf32> to vector<8x32xf32>
    %36 = vector.extract_strided_slice %28 {offsets = [0, 32], sizes = [8, 32], strides = [1, 1]} : vector<8x128xf32> to vector<8x32xf32>
    %cst_26 = arith.constant 1.000000e+00 : f32
    %37 = vector.broadcast %cst_26 : f32 to vector<8x32xf32>
    %38 = arith.subf %37, %36 : vector<8x32xf32>
    %39 = arith.mulf %38, %35 : vector<8x32xf32>
    %40 = arith.mulf %36, %19 : vector<8x32xf32>
    %41 = arith.addf %39, %40 : vector<8x32xf32>
    %cst_27 = arith.constant dense<0.000000e+00> : vector<8x128xf32>
    %42 = tpu.matmul %41, %15, %cst_27 {dimension_numbers = #tpu.dot_dimension_numbers<[1], [0], [0], [1], [0, 0, 1, 1], [], []>} : vector<8x32xf32>, vector<32x128xf32>, vector<8x128xf32> -> vector<8x128xf32>
    %43 = arith.addf %42, %18 : vector<8x128xf32>
    %cst_28 = arith.constant dense<0.000000e+00> : vector<8x128xf32>
    %44 = tpu.matmul %20, %11, %cst_28 {dimension_numbers = #tpu.dot_dimension_numbers<[1], [0], [0], [1], [0, 0, 1, 1], [], []>} : vector<8x32xf32>, vector<32x128xf32>, vector<8x128xf32> -> vector<8x128xf32>
    %45 = arith.addf %43, %44 : vector<8x128xf32>
    %46 = arith.negf %45 : vector<8x128xf32>
    %47 = math.exp %46 : vector<8x128xf32>
    %cst_29 = arith.constant 1.000000e+00 : f32
    %48 = vector.broadcast %cst_29 : f32 to vector<8x128xf32>
    %49 = arith.addf %48, %47 : vector<8x128xf32>
    %50 = arith.divf %48, %49 : vector<8x128xf32>
    %c64_i32_30 = arith.constant 64 : i32
    %51 = tpu.dynamic_rotate %50 by %c64_i32_30 dim 1 : vector<8x128xf32>, i32 -> vector<8x128xf32>
    %52 = arith.addf %44, %14 : vector<8x128xf32>
    %53 = arith.mulf %51, %52 : vector<8x128xf32>
    %54 = arith.addf %43, %53 : vector<8x128xf32>
    %55 = math.tanh %54 : vector<8x128xf32>
    %c64_i32_31 = arith.constant 64 : i32
    %56 = tpu.dynamic_rotate %55 by %c64_i32_31 dim 1 : vector<8x128xf32>, i32 -> vector<8x128xf32>
    %57 = vector.extract_strided_slice %56 {offsets = [0, 0], sizes = [8, 32], strides = [1, 1]} : vector<8x128xf32> to vector<8x32xf32>
    %58 = vector.extract_strided_slice %50 {offsets = [0, 32], sizes = [8, 32], strides = [1, 1]} : vector<8x128xf32> to vector<8x32xf32>
    %cst_32 = arith.constant 1.000000e+00 : f32
    %59 = vector.broadcast %cst_32 : f32 to vector<8x32xf32>
    %60 = arith.subf %59, %58 : vector<8x32xf32>
    %61 = arith.mulf %60, %57 : vector<8x32xf32>
    %62 = arith.mulf %58, %20 : vector<8x32xf32>
    %63 = arith.addf %61, %62 : vector<8x32xf32>
    %c8 = arith.constant 8 : index
    %c0_33 = arith.constant 0 : index
    %64 = vector.load %arg14[%c8, %c0_33] : memref<128x128xf32, #tpu.memory_space<vmem>>, vector<8x128xf32>
    %cst_34 = arith.constant dense<0.000000e+00> : vector<8x128xf32>
    %65 = tpu.matmul %41, %7, %cst_34 {dimension_numbers = #tpu.dot_dimension_numbers<[1], [0], [0], [1], [0, 0, 1, 1], [], []>} : vector<8x32xf32>, vector<32x128xf32>, vector<8x128xf32> -> vector<8x128xf32>
    %66 = arith.addf %64, %65 : vector<8x128xf32>
    %67 = arith.negf %66 : vector<8x128xf32>
    %68 = math.exp %67 : vector<8x128xf32>
    %cst_35 = arith.constant 1.000000e+00 : f32
    %69 = vector.broadcast %cst_35 : f32 to vector<8x128xf32>
    %70 = arith.addf %69, %68 : vector<8x128xf32>
    %71 = arith.divf %69, %70 : vector<8x128xf32>
    %c64_i32_36 = arith.constant 64 : i32
    %72 = tpu.dynamic_rotate %71 by %c64_i32_36 dim 1 : vector<8x128xf32>, i32 -> vector<8x128xf32>
    %73 = arith.addf %65, %10 : vector<8x128xf32>
    %74 = arith.mulf %72, %73 : vector<8x128xf32>
    %75 = arith.addf %64, %74 : vector<8x128xf32>
    %76 = math.tanh %75 : vector<8x128xf32>
    %c64_i32_37 = arith.constant 64 : i32
    %77 = tpu.dynamic_rotate %76 by %c64_i32_37 dim 1 : vector<8x128xf32>, i32 -> vector<8x128xf32>
    %78 = vector.extract_strided_slice %77 {offsets = [0, 0], sizes = [8, 32], strides = [1, 1]} : vector<8x128xf32> to vector<8x32xf32>
    %79 = vector.extract_strided_slice %71 {offsets = [0, 32], sizes = [8, 32], strides = [1, 1]} : vector<8x128xf32> to vector<8x32xf32>
    %cst_38 = arith.constant 1.000000e+00 : f32
    %80 = vector.broadcast %cst_38 : f32 to vector<8x32xf32>
    %81 = arith.subf %80, %79 : vector<8x32xf32>
    %82 = arith.mulf %81, %78 : vector<8x32xf32>
    %83 = arith.mulf %79, %41 : vector<8x32xf32>
    %84 = arith.addf %82, %83 : vector<8x32xf32>
    %cst_39 = arith.constant dense<0.000000e+00> : vector<8x128xf32>
    %85 = tpu.matmul %84, %15, %cst_39 {dimension_numbers = #tpu.dot_dimension_numbers<[1], [0], [0], [1], [0, 0, 1, 1], [], []>} : vector<8x32xf32>, vector<32x128xf32>, vector<8x128xf32> -> vector<8x128xf32>
    %86 = arith.addf %85, %18 : vector<8x128xf32>
    %cst_40 = arith.constant dense<0.000000e+00> : vector<8x128xf32>
    %87 = tpu.matmul %63, %11, %cst_40 {dimension_numbers = #tpu.dot_dimension_numbers<[1], [0], [0], [1], [0, 0, 1, 1], [], []>} : vector<8x32xf32>, vector<32x128xf32>, vector<8x128xf32> -> vector<8x128xf32>
    %88 = arith.addf %86, %87 : vector<8x128xf32>
    %89 = arith.negf %88 : vector<8x128xf32>
    %90 = math.exp %89 : vector<8x128xf32>
    %cst_41 = arith.constant 1.000000e+00 : f32
    %91 = vector.broadcast %cst_41 : f32 to vector<8x128xf32>
    %92 = arith.addf %91, %90 : vector<8x128xf32>
    %93 = arith.divf %91, %92 : vector<8x128xf32>
    %c64_i32_42 = arith.constant 64 : i32
    %94 = tpu.dynamic_rotate %93 by %c64_i32_42 dim 1 : vector<8x128xf32>, i32 -> vector<8x128xf32>
    %95 = arith.addf %87, %14 : vector<8x128xf32>
    %96 = arith.mulf %94, %95 : vector<8x128xf32>
    %97 = arith.addf %86, %96 : vector<8x128xf32>
    %98 = math.tanh %97 : vector<8x128xf32>
    %c64_i32_43 = arith.constant 64 : i32
    %99 = tpu.dynamic_rotate %98 by %c64_i32_43 dim 1 : vector<8x128xf32>, i32 -> vector<8x128xf32>
    %100 = vector.extract_strided_slice %99 {offsets = [0, 0], sizes = [8, 32], strides = [1, 1]} : vector<8x128xf32> to vector<8x32xf32>
    %101 = vector.extract_strided_slice %93 {offsets = [0, 32], sizes = [8, 32], strides = [1, 1]} : vector<8x128xf32> to vector<8x32xf32>
    %cst_44 = arith.constant 1.000000e+00 : f32
    %102 = vector.broadcast %cst_44 : f32 to vector<8x32xf32>
    %103 = arith.subf %102, %101 : vector<8x32xf32>
    %104 = arith.mulf %103, %100 : vector<8x32xf32>
    %105 = arith.mulf %101, %63 : vector<8x32xf32>
    %106 = arith.addf %104, %105 : vector<8x32xf32>
    %c16 = arith.constant 16 : index
    %c0_45 = arith.constant 0 : index
    %107 = vector.load %arg14[%c16, %c0_45] : memref<128x128xf32, #tpu.memory_space<vmem>>, vector<8x128xf32>
    %cst_46 = arith.constant dense<0.000000e+00> : vector<8x128xf32>
    %108 = tpu.matmul %84, %7, %cst_46 {dimension_numbers = #tpu.dot_dimension_numbers<[1], [0], [0], [1], [0, 0, 1, 1], [], []>} : vector<8x32xf32>, vector<32x128xf32>, vector<8x128xf32> -> vector<8x128xf32>
    %109 = arith.addf %107, %108 : vector<8x128xf32>
    %110 = arith.negf %109 : vector<8x128xf32>
    %111 = math.exp %110 : vector<8x128xf32>
    %cst_47 = arith.constant 1.000000e+00 : f32
    %112 = vector.broadcast %cst_47 : f32 to vector<8x128xf32>
    %113 = arith.addf %112, %111 : vector<8x128xf32>
    %114 = arith.divf %112, %113 : vector<8x128xf32>
    %c64_i32_48 = arith.constant 64 : i32
    %115 = tpu.dynamic_rotate %114 by %c64_i32_48 dim 1 : vector<8x128xf32>, i32 -> vector<8x128xf32>
    %116 = arith.addf %108, %10 : vector<8x128xf32>
    %117 = arith.mulf %115, %116 : vector<8x128xf32>
    %118 = arith.addf %107, %117 : vector<8x128xf32>
    %119 = math.tanh %118 : vector<8x128xf32>
    %c64_i32_49 = arith.constant 64 : i32
    %120 = tpu.dynamic_rotate %119 by %c64_i32_49 dim 1 : vector<8x128xf32>, i32 -> vector<8x128xf32>
    %121 = vector.extract_strided_slice %120 {offsets = [0, 0], sizes = [8, 32], strides = [1, 1]} : vector<8x128xf32> to vector<8x32xf32>
    %122 = vector.extract_strided_slice %114 {offsets = [0, 32], sizes = [8, 32], strides = [1, 1]} : vector<8x128xf32> to vector<8x32xf32>
    %cst_50 = arith.constant 1.000000e+00 : f32
    %123 = vector.broadcast %cst_50 : f32 to vector<8x32xf32>
    %124 = arith.subf %123, %122 : vector<8x32xf32>
    %125 = arith.mulf %124, %121 : vector<8x32xf32>
    %126 = arith.mulf %122, %84 : vector<8x32xf32>
    %127 = arith.addf %125, %126 : vector<8x32xf32>
    %cst_51 = arith.constant dense<0.000000e+00> : vector<8x128xf32>
    %128 = tpu.matmul %127, %15, %cst_51 {dimension_numbers = #tpu.dot_dimension_numbers<[1], [0], [0], [1], [0, 0, 1, 1], [], []>} : vector<8x32xf32>, vector<32x128xf32>, vector<8x128xf32> -> vector<8x128xf32>
    %129 = arith.addf %128, %18 : vector<8x128xf32>
    %cst_52 = arith.constant dense<0.000000e+00> : vector<8x128xf32>
    %130 = tpu.matmul %106, %11, %cst_52 {dimension_numbers = #tpu.dot_dimension_numbers<[1], [0], [0], [1], [0, 0, 1, 1], [], []>} : vector<8x32xf32>, vector<32x128xf32>, vector<8x128xf32> -> vector<8x128xf32>
    %131 = arith.addf %129, %130 : vector<8x128xf32>
    %132 = arith.negf %131 : vector<8x128xf32>
    %133 = math.exp %132 : vector<8x128xf32>
    %cst_53 = arith.constant 1.000000e+00 : f32
    %134 = vector.broadcast %cst_53 : f32 to vector<8x128xf32>
    %135 = arith.addf %134, %133 : vector<8x128xf32>
    %136 = arith.divf %134, %135 : vector<8x128xf32>
    %c64_i32_54 = arith.constant 64 : i32
    %137 = tpu.dynamic_rotate %136 by %c64_i32_54 dim 1 : vector<8x128xf32>, i32 -> vector<8x128xf32>
    %138 = arith.addf %130, %14 : vector<8x128xf32>
    %139 = arith.mulf %137, %138 : vector<8x128xf32>
    %140 = arith.addf %129, %139 : vector<8x128xf32>
    %141 = math.tanh %140 : vector<8x128xf32>
    %c64_i32_55 = arith.constant 64 : i32
    %142 = tpu.dynamic_rotate %141 by %c64_i32_55 dim 1 : vector<8x128xf32>, i32 -> vector<8x128xf32>
    %143 = vector.extract_strided_slice %142 {offsets = [0, 0], sizes = [8, 32], strides = [1, 1]} : vector<8x128xf32> to vector<8x32xf32>
    %144 = vector.extract_strided_slice %136 {offsets = [0, 32], sizes = [8, 32], strides = [1, 1]} : vector<8x128xf32> to vector<8x32xf32>
    %cst_56 = arith.constant 1.000000e+00 : f32
    %145 = vector.broadcast %cst_56 : f32 to vector<8x32xf32>
    %146 = arith.subf %145, %144 : vector<8x32xf32>
    %147 = arith.mulf %146, %143 : vector<8x32xf32>
    %148 = arith.mulf %144, %106 : vector<8x32xf32>
    %149 = arith.addf %147, %148 : vector<8x32xf32>
    %c24 = arith.constant 24 : index
    %c0_57 = arith.constant 0 : index
    %150 = vector.load %arg14[%c24, %c0_57] : memref<128x128xf32, #tpu.memory_space<vmem>>, vector<8x128xf32>
    %cst_58 = arith.constant dense<0.000000e+00> : vector<8x128xf32>
    %151 = tpu.matmul %127, %7, %cst_58 {dimension_numbers = #tpu.dot_dimension_numbers<[1], [0], [0], [1], [0, 0, 1, 1], [], []>} : vector<8x32xf32>, vector<32x128xf32>, vector<8x128xf32> -> vector<8x128xf32>
    %152 = arith.addf %150, %151 : vector<8x128xf32>
    %153 = arith.negf %152 : vector<8x128xf32>
    %154 = math.exp %153 : vector<8x128xf32>
    %cst_59 = arith.constant 1.000000e+00 : f32
    %155 = vector.broadcast %cst_59 : f32 to vector<8x128xf32>
    %156 = arith.addf %155, %154 : vector<8x128xf32>
    %157 = arith.divf %155, %156 : vector<8x128xf32>
    %c64_i32_60 = arith.constant 64 : i32
    %158 = tpu.dynamic_rotate %157 by %c64_i32_60 dim 1 : vector<8x128xf32>, i32 -> vector<8x128xf32>
    %159 = arith.addf %151, %10 : vector<8x128xf32>
    %160 = arith.mulf %158, %159 : vector<8x128xf32>
    %161 = arith.addf %150, %160 : vector<8x128xf32>
    %162 = math.tanh %161 : vector<8x128xf32>
    %c64_i32_61 = arith.constant 64 : i32
    %163 = tpu.dynamic_rotate %162 by %c64_i32_61 dim 1 : vector<8x128xf32>, i32 -> vector<8x128xf32>
    %164 = vector.extract_strided_slice %163 {offsets = [0, 0], sizes = [8, 32], strides = [1, 1]} : vector<8x128xf32> to vector<8x32xf32>
    %165 = vector.extract_strided_slice %157 {offsets = [0, 32], sizes = [8, 32], strides = [1, 1]} : vector<8x128xf32> to vector<8x32xf32>
    %cst_62 = arith.constant 1.000000e+00 : f32
    %166 = vector.broadcast %cst_62 : f32 to vector<8x32xf32>
    %167 = arith.subf %166, %165 : vector<8x32xf32>
    %168 = arith.mulf %167, %164 : vector<8x32xf32>
    %169 = arith.mulf %165, %127 : vector<8x32xf32>
    %170 = arith.addf %168, %169 : vector<8x32xf32>
    %cst_63 = arith.constant dense<0.000000e+00> : vector<8x128xf32>
    %171 = tpu.matmul %170, %15, %cst_63 {dimension_numbers = #tpu.dot_dimension_numbers<[1], [0], [0], [1], [0, 0, 1, 1], [], []>} : vector<8x32xf32>, vector<32x128xf32>, vector<8x128xf32> -> vector<8x128xf32>
    %172 = arith.addf %171, %18 : vector<8x128xf32>
    %cst_64 = arith.constant dense<0.000000e+00> : vector<8x128xf32>
    %173 = tpu.matmul %149, %11, %cst_64 {dimension_numbers = #tpu.dot_dimension_numbers<[1], [0], [0], [1], [0, 0, 1, 1], [], []>} : vector<8x32xf32>, vector<32x128xf32>, vector<8x128xf32> -> vector<8x128xf32>
    %174 = arith.addf %172, %173 : vector<8x128xf32>
    %175 = arith.negf %174 : vector<8x128xf32>
    %176 = math.exp %175 : vector<8x128xf32>
    %cst_65 = arith.constant 1.000000e+00 : f32
    %177 = vector.broadcast %cst_65 : f32 to vector<8x128xf32>
    %178 = arith.addf %177, %176 : vector<8x128xf32>
    %179 = arith.divf %177, %178 : vector<8x128xf32>
    %c64_i32_66 = arith.constant 64 : i32
    %180 = tpu.dynamic_rotate %179 by %c64_i32_66 dim 1 : vector<8x128xf32>, i32 -> vector<8x128xf32>
    %181 = arith.addf %173, %14 : vector<8x128xf32>
    %182 = arith.mulf %180, %181 : vector<8x128xf32>
    %183 = arith.addf %172, %182 : vector<8x128xf32>
    %184 = math.tanh %183 : vector<8x128xf32>
    %c64_i32_67 = arith.constant 64 : i32
    %185 = tpu.dynamic_rotate %184 by %c64_i32_67 dim 1 : vector<8x128xf32>, i32 -> vector<8x128xf32>
    %186 = vector.extract_strided_slice %185 {offsets = [0, 0], sizes = [8, 32], strides = [1, 1]} : vector<8x128xf32> to vector<8x32xf32>
    %187 = vector.extract_strided_slice %179 {offsets = [0, 32], sizes = [8, 32], strides = [1, 1]} : vector<8x128xf32> to vector<8x32xf32>
    %cst_68 = arith.constant 1.000000e+00 : f32
    %188 = vector.broadcast %cst_68 : f32 to vector<8x32xf32>
    %189 = arith.subf %188, %187 : vector<8x32xf32>
    %190 = arith.mulf %189, %186 : vector<8x32xf32>
    %191 = arith.mulf %187, %149 : vector<8x32xf32>
    %192 = arith.addf %190, %191 : vector<8x32xf32>
    %c32 = arith.constant 32 : index
    %c0_69 = arith.constant 0 : index
    %193 = vector.load %arg14[%c32, %c0_69] : memref<128x128xf32, #tpu.memory_space<vmem>>, vector<8x128xf32>
    %cst_70 = arith.constant dense<0.000000e+00> : vector<8x128xf32>
    %194 = tpu.matmul %170, %7, %cst_70 {dimension_numbers = #tpu.dot_dimension_numbers<[1], [0], [0], [1], [0, 0, 1, 1], [], []>} : vector<8x32xf32>, vector<32x128xf32>, vector<8x128xf32> -> vector<8x128xf32>
    %195 = arith.addf %193, %194 : vector<8x128xf32>
    %196 = arith.negf %195 : vector<8x128xf32>
    %197 = math.exp %196 : vector<8x128xf32>
    %cst_71 = arith.constant 1.000000e+00 : f32
    %198 = vector.broadcast %cst_71 : f32 to vector<8x128xf32>
    %199 = arith.addf %198, %197 : vector<8x128xf32>
    %200 = arith.divf %198, %199 : vector<8x128xf32>
    %c64_i32_72 = arith.constant 64 : i32
    %201 = tpu.dynamic_rotate %200 by %c64_i32_72 dim 1 : vector<8x128xf32>, i32 -> vector<8x128xf32>
    %202 = arith.addf %194, %10 : vector<8x128xf32>
    %203 = arith.mulf %201, %202 : vector<8x128xf32>
    %204 = arith.addf %193, %203 : vector<8x128xf32>
    %205 = math.tanh %204 : vector<8x128xf32>
    %c64_i32_73 = arith.constant 64 : i32
    %206 = tpu.dynamic_rotate %205 by %c64_i32_73 dim 1 : vector<8x128xf32>, i32 -> vector<8x128xf32>
    %207 = vector.extract_strided_slice %206 {offsets = [0, 0], sizes = [8, 32], strides = [1, 1]} : vector<8x128xf32> to vector<8x32xf32>
    %208 = vector.extract_strided_slice %200 {offsets = [0, 32], sizes = [8, 32], strides = [1, 1]} : vector<8x128xf32> to vector<8x32xf32>
    %cst_74 = arith.constant 1.000000e+00 : f32
    %209 = vector.broadcast %cst_74 : f32 to vector<8x32xf32>
    %210 = arith.subf %209, %208 : vector<8x32xf32>
    %211 = arith.mulf %210, %207 : vector<8x32xf32>
    %212 = arith.mulf %208, %170 : vector<8x32xf32>
    %213 = arith.addf %211, %212 : vector<8x32xf32>
    %cst_75 = arith.constant dense<0.000000e+00> : vector<8x128xf32>
    %214 = tpu.matmul %213, %15, %cst_75 {dimension_numbers = #tpu.dot_dimension_numbers<[1], [0], [0], [1], [0, 0, 1, 1], [], []>} : vector<8x32xf32>, vector<32x128xf32>, vector<8x128xf32> -> vector<8x128xf32>
    %215 = arith.addf %214, %18 : vector<8x128xf32>
    %cst_76 = arith.constant dense<0.000000e+00> : vector<8x128xf32>
    %216 = tpu.matmul %192, %11, %cst_76 {dimension_numbers = #tpu.dot_dimension_numbers<[1], [0], [0], [1], [0, 0, 1, 1], [], []>} : vector<8x32xf32>, vector<32x128xf32>, vector<8x128xf32> -> vector<8x128xf32>
    %217 = arith.addf %215, %216 : vector<8x128xf32>
    %218 = arith.negf %217 : vector<8x128xf32>
    %219 = math.exp %218 : vector<8x128xf32>
    %cst_77 = arith.constant 1.000000e+00 : f32
    %220 = vector.broadcast %cst_77 : f32 to vector<8x128xf32>
    %221 = arith.addf %220, %219 : vector<8x128xf32>
    %222 = arith.divf %220, %221 : vector<8x128xf32>
    %c64_i32_78 = arith.constant 64 : i32
    %223 = tpu.dynamic_rotate %222 by %c64_i32_78 dim 1 : vector<8x128xf32>, i32 -> vector<8x128xf32>
    %224 = arith.addf %216, %14 : vector<8x128xf32>
    %225 = arith.mulf %223, %224 : vector<8x128xf32>
    %226 = arith.addf %215, %225 : vector<8x128xf32>
    %227 = math.tanh %226 : vector<8x128xf32>
    %c64_i32_79 = arith.constant 64 : i32
    %228 = tpu.dynamic_rotate %227 by %c64_i32_79 dim 1 : vector<8x128xf32>, i32 -> vector<8x128xf32>
    %229 = vector.extract_strided_slice %228 {offsets = [0, 0], sizes = [8, 32], strides = [1, 1]} : vector<8x128xf32> to vector<8x32xf32>
    %230 = vector.extract_strided_slice %222 {offsets = [0, 32], sizes = [8, 32], strides = [1, 1]} : vector<8x128xf32> to vector<8x32xf32>
    %cst_80 = arith.constant 1.000000e+00 : f32
    %231 = vector.broadcast %cst_80 : f32 to vector<8x32xf32>
    %232 = arith.subf %231, %230 : vector<8x32xf32>
    %233 = arith.mulf %232, %229 : vector<8x32xf32>
    %234 = arith.mulf %230, %192 : vector<8x32xf32>
    %235 = arith.addf %233, %234 : vector<8x32xf32>
    %c40 = arith.constant 40 : index
    %c0_81 = arith.constant 0 : index
    %236 = vector.load %arg14[%c40, %c0_81] : memref<128x128xf32, #tpu.memory_space<vmem>>, vector<8x128xf32>
    %cst_82 = arith.constant dense<0.000000e+00> : vector<8x128xf32>
    %237 = tpu.matmul %213, %7, %cst_82 {dimension_numbers = #tpu.dot_dimension_numbers<[1], [0], [0], [1], [0, 0, 1, 1], [], []>} : vector<8x32xf32>, vector<32x128xf32>, vector<8x128xf32> -> vector<8x128xf32>
    %238 = arith.addf %236, %237 : vector<8x128xf32>
    %239 = arith.negf %238 : vector<8x128xf32>
    %240 = math.exp %239 : vector<8x128xf32>
    %cst_83 = arith.constant 1.000000e+00 : f32
    %241 = vector.broadcast %cst_83 : f32 to vector<8x128xf32>
    %242 = arith.addf %241, %240 : vector<8x128xf32>
    %243 = arith.divf %241, %242 : vector<8x128xf32>
    %c64_i32_84 = arith.constant 64 : i32
    %244 = tpu.dynamic_rotate %243 by %c64_i32_84 dim 1 : vector<8x128xf32>, i32 -> vector<8x128xf32>
    %245 = arith.addf %237, %10 : vector<8x128xf32>
    %246 = arith.mulf %244, %245 : vector<8x128xf32>
    %247 = arith.addf %236, %246 : vector<8x128xf32>
    %248 = math.tanh %247 : vector<8x128xf32>
    %c64_i32_85 = arith.constant 64 : i32
    %249 = tpu.dynamic_rotate %248 by %c64_i32_85 dim 1 : vector<8x128xf32>, i32 -> vector<8x128xf32>
    %250 = vector.extract_strided_slice %249 {offsets = [0, 0], sizes = [8, 32], strides = [1, 1]} : vector<8x128xf32> to vector<8x32xf32>
    %251 = vector.extract_strided_slice %243 {offsets = [0, 32], sizes = [8, 32], strides = [1, 1]} : vector<8x128xf32> to vector<8x32xf32>
    %cst_86 = arith.constant 1.000000e+00 : f32
    %252 = vector.broadcast %cst_86 : f32 to vector<8x32xf32>
    %253 = arith.subf %252, %251 : vector<8x32xf32>
    %254 = arith.mulf %253, %250 : vector<8x32xf32>
    %255 = arith.mulf %251, %213 : vector<8x32xf32>
    %256 = arith.addf %254, %255 : vector<8x32xf32>
    %cst_87 = arith.constant dense<0.000000e+00> : vector<8x128xf32>
    %257 = tpu.matmul %256, %15, %cst_87 {dimension_numbers = #tpu.dot_dimension_numbers<[1], [0], [0], [1], [0, 0, 1, 1], [], []>} : vector<8x32xf32>, vector<32x128xf32>, vector<8x128xf32> -> vector<8x128xf32>
    %258 = arith.addf %257, %18 : vector<8x128xf32>
    %cst_88 = arith.constant dense<0.000000e+00> : vector<8x128xf32>
    %259 = tpu.matmul %235, %11, %cst_88 {dimension_numbers = #tpu.dot_dimension_numbers<[1], [0], [0], [1], [0, 0, 1, 1], [], []>} : vector<8x32xf32>, vector<32x128xf32>, vector<8x128xf32> -> vector<8x128xf32>
    %260 = arith.addf %258, %259 : vector<8x128xf32>
    %261 = arith.negf %260 : vector<8x128xf32>
    %262 = math.exp %261 : vector<8x128xf32>
    %cst_89 = arith.constant 1.000000e+00 : f32
    %263 = vector.broadcast %cst_89 : f32 to vector<8x128xf32>
    %264 = arith.addf %263, %262 : vector<8x128xf32>
    %265 = arith.divf %263, %264 : vector<8x128xf32>
    %c64_i32_90 = arith.constant 64 : i32
    %266 = tpu.dynamic_rotate %265 by %c64_i32_90 dim 1 : vector<8x128xf32>, i32 -> vector<8x128xf32>
    %267 = arith.addf %259, %14 : vector<8x128xf32>
    %268 = arith.mulf %266, %267 : vector<8x128xf32>
    %269 = arith.addf %258, %268 : vector<8x128xf32>
    %270 = math.tanh %269 : vector<8x128xf32>
    %c64_i32_91 = arith.constant 64 : i32
    %271 = tpu.dynamic_rotate %270 by %c64_i32_91 dim 1 : vector<8x128xf32>, i32 -> vector<8x128xf32>
    %272 = vector.extract_strided_slice %271 {offsets = [0, 0], sizes = [8, 32], strides = [1, 1]} : vector<8x128xf32> to vector<8x32xf32>
    %273 = vector.extract_strided_slice %265 {offsets = [0, 32], sizes = [8, 32], strides = [1, 1]} : vector<8x128xf32> to vector<8x32xf32>
    %cst_92 = arith.constant 1.000000e+00 : f32
    %274 = vector.broadcast %cst_92 : f32 to vector<8x32xf32>
    %275 = arith.subf %274, %273 : vector<8x32xf32>
    %276 = arith.mulf %275, %272 : vector<8x32xf32>
    %277 = arith.mulf %273, %235 : vector<8x32xf32>
    %278 = arith.addf %276, %277 : vector<8x32xf32>
    %c48 = arith.constant 48 : index
    %c0_93 = arith.constant 0 : index
    %279 = vector.load %arg14[%c48, %c0_93] : memref<128x128xf32, #tpu.memory_space<vmem>>, vector<8x128xf32>
    %cst_94 = arith.constant dense<0.000000e+00> : vector<8x128xf32>
    %280 = tpu.matmul %256, %7, %cst_94 {dimension_numbers = #tpu.dot_dimension_numbers<[1], [0], [0], [1], [0, 0, 1, 1], [], []>} : vector<8x32xf32>, vector<32x128xf32>, vector<8x128xf32> -> vector<8x128xf32>
    %281 = arith.addf %279, %280 : vector<8x128xf32>
    %282 = arith.negf %281 : vector<8x128xf32>
    %283 = math.exp %282 : vector<8x128xf32>
    %cst_95 = arith.constant 1.000000e+00 : f32
    %284 = vector.broadcast %cst_95 : f32 to vector<8x128xf32>
    %285 = arith.addf %284, %283 : vector<8x128xf32>
    %286 = arith.divf %284, %285 : vector<8x128xf32>
    %c64_i32_96 = arith.constant 64 : i32
    %287 = tpu.dynamic_rotate %286 by %c64_i32_96 dim 1 : vector<8x128xf32>, i32 -> vector<8x128xf32>
    %288 = arith.addf %280, %10 : vector<8x128xf32>
    %289 = arith.mulf %287, %288 : vector<8x128xf32>
    %290 = arith.addf %279, %289 : vector<8x128xf32>
    %291 = math.tanh %290 : vector<8x128xf32>
    %c64_i32_97 = arith.constant 64 : i32
    %292 = tpu.dynamic_rotate %291 by %c64_i32_97 dim 1 : vector<8x128xf32>, i32 -> vector<8x128xf32>
    %293 = vector.extract_strided_slice %292 {offsets = [0, 0], sizes = [8, 32], strides = [1, 1]} : vector<8x128xf32> to vector<8x32xf32>
    %294 = vector.extract_strided_slice %286 {offsets = [0, 32], sizes = [8, 32], strides = [1, 1]} : vector<8x128xf32> to vector<8x32xf32>
    %cst_98 = arith.constant 1.000000e+00 : f32
    %295 = vector.broadcast %cst_98 : f32 to vector<8x32xf32>
    %296 = arith.subf %295, %294 : vector<8x32xf32>
    %297 = arith.mulf %296, %293 : vector<8x32xf32>
    %298 = arith.mulf %294, %256 : vector<8x32xf32>
    %299 = arith.addf %297, %298 : vector<8x32xf32>
    %cst_99 = arith.constant dense<0.000000e+00> : vector<8x128xf32>
    %300 = tpu.matmul %299, %15, %cst_99 {dimension_numbers = #tpu.dot_dimension_numbers<[1], [0], [0], [1], [0, 0, 1, 1], [], []>} : vector<8x32xf32>, vector<32x128xf32>, vector<8x128xf32> -> vector<8x128xf32>
    %301 = arith.addf %300, %18 : vector<8x128xf32>
    %cst_100 = arith.constant dense<0.000000e+00> : vector<8x128xf32>
    %302 = tpu.matmul %278, %11, %cst_100 {dimension_numbers = #tpu.dot_dimension_numbers<[1], [0], [0], [1], [0, 0, 1, 1], [], []>} : vector<8x32xf32>, vector<32x128xf32>, vector<8x128xf32> -> vector<8x128xf32>
    %303 = arith.addf %301, %302 : vector<8x128xf32>
    %304 = arith.negf %303 : vector<8x128xf32>
    %305 = math.exp %304 : vector<8x128xf32>
    %cst_101 = arith.constant 1.000000e+00 : f32
    %306 = vector.broadcast %cst_101 : f32 to vector<8x128xf32>
    %307 = arith.addf %306, %305 : vector<8x128xf32>
    %308 = arith.divf %306, %307 : vector<8x128xf32>
    %c64_i32_102 = arith.constant 64 : i32
    %309 = tpu.dynamic_rotate %308 by %c64_i32_102 dim 1 : vector<8x128xf32>, i32 -> vector<8x128xf32>
    %310 = arith.addf %302, %14 : vector<8x128xf32>
    %311 = arith.mulf %309, %310 : vector<8x128xf32>
    %312 = arith.addf %301, %311 : vector<8x128xf32>
    %313 = math.tanh %312 : vector<8x128xf32>
    %c64_i32_103 = arith.constant 64 : i32
    %314 = tpu.dynamic_rotate %313 by %c64_i32_103 dim 1 : vector<8x128xf32>, i32 -> vector<8x128xf32>
    %315 = vector.extract_strided_slice %314 {offsets = [0, 0], sizes = [8, 32], strides = [1, 1]} : vector<8x128xf32> to vector<8x32xf32>
    %316 = vector.extract_strided_slice %308 {offsets = [0, 32], sizes = [8, 32], strides = [1, 1]} : vector<8x128xf32> to vector<8x32xf32>
    %cst_104 = arith.constant 1.000000e+00 : f32
    %317 = vector.broadcast %cst_104 : f32 to vector<8x32xf32>
    %318 = arith.subf %317, %316 : vector<8x32xf32>
    %319 = arith.mulf %318, %315 : vector<8x32xf32>
    %320 = arith.mulf %316, %278 : vector<8x32xf32>
    %321 = arith.addf %319, %320 : vector<8x32xf32>
    %c56 = arith.constant 56 : index
    %c0_105 = arith.constant 0 : index
    %322 = vector.load %arg14[%c56, %c0_105] : memref<128x128xf32, #tpu.memory_space<vmem>>, vector<8x128xf32>
    %cst_106 = arith.constant dense<0.000000e+00> : vector<8x128xf32>
    %323 = tpu.matmul %299, %7, %cst_106 {dimension_numbers = #tpu.dot_dimension_numbers<[1], [0], [0], [1], [0, 0, 1, 1], [], []>} : vector<8x32xf32>, vector<32x128xf32>, vector<8x128xf32> -> vector<8x128xf32>
    %324 = arith.addf %322, %323 : vector<8x128xf32>
    %325 = arith.negf %324 : vector<8x128xf32>
    %326 = math.exp %325 : vector<8x128xf32>
    %cst_107 = arith.constant 1.000000e+00 : f32
    %327 = vector.broadcast %cst_107 : f32 to vector<8x128xf32>
    %328 = arith.addf %327, %326 : vector<8x128xf32>
    %329 = arith.divf %327, %328 : vector<8x128xf32>
    %c64_i32_108 = arith.constant 64 : i32
    %330 = tpu.dynamic_rotate %329 by %c64_i32_108 dim 1 : vector<8x128xf32>, i32 -> vector<8x128xf32>
    %331 = arith.addf %323, %10 : vector<8x128xf32>
    %332 = arith.mulf %330, %331 : vector<8x128xf32>
    %333 = arith.addf %322, %332 : vector<8x128xf32>
    %334 = math.tanh %333 : vector<8x128xf32>
    %c64_i32_109 = arith.constant 64 : i32
    %335 = tpu.dynamic_rotate %334 by %c64_i32_109 dim 1 : vector<8x128xf32>, i32 -> vector<8x128xf32>
    %336 = vector.extract_strided_slice %335 {offsets = [0, 0], sizes = [8, 32], strides = [1, 1]} : vector<8x128xf32> to vector<8x32xf32>
    %337 = vector.extract_strided_slice %329 {offsets = [0, 32], sizes = [8, 32], strides = [1, 1]} : vector<8x128xf32> to vector<8x32xf32>
    %cst_110 = arith.constant 1.000000e+00 : f32
    %338 = vector.broadcast %cst_110 : f32 to vector<8x32xf32>
    %339 = arith.subf %338, %337 : vector<8x32xf32>
    %340 = arith.mulf %339, %336 : vector<8x32xf32>
    %341 = arith.mulf %337, %299 : vector<8x32xf32>
    %342 = arith.addf %340, %341 : vector<8x32xf32>
    %cst_111 = arith.constant dense<0.000000e+00> : vector<8x128xf32>
    %343 = tpu.matmul %342, %15, %cst_111 {dimension_numbers = #tpu.dot_dimension_numbers<[1], [0], [0], [1], [0, 0, 1, 1], [], []>} : vector<8x32xf32>, vector<32x128xf32>, vector<8x128xf32> -> vector<8x128xf32>
    %344 = arith.addf %343, %18 : vector<8x128xf32>
    %cst_112 = arith.constant dense<0.000000e+00> : vector<8x128xf32>
    %345 = tpu.matmul %321, %11, %cst_112 {dimension_numbers = #tpu.dot_dimension_numbers<[1], [0], [0], [1], [0, 0, 1, 1], [], []>} : vector<8x32xf32>, vector<32x128xf32>, vector<8x128xf32> -> vector<8x128xf32>
    %346 = arith.addf %344, %345 : vector<8x128xf32>
    %347 = arith.negf %346 : vector<8x128xf32>
    %348 = math.exp %347 : vector<8x128xf32>
    %cst_113 = arith.constant 1.000000e+00 : f32
    %349 = vector.broadcast %cst_113 : f32 to vector<8x128xf32>
    %350 = arith.addf %349, %348 : vector<8x128xf32>
    %351 = arith.divf %349, %350 : vector<8x128xf32>
    %c64_i32_114 = arith.constant 64 : i32
    %352 = tpu.dynamic_rotate %351 by %c64_i32_114 dim 1 : vector<8x128xf32>, i32 -> vector<8x128xf32>
    %353 = arith.addf %345, %14 : vector<8x128xf32>
    %354 = arith.mulf %352, %353 : vector<8x128xf32>
    %355 = arith.addf %344, %354 : vector<8x128xf32>
    %356 = math.tanh %355 : vector<8x128xf32>
    %c64_i32_115 = arith.constant 64 : i32
    %357 = tpu.dynamic_rotate %356 by %c64_i32_115 dim 1 : vector<8x128xf32>, i32 -> vector<8x128xf32>
    %358 = vector.extract_strided_slice %357 {offsets = [0, 0], sizes = [8, 32], strides = [1, 1]} : vector<8x128xf32> to vector<8x32xf32>
    %359 = vector.extract_strided_slice %351 {offsets = [0, 32], sizes = [8, 32], strides = [1, 1]} : vector<8x128xf32> to vector<8x32xf32>
    %cst_116 = arith.constant 1.000000e+00 : f32
    %360 = vector.broadcast %cst_116 : f32 to vector<8x32xf32>
    %361 = arith.subf %360, %359 : vector<8x32xf32>
    %362 = arith.mulf %361, %358 : vector<8x32xf32>
    %363 = arith.mulf %359, %321 : vector<8x32xf32>
    %364 = arith.addf %362, %363 : vector<8x32xf32>
    %c64 = arith.constant 64 : index
    %c0_117 = arith.constant 0 : index
    %365 = vector.load %arg14[%c64, %c0_117] : memref<128x128xf32, #tpu.memory_space<vmem>>, vector<8x128xf32>
    %cst_118 = arith.constant dense<0.000000e+00> : vector<8x128xf32>
    %366 = tpu.matmul %342, %7, %cst_118 {dimension_numbers = #tpu.dot_dimension_numbers<[1], [0], [0], [1], [0, 0, 1, 1], [], []>} : vector<8x32xf32>, vector<32x128xf32>, vector<8x128xf32> -> vector<8x128xf32>
    %367 = arith.addf %365, %366 : vector<8x128xf32>
    %368 = arith.negf %367 : vector<8x128xf32>
    %369 = math.exp %368 : vector<8x128xf32>
    %cst_119 = arith.constant 1.000000e+00 : f32
    %370 = vector.broadcast %cst_119 : f32 to vector<8x128xf32>
    %371 = arith.addf %370, %369 : vector<8x128xf32>
    %372 = arith.divf %370, %371 : vector<8x128xf32>
    %c64_i32_120 = arith.constant 64 : i32
    %373 = tpu.dynamic_rotate %372 by %c64_i32_120 dim 1 : vector<8x128xf32>, i32 -> vector<8x128xf32>
    %374 = arith.addf %366, %10 : vector<8x128xf32>
    %375 = arith.mulf %373, %374 : vector<8x128xf32>
    %376 = arith.addf %365, %375 : vector<8x128xf32>
    %377 = math.tanh %376 : vector<8x128xf32>
    %c64_i32_121 = arith.constant 64 : i32
    %378 = tpu.dynamic_rotate %377 by %c64_i32_121 dim 1 : vector<8x128xf32>, i32 -> vector<8x128xf32>
    %379 = vector.extract_strided_slice %378 {offsets = [0, 0], sizes = [8, 32], strides = [1, 1]} : vector<8x128xf32> to vector<8x32xf32>
    %380 = vector.extract_strided_slice %372 {offsets = [0, 32], sizes = [8, 32], strides = [1, 1]} : vector<8x128xf32> to vector<8x32xf32>
    %cst_122 = arith.constant 1.000000e+00 : f32
    %381 = vector.broadcast %cst_122 : f32 to vector<8x32xf32>
    %382 = arith.subf %381, %380 : vector<8x32xf32>
    %383 = arith.mulf %382, %379 : vector<8x32xf32>
    %384 = arith.mulf %380, %342 : vector<8x32xf32>
    %385 = arith.addf %383, %384 : vector<8x32xf32>
    %cst_123 = arith.constant dense<0.000000e+00> : vector<8x128xf32>
    %386 = tpu.matmul %385, %15, %cst_123 {dimension_numbers = #tpu.dot_dimension_numbers<[1], [0], [0], [1], [0, 0, 1, 1], [], []>} : vector<8x32xf32>, vector<32x128xf32>, vector<8x128xf32> -> vector<8x128xf32>
    %387 = arith.addf %386, %18 : vector<8x128xf32>
    %cst_124 = arith.constant dense<0.000000e+00> : vector<8x128xf32>
    %388 = tpu.matmul %364, %11, %cst_124 {dimension_numbers = #tpu.dot_dimension_numbers<[1], [0], [0], [1], [0, 0, 1, 1], [], []>} : vector<8x32xf32>, vector<32x128xf32>, vector<8x128xf32> -> vector<8x128xf32>
    %389 = arith.addf %387, %388 : vector<8x128xf32>
    %390 = arith.negf %389 : vector<8x128xf32>
    %391 = math.exp %390 : vector<8x128xf32>
    %cst_125 = arith.constant 1.000000e+00 : f32
    %392 = vector.broadcast %cst_125 : f32 to vector<8x128xf32>
    %393 = arith.addf %392, %391 : vector<8x128xf32>
    %394 = arith.divf %392, %393 : vector<8x128xf32>
    %c64_i32_126 = arith.constant 64 : i32
    %395 = tpu.dynamic_rotate %394 by %c64_i32_126 dim 1 : vector<8x128xf32>, i32 -> vector<8x128xf32>
    %396 = arith.addf %388, %14 : vector<8x128xf32>
    %397 = arith.mulf %395, %396 : vector<8x128xf32>
    %398 = arith.addf %387, %397 : vector<8x128xf32>
    %399 = math.tanh %398 : vector<8x128xf32>
    %c64_i32_127 = arith.constant 64 : i32
    %400 = tpu.dynamic_rotate %399 by %c64_i32_127 dim 1 : vector<8x128xf32>, i32 -> vector<8x128xf32>
    %401 = vector.extract_strided_slice %400 {offsets = [0, 0], sizes = [8, 32], strides = [1, 1]} : vector<8x128xf32> to vector<8x32xf32>
    %402 = vector.extract_strided_slice %394 {offsets = [0, 32], sizes = [8, 32], strides = [1, 1]} : vector<8x128xf32> to vector<8x32xf32>
    %cst_128 = arith.constant 1.000000e+00 : f32
    %403 = vector.broadcast %cst_128 : f32 to vector<8x32xf32>
    %404 = arith.subf %403, %402 : vector<8x32xf32>
    %405 = arith.mulf %404, %401 : vector<8x32xf32>
    %406 = arith.mulf %402, %364 : vector<8x32xf32>
    %407 = arith.addf %405, %406 : vector<8x32xf32>
    %c72 = arith.constant 72 : index
    %c0_129 = arith.constant 0 : index
    %408 = vector.load %arg14[%c72, %c0_129] : memref<128x128xf32, #tpu.memory_space<vmem>>, vector<8x128xf32>
    %cst_130 = arith.constant dense<0.000000e+00> : vector<8x128xf32>
    %409 = tpu.matmul %385, %7, %cst_130 {dimension_numbers = #tpu.dot_dimension_numbers<[1], [0], [0], [1], [0, 0, 1, 1], [], []>} : vector<8x32xf32>, vector<32x128xf32>, vector<8x128xf32> -> vector<8x128xf32>
    %410 = arith.addf %408, %409 : vector<8x128xf32>
    %411 = arith.negf %410 : vector<8x128xf32>
    %412 = math.exp %411 : vector<8x128xf32>
    %cst_131 = arith.constant 1.000000e+00 : f32
    %413 = vector.broadcast %cst_131 : f32 to vector<8x128xf32>
    %414 = arith.addf %413, %412 : vector<8x128xf32>
    %415 = arith.divf %413, %414 : vector<8x128xf32>
    %c64_i32_132 = arith.constant 64 : i32
    %416 = tpu.dynamic_rotate %415 by %c64_i32_132 dim 1 : vector<8x128xf32>, i32 -> vector<8x128xf32>
    %417 = arith.addf %409, %10 : vector<8x128xf32>
    %418 = arith.mulf %416, %417 : vector<8x128xf32>
    %419 = arith.addf %408, %418 : vector<8x128xf32>
    %420 = math.tanh %419 : vector<8x128xf32>
    %c64_i32_133 = arith.constant 64 : i32
    %421 = tpu.dynamic_rotate %420 by %c64_i32_133 dim 1 : vector<8x128xf32>, i32 -> vector<8x128xf32>
    %422 = vector.extract_strided_slice %421 {offsets = [0, 0], sizes = [8, 32], strides = [1, 1]} : vector<8x128xf32> to vector<8x32xf32>
    %423 = vector.extract_strided_slice %415 {offsets = [0, 32], sizes = [8, 32], strides = [1, 1]} : vector<8x128xf32> to vector<8x32xf32>
    %cst_134 = arith.constant 1.000000e+00 : f32
    %424 = vector.broadcast %cst_134 : f32 to vector<8x32xf32>
    %425 = arith.subf %424, %423 : vector<8x32xf32>
    %426 = arith.mulf %425, %422 : vector<8x32xf32>
    %427 = arith.mulf %423, %385 : vector<8x32xf32>
    %428 = arith.addf %426, %427 : vector<8x32xf32>
    %cst_135 = arith.constant dense<0.000000e+00> : vector<8x128xf32>
    %429 = tpu.matmul %428, %15, %cst_135 {dimension_numbers = #tpu.dot_dimension_numbers<[1], [0], [0], [1], [0, 0, 1, 1], [], []>} : vector<8x32xf32>, vector<32x128xf32>, vector<8x128xf32> -> vector<8x128xf32>
    %430 = arith.addf %429, %18 : vector<8x128xf32>
    %cst_136 = arith.constant dense<0.000000e+00> : vector<8x128xf32>
    %431 = tpu.matmul %407, %11, %cst_136 {dimension_numbers = #tpu.dot_dimension_numbers<[1], [0], [0], [1], [0, 0, 1, 1], [], []>} : vector<8x32xf32>, vector<32x128xf32>, vector<8x128xf32> -> vector<8x128xf32>
    %432 = arith.addf %430, %431 : vector<8x128xf32>
    %433 = arith.negf %432 : vector<8x128xf32>
    %434 = math.exp %433 : vector<8x128xf32>
    %cst_137 = arith.constant 1.000000e+00 : f32
    %435 = vector.broadcast %cst_137 : f32 to vector<8x128xf32>
    %436 = arith.addf %435, %434 : vector<8x128xf32>
    %437 = arith.divf %435, %436 : vector<8x128xf32>
    %c64_i32_138 = arith.constant 64 : i32
    %438 = tpu.dynamic_rotate %437 by %c64_i32_138 dim 1 : vector<8x128xf32>, i32 -> vector<8x128xf32>
    %439 = arith.addf %431, %14 : vector<8x128xf32>
    %440 = arith.mulf %438, %439 : vector<8x128xf32>
    %441 = arith.addf %430, %440 : vector<8x128xf32>
    %442 = math.tanh %441 : vector<8x128xf32>
    %c64_i32_139 = arith.constant 64 : i32
    %443 = tpu.dynamic_rotate %442 by %c64_i32_139 dim 1 : vector<8x128xf32>, i32 -> vector<8x128xf32>
    %444 = vector.extract_strided_slice %443 {offsets = [0, 0], sizes = [8, 32], strides = [1, 1]} : vector<8x128xf32> to vector<8x32xf32>
    %445 = vector.extract_strided_slice %437 {offsets = [0, 32], sizes = [8, 32], strides = [1, 1]} : vector<8x128xf32> to vector<8x32xf32>
    %cst_140 = arith.constant 1.000000e+00 : f32
    %446 = vector.broadcast %cst_140 : f32 to vector<8x32xf32>
    %447 = arith.subf %446, %445 : vector<8x32xf32>
    %448 = arith.mulf %447, %444 : vector<8x32xf32>
    %449 = arith.mulf %445, %407 : vector<8x32xf32>
    %450 = arith.addf %448, %449 : vector<8x32xf32>
    %c80 = arith.constant 80 : index
    %c0_141 = arith.constant 0 : index
    %451 = vector.load %arg14[%c80, %c0_141] : memref<128x128xf32, #tpu.memory_space<vmem>>, vector<8x128xf32>
    %cst_142 = arith.constant dense<0.000000e+00> : vector<8x128xf32>
    %452 = tpu.matmul %428, %7, %cst_142 {dimension_numbers = #tpu.dot_dimension_numbers<[1], [0], [0], [1], [0, 0, 1, 1], [], []>} : vector<8x32xf32>, vector<32x128xf32>, vector<8x128xf32> -> vector<8x128xf32>
    %453 = arith.addf %451, %452 : vector<8x128xf32>
    %454 = arith.negf %453 : vector<8x128xf32>
    %455 = math.exp %454 : vector<8x128xf32>
    %cst_143 = arith.constant 1.000000e+00 : f32
    %456 = vector.broadcast %cst_143 : f32 to vector<8x128xf32>
    %457 = arith.addf %456, %455 : vector<8x128xf32>
    %458 = arith.divf %456, %457 : vector<8x128xf32>
    %c64_i32_144 = arith.constant 64 : i32
    %459 = tpu.dynamic_rotate %458 by %c64_i32_144 dim 1 : vector<8x128xf32>, i32 -> vector<8x128xf32>
    %460 = arith.addf %452, %10 : vector<8x128xf32>
    %461 = arith.mulf %459, %460 : vector<8x128xf32>
    %462 = arith.addf %451, %461 : vector<8x128xf32>
    %463 = math.tanh %462 : vector<8x128xf32>
    %c64_i32_145 = arith.constant 64 : i32
    %464 = tpu.dynamic_rotate %463 by %c64_i32_145 dim 1 : vector<8x128xf32>, i32 -> vector<8x128xf32>
    %465 = vector.extract_strided_slice %464 {offsets = [0, 0], sizes = [8, 32], strides = [1, 1]} : vector<8x128xf32> to vector<8x32xf32>
    %466 = vector.extract_strided_slice %458 {offsets = [0, 32], sizes = [8, 32], strides = [1, 1]} : vector<8x128xf32> to vector<8x32xf32>
    %cst_146 = arith.constant 1.000000e+00 : f32
    %467 = vector.broadcast %cst_146 : f32 to vector<8x32xf32>
    %468 = arith.subf %467, %466 : vector<8x32xf32>
    %469 = arith.mulf %468, %465 : vector<8x32xf32>
    %470 = arith.mulf %466, %428 : vector<8x32xf32>
    %471 = arith.addf %469, %470 : vector<8x32xf32>
    %cst_147 = arith.constant dense<0.000000e+00> : vector<8x128xf32>
    %472 = tpu.matmul %471, %15, %cst_147 {dimension_numbers = #tpu.dot_dimension_numbers<[1], [0], [0], [1], [0, 0, 1, 1], [], []>} : vector<8x32xf32>, vector<32x128xf32>, vector<8x128xf32> -> vector<8x128xf32>
    %473 = arith.addf %472, %18 : vector<8x128xf32>
    %cst_148 = arith.constant dense<0.000000e+00> : vector<8x128xf32>
    %474 = tpu.matmul %450, %11, %cst_148 {dimension_numbers = #tpu.dot_dimension_numbers<[1], [0], [0], [1], [0, 0, 1, 1], [], []>} : vector<8x32xf32>, vector<32x128xf32>, vector<8x128xf32> -> vector<8x128xf32>
    %475 = arith.addf %473, %474 : vector<8x128xf32>
    %476 = arith.negf %475 : vector<8x128xf32>
    %477 = math.exp %476 : vector<8x128xf32>
    %cst_149 = arith.constant 1.000000e+00 : f32
    %478 = vector.broadcast %cst_149 : f32 to vector<8x128xf32>
    %479 = arith.addf %478, %477 : vector<8x128xf32>
    %480 = arith.divf %478, %479 : vector<8x128xf32>
    %c64_i32_150 = arith.constant 64 : i32
    %481 = tpu.dynamic_rotate %480 by %c64_i32_150 dim 1 : vector<8x128xf32>, i32 -> vector<8x128xf32>
    %482 = arith.addf %474, %14 : vector<8x128xf32>
    %483 = arith.mulf %481, %482 : vector<8x128xf32>
    %484 = arith.addf %473, %483 : vector<8x128xf32>
    %485 = math.tanh %484 : vector<8x128xf32>
    %c64_i32_151 = arith.constant 64 : i32
    %486 = tpu.dynamic_rotate %485 by %c64_i32_151 dim 1 : vector<8x128xf32>, i32 -> vector<8x128xf32>
    %487 = vector.extract_strided_slice %486 {offsets = [0, 0], sizes = [8, 32], strides = [1, 1]} : vector<8x128xf32> to vector<8x32xf32>
    %488 = vector.extract_strided_slice %480 {offsets = [0, 32], sizes = [8, 32], strides = [1, 1]} : vector<8x128xf32> to vector<8x32xf32>
    %cst_152 = arith.constant 1.000000e+00 : f32
    %489 = vector.broadcast %cst_152 : f32 to vector<8x32xf32>
    %490 = arith.subf %489, %488 : vector<8x32xf32>
    %491 = arith.mulf %490, %487 : vector<8x32xf32>
    %492 = arith.mulf %488, %450 : vector<8x32xf32>
    %493 = arith.addf %491, %492 : vector<8x32xf32>
    %c88 = arith.constant 88 : index
    %c0_153 = arith.constant 0 : index
    %494 = vector.load %arg14[%c88, %c0_153] : memref<128x128xf32, #tpu.memory_space<vmem>>, vector<8x128xf32>
    %cst_154 = arith.constant dense<0.000000e+00> : vector<8x128xf32>
    %495 = tpu.matmul %471, %7, %cst_154 {dimension_numbers = #tpu.dot_dimension_numbers<[1], [0], [0], [1], [0, 0, 1, 1], [], []>} : vector<8x32xf32>, vector<32x128xf32>, vector<8x128xf32> -> vector<8x128xf32>
    %496 = arith.addf %494, %495 : vector<8x128xf32>
    %497 = arith.negf %496 : vector<8x128xf32>
    %498 = math.exp %497 : vector<8x128xf32>
    %cst_155 = arith.constant 1.000000e+00 : f32
    %499 = vector.broadcast %cst_155 : f32 to vector<8x128xf32>
    %500 = arith.addf %499, %498 : vector<8x128xf32>
    %501 = arith.divf %499, %500 : vector<8x128xf32>
    %c64_i32_156 = arith.constant 64 : i32
    %502 = tpu.dynamic_rotate %501 by %c64_i32_156 dim 1 : vector<8x128xf32>, i32 -> vector<8x128xf32>
    %503 = arith.addf %495, %10 : vector<8x128xf32>
    %504 = arith.mulf %502, %503 : vector<8x128xf32>
    %505 = arith.addf %494, %504 : vector<8x128xf32>
    %506 = math.tanh %505 : vector<8x128xf32>
    %c64_i32_157 = arith.constant 64 : i32
    %507 = tpu.dynamic_rotate %506 by %c64_i32_157 dim 1 : vector<8x128xf32>, i32 -> vector<8x128xf32>
    %508 = vector.extract_strided_slice %507 {offsets = [0, 0], sizes = [8, 32], strides = [1, 1]} : vector<8x128xf32> to vector<8x32xf32>
    %509 = vector.extract_strided_slice %501 {offsets = [0, 32], sizes = [8, 32], strides = [1, 1]} : vector<8x128xf32> to vector<8x32xf32>
    %cst_158 = arith.constant 1.000000e+00 : f32
    %510 = vector.broadcast %cst_158 : f32 to vector<8x32xf32>
    %511 = arith.subf %510, %509 : vector<8x32xf32>
    %512 = arith.mulf %511, %508 : vector<8x32xf32>
    %513 = arith.mulf %509, %471 : vector<8x32xf32>
    %514 = arith.addf %512, %513 : vector<8x32xf32>
    %cst_159 = arith.constant dense<0.000000e+00> : vector<8x128xf32>
    %515 = tpu.matmul %514, %15, %cst_159 {dimension_numbers = #tpu.dot_dimension_numbers<[1], [0], [0], [1], [0, 0, 1, 1], [], []>} : vector<8x32xf32>, vector<32x128xf32>, vector<8x128xf32> -> vector<8x128xf32>
    %516 = arith.addf %515, %18 : vector<8x128xf32>
    %cst_160 = arith.constant dense<0.000000e+00> : vector<8x128xf32>
    %517 = tpu.matmul %493, %11, %cst_160 {dimension_numbers = #tpu.dot_dimension_numbers<[1], [0], [0], [1], [0, 0, 1, 1], [], []>} : vector<8x32xf32>, vector<32x128xf32>, vector<8x128xf32> -> vector<8x128xf32>
    %518 = arith.addf %516, %517 : vector<8x128xf32>
    %519 = arith.negf %518 : vector<8x128xf32>
    %520 = math.exp %519 : vector<8x128xf32>
    %cst_161 = arith.constant 1.000000e+00 : f32
    %521 = vector.broadcast %cst_161 : f32 to vector<8x128xf32>
    %522 = arith.addf %521, %520 : vector<8x128xf32>
    %523 = arith.divf %521, %522 : vector<8x128xf32>
    %c64_i32_162 = arith.constant 64 : i32
    %524 = tpu.dynamic_rotate %523 by %c64_i32_162 dim 1 : vector<8x128xf32>, i32 -> vector<8x128xf32>
    %525 = arith.addf %517, %14 : vector<8x128xf32>
    %526 = arith.mulf %524, %525 : vector<8x128xf32>
    %527 = arith.addf %516, %526 : vector<8x128xf32>
    %528 = math.tanh %527 : vector<8x128xf32>
    %c64_i32_163 = arith.constant 64 : i32
    %529 = tpu.dynamic_rotate %528 by %c64_i32_163 dim 1 : vector<8x128xf32>, i32 -> vector<8x128xf32>
    %530 = vector.extract_strided_slice %529 {offsets = [0, 0], sizes = [8, 32], strides = [1, 1]} : vector<8x128xf32> to vector<8x32xf32>
    %531 = vector.extract_strided_slice %523 {offsets = [0, 32], sizes = [8, 32], strides = [1, 1]} : vector<8x128xf32> to vector<8x32xf32>
    %cst_164 = arith.constant 1.000000e+00 : f32
    %532 = vector.broadcast %cst_164 : f32 to vector<8x32xf32>
    %533 = arith.subf %532, %531 : vector<8x32xf32>
    %534 = arith.mulf %533, %530 : vector<8x32xf32>
    %535 = arith.mulf %531, %493 : vector<8x32xf32>
    %536 = arith.addf %534, %535 : vector<8x32xf32>
    %c96 = arith.constant 96 : index
    %c0_165 = arith.constant 0 : index
    %537 = vector.load %arg14[%c96, %c0_165] : memref<128x128xf32, #tpu.memory_space<vmem>>, vector<8x128xf32>
    %cst_166 = arith.constant dense<0.000000e+00> : vector<8x128xf32>
    %538 = tpu.matmul %514, %7, %cst_166 {dimension_numbers = #tpu.dot_dimension_numbers<[1], [0], [0], [1], [0, 0, 1, 1], [], []>} : vector<8x32xf32>, vector<32x128xf32>, vector<8x128xf32> -> vector<8x128xf32>
    %539 = arith.addf %537, %538 : vector<8x128xf32>
    %540 = arith.negf %539 : vector<8x128xf32>
    %541 = math.exp %540 : vector<8x128xf32>
    %cst_167 = arith.constant 1.000000e+00 : f32
    %542 = vector.broadcast %cst_167 : f32 to vector<8x128xf32>
    %543 = arith.addf %542, %541 : vector<8x128xf32>
    %544 = arith.divf %542, %543 : vector<8x128xf32>
    %c64_i32_168 = arith.constant 64 : i32
    %545 = tpu.dynamic_rotate %544 by %c64_i32_168 dim 1 : vector<8x128xf32>, i32 -> vector<8x128xf32>
    %546 = arith.addf %538, %10 : vector<8x128xf32>
    %547 = arith.mulf %545, %546 : vector<8x128xf32>
    %548 = arith.addf %537, %547 : vector<8x128xf32>
    %549 = math.tanh %548 : vector<8x128xf32>
    %c64_i32_169 = arith.constant 64 : i32
    %550 = tpu.dynamic_rotate %549 by %c64_i32_169 dim 1 : vector<8x128xf32>, i32 -> vector<8x128xf32>
    %551 = vector.extract_strided_slice %550 {offsets = [0, 0], sizes = [8, 32], strides = [1, 1]} : vector<8x128xf32> to vector<8x32xf32>
    %552 = vector.extract_strided_slice %544 {offsets = [0, 32], sizes = [8, 32], strides = [1, 1]} : vector<8x128xf32> to vector<8x32xf32>
    %cst_170 = arith.constant 1.000000e+00 : f32
    %553 = vector.broadcast %cst_170 : f32 to vector<8x32xf32>
    %554 = arith.subf %553, %552 : vector<8x32xf32>
    %555 = arith.mulf %554, %551 : vector<8x32xf32>
    %556 = arith.mulf %552, %514 : vector<8x32xf32>
    %557 = arith.addf %555, %556 : vector<8x32xf32>
    %cst_171 = arith.constant dense<0.000000e+00> : vector<8x128xf32>
    %558 = tpu.matmul %557, %15, %cst_171 {dimension_numbers = #tpu.dot_dimension_numbers<[1], [0], [0], [1], [0, 0, 1, 1], [], []>} : vector<8x32xf32>, vector<32x128xf32>, vector<8x128xf32> -> vector<8x128xf32>
    %559 = arith.addf %558, %18 : vector<8x128xf32>
    %cst_172 = arith.constant dense<0.000000e+00> : vector<8x128xf32>
    %560 = tpu.matmul %536, %11, %cst_172 {dimension_numbers = #tpu.dot_dimension_numbers<[1], [0], [0], [1], [0, 0, 1, 1], [], []>} : vector<8x32xf32>, vector<32x128xf32>, vector<8x128xf32> -> vector<8x128xf32>
    %561 = arith.addf %559, %560 : vector<8x128xf32>
    %562 = arith.negf %561 : vector<8x128xf32>
    %563 = math.exp %562 : vector<8x128xf32>
    %cst_173 = arith.constant 1.000000e+00 : f32
    %564 = vector.broadcast %cst_173 : f32 to vector<8x128xf32>
    %565 = arith.addf %564, %563 : vector<8x128xf32>
    %566 = arith.divf %564, %565 : vector<8x128xf32>
    %c64_i32_174 = arith.constant 64 : i32
    %567 = tpu.dynamic_rotate %566 by %c64_i32_174 dim 1 : vector<8x128xf32>, i32 -> vector<8x128xf32>
    %568 = arith.addf %560, %14 : vector<8x128xf32>
    %569 = arith.mulf %567, %568 : vector<8x128xf32>
    %570 = arith.addf %559, %569 : vector<8x128xf32>
    %571 = math.tanh %570 : vector<8x128xf32>
    %c64_i32_175 = arith.constant 64 : i32
    %572 = tpu.dynamic_rotate %571 by %c64_i32_175 dim 1 : vector<8x128xf32>, i32 -> vector<8x128xf32>
    %573 = vector.extract_strided_slice %572 {offsets = [0, 0], sizes = [8, 32], strides = [1, 1]} : vector<8x128xf32> to vector<8x32xf32>
    %574 = vector.extract_strided_slice %566 {offsets = [0, 32], sizes = [8, 32], strides = [1, 1]} : vector<8x128xf32> to vector<8x32xf32>
    %cst_176 = arith.constant 1.000000e+00 : f32
    %575 = vector.broadcast %cst_176 : f32 to vector<8x32xf32>
    %576 = arith.subf %575, %574 : vector<8x32xf32>
    %577 = arith.mulf %576, %573 : vector<8x32xf32>
    %578 = arith.mulf %574, %536 : vector<8x32xf32>
    %579 = arith.addf %577, %578 : vector<8x32xf32>
    %c104 = arith.constant 104 : index
    %c0_177 = arith.constant 0 : index
    %580 = vector.load %arg14[%c104, %c0_177] : memref<128x128xf32, #tpu.memory_space<vmem>>, vector<8x128xf32>
    %cst_178 = arith.constant dense<0.000000e+00> : vector<8x128xf32>
    %581 = tpu.matmul %557, %7, %cst_178 {dimension_numbers = #tpu.dot_dimension_numbers<[1], [0], [0], [1], [0, 0, 1, 1], [], []>} : vector<8x32xf32>, vector<32x128xf32>, vector<8x128xf32> -> vector<8x128xf32>
    %582 = arith.addf %580, %581 : vector<8x128xf32>
    %583 = arith.negf %582 : vector<8x128xf32>
    %584 = math.exp %583 : vector<8x128xf32>
    %cst_179 = arith.constant 1.000000e+00 : f32
    %585 = vector.broadcast %cst_179 : f32 to vector<8x128xf32>
    %586 = arith.addf %585, %584 : vector<8x128xf32>
    %587 = arith.divf %585, %586 : vector<8x128xf32>
    %c64_i32_180 = arith.constant 64 : i32
    %588 = tpu.dynamic_rotate %587 by %c64_i32_180 dim 1 : vector<8x128xf32>, i32 -> vector<8x128xf32>
    %589 = arith.addf %581, %10 : vector<8x128xf32>
    %590 = arith.mulf %588, %589 : vector<8x128xf32>
    %591 = arith.addf %580, %590 : vector<8x128xf32>
    %592 = math.tanh %591 : vector<8x128xf32>
    %c64_i32_181 = arith.constant 64 : i32
    %593 = tpu.dynamic_rotate %592 by %c64_i32_181 dim 1 : vector<8x128xf32>, i32 -> vector<8x128xf32>
    %594 = vector.extract_strided_slice %593 {offsets = [0, 0], sizes = [8, 32], strides = [1, 1]} : vector<8x128xf32> to vector<8x32xf32>
    %595 = vector.extract_strided_slice %587 {offsets = [0, 32], sizes = [8, 32], strides = [1, 1]} : vector<8x128xf32> to vector<8x32xf32>
    %cst_182 = arith.constant 1.000000e+00 : f32
    %596 = vector.broadcast %cst_182 : f32 to vector<8x32xf32>
    %597 = arith.subf %596, %595 : vector<8x32xf32>
    %598 = arith.mulf %597, %594 : vector<8x32xf32>
    %599 = arith.mulf %595, %557 : vector<8x32xf32>
    %600 = arith.addf %598, %599 : vector<8x32xf32>
    %cst_183 = arith.constant dense<0.000000e+00> : vector<8x128xf32>
    %601 = tpu.matmul %600, %15, %cst_183 {dimension_numbers = #tpu.dot_dimension_numbers<[1], [0], [0], [1], [0, 0, 1, 1], [], []>} : vector<8x32xf32>, vector<32x128xf32>, vector<8x128xf32> -> vector<8x128xf32>
    %602 = arith.addf %601, %18 : vector<8x128xf32>
    %cst_184 = arith.constant dense<0.000000e+00> : vector<8x128xf32>
    %603 = tpu.matmul %579, %11, %cst_184 {dimension_numbers = #tpu.dot_dimension_numbers<[1], [0], [0], [1], [0, 0, 1, 1], [], []>} : vector<8x32xf32>, vector<32x128xf32>, vector<8x128xf32> -> vector<8x128xf32>
    %604 = arith.addf %602, %603 : vector<8x128xf32>
    %605 = arith.negf %604 : vector<8x128xf32>
    %606 = math.exp %605 : vector<8x128xf32>
    %cst_185 = arith.constant 1.000000e+00 : f32
    %607 = vector.broadcast %cst_185 : f32 to vector<8x128xf32>
    %608 = arith.addf %607, %606 : vector<8x128xf32>
    %609 = arith.divf %607, %608 : vector<8x128xf32>
    %c64_i32_186 = arith.constant 64 : i32
    %610 = tpu.dynamic_rotate %609 by %c64_i32_186 dim 1 : vector<8x128xf32>, i32 -> vector<8x128xf32>
    %611 = arith.addf %603, %14 : vector<8x128xf32>
    %612 = arith.mulf %610, %611 : vector<8x128xf32>
    %613 = arith.addf %602, %612 : vector<8x128xf32>
    %614 = math.tanh %613 : vector<8x128xf32>
    %c64_i32_187 = arith.constant 64 : i32
    %615 = tpu.dynamic_rotate %614 by %c64_i32_187 dim 1 : vector<8x128xf32>, i32 -> vector<8x128xf32>
    %616 = vector.extract_strided_slice %615 {offsets = [0, 0], sizes = [8, 32], strides = [1, 1]} : vector<8x128xf32> to vector<8x32xf32>
    %617 = vector.extract_strided_slice %609 {offsets = [0, 32], sizes = [8, 32], strides = [1, 1]} : vector<8x128xf32> to vector<8x32xf32>
    %cst_188 = arith.constant 1.000000e+00 : f32
    %618 = vector.broadcast %cst_188 : f32 to vector<8x32xf32>
    %619 = arith.subf %618, %617 : vector<8x32xf32>
    %620 = arith.mulf %619, %616 : vector<8x32xf32>
    %621 = arith.mulf %617, %579 : vector<8x32xf32>
    %622 = arith.addf %620, %621 : vector<8x32xf32>
    %c112 = arith.constant 112 : index
    %c0_189 = arith.constant 0 : index
    %623 = vector.load %arg14[%c112, %c0_189] : memref<128x128xf32, #tpu.memory_space<vmem>>, vector<8x128xf32>
    %cst_190 = arith.constant dense<0.000000e+00> : vector<8x128xf32>
    %624 = tpu.matmul %600, %7, %cst_190 {dimension_numbers = #tpu.dot_dimension_numbers<[1], [0], [0], [1], [0, 0, 1, 1], [], []>} : vector<8x32xf32>, vector<32x128xf32>, vector<8x128xf32> -> vector<8x128xf32>
    %625 = arith.addf %623, %624 : vector<8x128xf32>
    %626 = arith.negf %625 : vector<8x128xf32>
    %627 = math.exp %626 : vector<8x128xf32>
    %cst_191 = arith.constant 1.000000e+00 : f32
    %628 = vector.broadcast %cst_191 : f32 to vector<8x128xf32>
    %629 = arith.addf %628, %627 : vector<8x128xf32>
    %630 = arith.divf %628, %629 : vector<8x128xf32>
    %c64_i32_192 = arith.constant 64 : i32
    %631 = tpu.dynamic_rotate %630 by %c64_i32_192 dim 1 : vector<8x128xf32>, i32 -> vector<8x128xf32>
    %632 = arith.addf %624, %10 : vector<8x128xf32>
    %633 = arith.mulf %631, %632 : vector<8x128xf32>
    %634 = arith.addf %623, %633 : vector<8x128xf32>
    %635 = math.tanh %634 : vector<8x128xf32>
    %c64_i32_193 = arith.constant 64 : i32
    %636 = tpu.dynamic_rotate %635 by %c64_i32_193 dim 1 : vector<8x128xf32>, i32 -> vector<8x128xf32>
    %637 = vector.extract_strided_slice %636 {offsets = [0, 0], sizes = [8, 32], strides = [1, 1]} : vector<8x128xf32> to vector<8x32xf32>
    %638 = vector.extract_strided_slice %630 {offsets = [0, 32], sizes = [8, 32], strides = [1, 1]} : vector<8x128xf32> to vector<8x32xf32>
    %cst_194 = arith.constant 1.000000e+00 : f32
    %639 = vector.broadcast %cst_194 : f32 to vector<8x32xf32>
    %640 = arith.subf %639, %638 : vector<8x32xf32>
    %641 = arith.mulf %640, %637 : vector<8x32xf32>
    %642 = arith.mulf %638, %600 : vector<8x32xf32>
    %643 = arith.addf %641, %642 : vector<8x32xf32>
    %cst_195 = arith.constant dense<0.000000e+00> : vector<8x128xf32>
    %644 = tpu.matmul %643, %15, %cst_195 {dimension_numbers = #tpu.dot_dimension_numbers<[1], [0], [0], [1], [0, 0, 1, 1], [], []>} : vector<8x32xf32>, vector<32x128xf32>, vector<8x128xf32> -> vector<8x128xf32>
    %645 = arith.addf %644, %18 : vector<8x128xf32>
    %cst_196 = arith.constant dense<0.000000e+00> : vector<8x128xf32>
    %646 = tpu.matmul %622, %11, %cst_196 {dimension_numbers = #tpu.dot_dimension_numbers<[1], [0], [0], [1], [0, 0, 1, 1], [], []>} : vector<8x32xf32>, vector<32x128xf32>, vector<8x128xf32> -> vector<8x128xf32>
    %647 = arith.addf %645, %646 : vector<8x128xf32>
    %648 = arith.negf %647 : vector<8x128xf32>
    %649 = math.exp %648 : vector<8x128xf32>
    %cst_197 = arith.constant 1.000000e+00 : f32
    %650 = vector.broadcast %cst_197 : f32 to vector<8x128xf32>
    %651 = arith.addf %650, %649 : vector<8x128xf32>
    %652 = arith.divf %650, %651 : vector<8x128xf32>
    %c64_i32_198 = arith.constant 64 : i32
    %653 = tpu.dynamic_rotate %652 by %c64_i32_198 dim 1 : vector<8x128xf32>, i32 -> vector<8x128xf32>
    %654 = arith.addf %646, %14 : vector<8x128xf32>
    %655 = arith.mulf %653, %654 : vector<8x128xf32>
    %656 = arith.addf %645, %655 : vector<8x128xf32>
    %657 = math.tanh %656 : vector<8x128xf32>
    %c64_i32_199 = arith.constant 64 : i32
    %658 = tpu.dynamic_rotate %657 by %c64_i32_199 dim 1 : vector<8x128xf32>, i32 -> vector<8x128xf32>
    %659 = vector.extract_strided_slice %658 {offsets = [0, 0], sizes = [8, 32], strides = [1, 1]} : vector<8x128xf32> to vector<8x32xf32>
    %660 = vector.extract_strided_slice %652 {offsets = [0, 32], sizes = [8, 32], strides = [1, 1]} : vector<8x128xf32> to vector<8x32xf32>
    %cst_200 = arith.constant 1.000000e+00 : f32
    %661 = vector.broadcast %cst_200 : f32 to vector<8x32xf32>
    %662 = arith.subf %661, %660 : vector<8x32xf32>
    %663 = arith.mulf %662, %659 : vector<8x32xf32>
    %664 = arith.mulf %660, %622 : vector<8x32xf32>
    %665 = arith.addf %663, %664 : vector<8x32xf32>
    %c120 = arith.constant 120 : index
    %c0_201 = arith.constant 0 : index
    %666 = vector.load %arg14[%c120, %c0_201] : memref<128x128xf32, #tpu.memory_space<vmem>>, vector<8x128xf32>
    %cst_202 = arith.constant dense<0.000000e+00> : vector<8x128xf32>
    %667 = tpu.matmul %643, %7, %cst_202 {dimension_numbers = #tpu.dot_dimension_numbers<[1], [0], [0], [1], [0, 0, 1, 1], [], []>} : vector<8x32xf32>, vector<32x128xf32>, vector<8x128xf32> -> vector<8x128xf32>
    %668 = arith.addf %666, %667 : vector<8x128xf32>
    %669 = arith.negf %668 : vector<8x128xf32>
    %670 = math.exp %669 : vector<8x128xf32>
    %cst_203 = arith.constant 1.000000e+00 : f32
    %671 = vector.broadcast %cst_203 : f32 to vector<8x128xf32>
    %672 = arith.addf %671, %670 : vector<8x128xf32>
    %673 = arith.divf %671, %672 : vector<8x128xf32>
    %c64_i32_204 = arith.constant 64 : i32
    %674 = tpu.dynamic_rotate %673 by %c64_i32_204 dim 1 : vector<8x128xf32>, i32 -> vector<8x128xf32>
    %675 = arith.addf %667, %10 : vector<8x128xf32>
    %676 = arith.mulf %674, %675 : vector<8x128xf32>
    %677 = arith.addf %666, %676 : vector<8x128xf32>
    %678 = math.tanh %677 : vector<8x128xf32>
    %c64_i32_205 = arith.constant 64 : i32
    %679 = tpu.dynamic_rotate %678 by %c64_i32_205 dim 1 : vector<8x128xf32>, i32 -> vector<8x128xf32>
    %680 = vector.extract_strided_slice %679 {offsets = [0, 0], sizes = [8, 32], strides = [1, 1]} : vector<8x128xf32> to vector<8x32xf32>
    %681 = vector.extract_strided_slice %673 {offsets = [0, 32], sizes = [8, 32], strides = [1, 1]} : vector<8x128xf32> to vector<8x32xf32>
    %cst_206 = arith.constant 1.000000e+00 : f32
    %682 = vector.broadcast %cst_206 : f32 to vector<8x32xf32>
    %683 = arith.subf %682, %681 : vector<8x32xf32>
    %684 = arith.mulf %683, %680 : vector<8x32xf32>
    %685 = arith.mulf %681, %643 : vector<8x32xf32>
    %686 = arith.addf %684, %685 : vector<8x32xf32>
    %cst_207 = arith.constant dense<0.000000e+00> : vector<8x128xf32>
    %687 = tpu.matmul %686, %15, %cst_207 {dimension_numbers = #tpu.dot_dimension_numbers<[1], [0], [0], [1], [0, 0, 1, 1], [], []>} : vector<8x32xf32>, vector<32x128xf32>, vector<8x128xf32> -> vector<8x128xf32>
    %688 = arith.addf %687, %18 : vector<8x128xf32>
    %cst_208 = arith.constant dense<0.000000e+00> : vector<8x128xf32>
    %689 = tpu.matmul %665, %11, %cst_208 {dimension_numbers = #tpu.dot_dimension_numbers<[1], [0], [0], [1], [0, 0, 1, 1], [], []>} : vector<8x32xf32>, vector<32x128xf32>, vector<8x128xf32> -> vector<8x128xf32>
    %690 = arith.addf %688, %689 : vector<8x128xf32>
    %691 = arith.negf %690 : vector<8x128xf32>
    %692 = math.exp %691 : vector<8x128xf32>
    %cst_209 = arith.constant 1.000000e+00 : f32
    %693 = vector.broadcast %cst_209 : f32 to vector<8x128xf32>
    %694 = arith.addf %693, %692 : vector<8x128xf32>
    %695 = arith.divf %693, %694 : vector<8x128xf32>
    %c64_i32_210 = arith.constant 64 : i32
    %696 = tpu.dynamic_rotate %695 by %c64_i32_210 dim 1 : vector<8x128xf32>, i32 -> vector<8x128xf32>
    %697 = arith.addf %689, %14 : vector<8x128xf32>
    %698 = arith.mulf %696, %697 : vector<8x128xf32>
    %699 = arith.addf %688, %698 : vector<8x128xf32>
    %700 = math.tanh %699 : vector<8x128xf32>
    %c64_i32_211 = arith.constant 64 : i32
    %701 = tpu.dynamic_rotate %700 by %c64_i32_211 dim 1 : vector<8x128xf32>, i32 -> vector<8x128xf32>
    %702 = vector.extract_strided_slice %701 {offsets = [0, 0], sizes = [8, 32], strides = [1, 1]} : vector<8x128xf32> to vector<8x32xf32>
    %703 = vector.extract_strided_slice %695 {offsets = [0, 32], sizes = [8, 32], strides = [1, 1]} : vector<8x128xf32> to vector<8x32xf32>
    %cst_212 = arith.constant 1.000000e+00 : f32
    %704 = vector.broadcast %cst_212 : f32 to vector<8x32xf32>
    %705 = arith.subf %704, %703 : vector<8x32xf32>
    %706 = arith.mulf %705, %702 : vector<8x32xf32>
    %707 = arith.mulf %703, %665 : vector<8x32xf32>
    %708 = arith.addf %706, %707 : vector<8x32xf32>
    %c0_213 = arith.constant 0 : index
    %c0_214 = arith.constant 0 : index
    %709 = vector.load %arg9[%c0_213, %c0_214] : memref<32x32xf32, #tpu.memory_space<vmem>>, vector<32x32xf32>
    %cst_215 = arith.constant dense<0.000000e+00> : vector<8x32xf32>
    %710 = tpu.matmul %708, %709, %cst_215 {dimension_numbers = #tpu.dot_dimension_numbers<[1], [0], [0], [1], [0, 0, 1, 1], [], []>} : vector<8x32xf32>, vector<32x32xf32>, vector<8x32xf32> -> vector<8x32xf32>
    %c0_216 = arith.constant 0 : index
    %c0_217 = arith.constant 0 : index
    %711 = vector.load %arg10[%c0_216, %c0_217] : memref<1x32xf32, #tpu.memory_space<vmem>>, vector<1x32xf32>
    %712 = vector.broadcast %711 : vector<1x32xf32> to vector<8x32xf32>
    %713 = arith.addf %710, %712 : vector<8x32xf32>
    %cst_218 = arith.constant 0.000000e+00 : f32
    %714 = vector.broadcast %cst_218 : f32 to vector<8x32xf32>
    %715 = arith.maximumf %713, %714 : vector<8x32xf32>
    %c0_219 = arith.constant 0 : index
    %c0_220 = arith.constant 0 : index
    %716 = vector.load %arg11[%c0_219, %c0_220] : memref<32x7xf32, #tpu.memory_space<vmem>>, vector<32x7xf32>
    %cst_221 = arith.constant dense<0.000000e+00> : vector<8x7xf32>
    %717 = tpu.matmul %715, %716, %cst_221 {dimension_numbers = #tpu.dot_dimension_numbers<[1], [0], [0], [1], [0, 0, 1, 1], [], []>} : vector<8x32xf32>, vector<32x7xf32>, vector<8x7xf32> -> vector<8x7xf32>
    %c0_222 = arith.constant 0 : index
    %c0_223 = arith.constant 0 : index
    %718 = vector.load %arg12[%c0_222, %c0_223] : memref<1x7xf32, #tpu.memory_space<vmem>>, vector<1x7xf32>
    %719 = vector.broadcast %718 : vector<1x7xf32> to vector<8x7xf32>
    %720 = arith.addf %717, %719 : vector<8x7xf32>
    %c0_224 = arith.constant 0 : index
    %c0_225 = arith.constant 0 : index
    %721 = vector.load %arg13[%c0_224, %c0_225] : memref<8x7xf32, #tpu.memory_space<vmem>>, vector<8x7xf32>
    tpu.vector_store %arg13[%c0_224, %c0_225], %720 {strides = array<i32>} : memref<8x7xf32, #tpu.memory_space<vmem>>, vector<8x7xf32>,
    return
  }
}

</mosaic_0001>

<llo_original>
// kernel: tpu_custom_call.1
$region0: #{tpu_custom_call.1}
  #allocation0 [shape = 'u32[]', space=smem, size = 0x4, offset = 0x4, fixed_abs, tag = 'smem constant byte address 0x4 - core index']
  #allocation1 [shape = 'u32[72,128]{1,0:T(1,128)}', space=vmem, size = 0x9000, scoped, tag = 'internal scratch']
  #allocation2 [shape = 'f32[128,128]{1,0:T(8,128)}', space=vmem, size = 0x10000, scoped, tag = 'scratch operand']
  %s0 = inlined_call_operand.vmem [shape: f32[128,64], index: 0, kind: input, shape index: {}]
  %s1 = inlined_call_operand.vmem [shape: f32[64,128], index: 1, kind: input, shape index: {}]
  %s2 = inlined_call_operand.vmem [shape: f32[32,128], index: 2, kind: input, shape index: {}]
  %s3 = inlined_call_operand.vmem [shape: f32[1,128], index: 3, kind: input, shape index: {}]
  %s4 = inlined_call_operand.vmem [shape: f32[1,128], index: 4, kind: input, shape index: {}]
  %s5 = inlined_call_operand.vmem [shape: f32[32,128], index: 5, kind: input, shape index: {}]
  %s6 = inlined_call_operand.vmem [shape: f32[32,128], index: 6, kind: input, shape index: {}]
  %s7 = inlined_call_operand.vmem [shape: f32[1,128], index: 7, kind: input, shape index: {}]
  %s8 = inlined_call_operand.vmem [shape: f32[1,128], index: 8, kind: input, shape index: {}]
  %s9 = inlined_call_operand.vmem [shape: f32[32,32], index: 9, kind: input, shape index: {}]
  %s10 = inlined_call_operand.vmem [shape: f32[1,32], index: 10, kind: input, shape index: {}]
  %s11 = inlined_call_operand.vmem [shape: f32[32,7], index: 11, kind: input, shape index: {}]
  %s12 = inlined_call_operand.vmem [shape: f32[1,7], index: 12, kind: input, shape index: {}]
  %s13 = inlined_call_operand.hbm [shape: f32[8,7], index: 13, kind: output, shape index: {}]
  %s14 = sld [smem:[#allocation0]]
  $region62: #{tpu_custom_call.1} parent=0
    _
  %s16 = ssub.s32 1, %s14
  %s17 = scalar_select 0, %s16, %s14
  $region1: #{tpu_custom_call.1} parent=0
    #allocation3 [shape = 'u8[4096]{0}', space=vmem, size = 0x1000, scoped, tag = 'output window, operand 0, single buffered']
    #allocation4 [shape = 's32[1]{0}', space=sflag, size = 0x4, scoped, tag = 'scoped memory for tpu_custom_call.1']
    %18 = vsyncpa [#allocation4], 0
    // Predicated region
    $region2: #{tpu_custom_call.1} parent=1 // pred_check
      _
    $region3: #{tpu_custom_call.1} parent=1 // pred_check_branch
      %20 = sbr.rel (0) target = $region5
    $region4: #{tpu_custom_call.1} parent=1 // pred_region
      _
    $region5: #{tpu_custom_call.1} parent=1 // pred_fallthru
      _
    // Predicated region
    $region6: #{tpu_custom_call.1} parent=1 // pred_check
      _
    $region7: #{tpu_custom_call.1} parent=1 // pred_check_branch
      %22 = sbr.rel (0) target = $region9
    $region8: #{tpu_custom_call.1} parent=1 // pred_region
      _
    $region9: #{tpu_custom_call.1} parent=1 // pred_fallthru
      _
    // Predicated region
    $region10: #{tpu_custom_call.1} parent=1 // pred_check
      _
    $region11: #{tpu_custom_call.1} parent=1 // pred_check_branch
      %24 = sbr.rel (0) target = $region13
    $region12: #{tpu_custom_call.1} parent=1 // pred_region
      _
    $region13: #{tpu_custom_call.1} parent=1 // pred_fallthru
      _
    // Predicated region
    $region14: #{tpu_custom_call.1} parent=1 // pred_check
      _
    $region15: #{tpu_custom_call.1} parent=1 // pred_check_branch
      %26 = sbr.rel (0) target = $region17
    $region16: #{tpu_custom_call.1} parent=1 // pred_region
      _
    $region17: #{tpu_custom_call.1} parent=1 // pred_fallthru
      _
    // Predicated region
    $region18: #{tpu_custom_call.1} parent=1 // pred_check
      _
    $region19: #{tpu_custom_call.1} parent=1 // pred_check_branch
      %28 = sbr.rel (0) target = $region21
    $region20: #{tpu_custom_call.1} parent=1 // pred_region
      _
    $region21: #{tpu_custom_call.1} parent=1 // pred_fallthru
      _
    // Predicated region
    $region22: #{tpu_custom_call.1} parent=1 // pred_check
      _
    $region23: #{tpu_custom_call.1} parent=1 // pred_check_branch
      %30 = sbr.rel (0) target = $region25
    $region24: #{tpu_custom_call.1} parent=1 // pred_region
      _
    $region25: #{tpu_custom_call.1} parent=1 // pred_fallthru
      _
    // Predicated region
    $region26: #{tpu_custom_call.1} parent=1 // pred_check
      _
    $region27: #{tpu_custom_call.1} parent=1 // pred_check_branch
      %32 = sbr.rel (0) target = $region29
    $region28: #{tpu_custom_call.1} parent=1 // pred_region
      _
    $region29: #{tpu_custom_call.1} parent=1 // pred_fallthru
      _
    // Predicated region
    $region30: #{tpu_custom_call.1} parent=1 // pred_check
      _
    $region31: #{tpu_custom_call.1} parent=1 // pred_check_branch
      %34 = sbr.rel (0) target = $region33
    $region32: #{tpu_custom_call.1} parent=1 // pred_region
      _
    $region33: #{tpu_custom_call.1} parent=1 // pred_fallthru
      _
    // Predicated region
    $region34: #{tpu_custom_call.1} parent=1 // pred_check
      _
    $region35: #{tpu_custom_call.1} parent=1 // pred_check_branch
      %36 = sbr.rel (0) target = $region37
    $region36: #{tpu_custom_call.1} parent=1 // pred_region
      _
    $region37: #{tpu_custom_call.1} parent=1 // pred_fallthru
      _
    // Predicated region
    $region38: #{tpu_custom_call.1} parent=1 // pred_check
      _
    $region39: #{tpu_custom_call.1} parent=1 // pred_check_branch
      %38 = sbr.rel (0) target = $region41
    $region40: #{tpu_custom_call.1} parent=1 // pred_region
      _
    $region41: #{tpu_custom_call.1} parent=1 // pred_fallthru
      _
    // Predicated region
    $region42: #{tpu_custom_call.1} parent=1 // pred_check
      _
    $region43: #{tpu_custom_call.1} parent=1 // pred_check_branch
      %40 = sbr.rel (0) target = $region45
    $region44: #{tpu_custom_call.1} parent=1 // pred_region
      _
    $region45: #{tpu_custom_call.1} parent=1 // pred_fallthru
      _
    // Predicated region
    $region46: #{tpu_custom_call.1} parent=1 // pred_check
      _
    $region47: #{tpu_custom_call.1} parent=1 // pred_check_branch
      %42 = sbr.rel (0) target = $region49
    $region48: #{tpu_custom_call.1} parent=1 // pred_region
      _
    $region49: #{tpu_custom_call.1} parent=1 // pred_fallthru
      _
    // Predicated region
    $region50: #{tpu_custom_call.1} parent=1 // pred_check
      _
    $region51: #{tpu_custom_call.1} parent=1 // pred_check_branch
      %44 = sbr.rel (0) target = $region53
    $region52: #{tpu_custom_call.1} parent=1 // pred_region
      _
    $region53: #{tpu_custom_call.1} parent=1 // pred_fallthru
      _
    %v45 = vld [vmem:[%s0] sm:$0xff]
    %v46 = vld [vmem:[%s0 + $0x8] sm:$0xff]
    %v47 = vld [vmem:[%s0 + $0x10] sm:$0xff]
    %v48 = vld [vmem:[%s0 + $0x18] sm:$0xff]
    %v49 = vld [vmem:[%s0 + $0x20] sm:$0xff]
    %v50 = vld [vmem:[%s0 + $0x28] sm:$0xff]
    %v51 = vld [vmem:[%s0 + $0x30] sm:$0xff]
    %v52 = vld [vmem:[%s0 + $0x38] sm:$0xff]
    %v53 = vld [vmem:[%s0 + $0x40] sm:$0xff]
    %v54 = vld [vmem:[%s0 + $0x48] sm:$0xff]
    %v55 = vld [vmem:[%s0 + $0x50] sm:$0xff]
    %v56 = vld [vmem:[%s0 + $0x58] sm:$0xff]
    %v57 = vld [vmem:[%s0 + $0x60] sm:$0xff]
    %v58 = vld [vmem:[%s0 + $0x68] sm:$0xff]
    %v59 = vld [vmem:[%s0 + $0x70] sm:$0xff]
    %v60 = vld [vmem:[%s0 + $0x78] sm:$0xff]
    %v61 = vld [vmem:[%s1] sm:$0xff]
    %v62 = vld [vmem:[%s1 + $0x8] sm:$0xff]
    %v63 = vld [vmem:[%s1 + $0x10] sm:$0xff]
    %v64 = vld [vmem:[%s1 + $0x18] sm:$0xff]
    %v65 = vld [vmem:[%s1 + $0x20] sm:$0xff]
    %v66 = vld [vmem:[%s1 + $0x28] sm:$0xff]
    %v67 = vld [vmem:[%s1 + $0x30] sm:$0xff]
    %v68 = vld [vmem:[%s1 + $0x38] sm:$0xff]
    %v69 = vld [vmem:[%s3] sm:$0x1]
    %v71 = vperm.slane %v69, 0
    %vm73 = vcmask 523264
    %v75 = vsel %vm73, %v45, 0
    %v78 = vsel %vm73, %v46, 0
    %v81 = vsel %vm73, %v47, 0
    %v84 = vsel %vm73, %v48, 0
    %v87 = vsel %vm73, %v49, 0
    %v90 = vsel %vm73, %v50, 0
    %v93 = vsel %vm73, %v51, 0
    %v96 = vsel %vm73, %v52, 0
    %v99 = vsel %vm73, %v53, 0
    %v102 = vsel %vm73, %v54, 0
    %v105 = vsel %vm73, %v55, 0
    %v108 = vsel %vm73, %v56, 0
    %v111 = vsel %vm73, %v57, 0
    %v114 = vsel %vm73, %v58, 0
    %v117 = vsel %vm73, %v59, 0
    %v120 = vsel %vm73, %v60, 0
    %122 = vmatpush.msra.mxu0 0.0
    %123 = vmatpush.msra.mxu0 0.0
    %124 = vmatpush.msra.mxu0 0.0
    %125 = vmatpush.msra.mxu0 0.0
    %126 = vmatpush.msra.mxu0 0.0
    %127 = vmatpush.msra.mxu0 0.0
    %128 = vmatpush.msra.mxu0 0.0
    %129 = vmatpush.msra.mxu0 0.0
    %130 = vmatpush.msra.mxu0 %v68
    %131 = vmatpush.msra.mxu0 %v67
    %132 = vmatpush.msra.mxu0 %v66
    %133 = vmatpush.msra.mxu0 %v65
    %134 = vmatpush.msra.mxu0 %v64
    %135 = vmatpush.msra.mxu0 %v63
    %136 = vmatpush.msra.mxu0 %v62
    %137 = vmatpush.msra.mxu0 %v61
    %138 = vmatmul.f32.gmra.mxu0 %v75
    %v139 = vpop.f32.mrf.mxu0
    %v140 = vadd.f32 %v71, %v139
    %141 = vmatmul.f32.gmra.mxu0 %v78
    %v142 = vpop.f32.mrf.mxu0
    %v143 = vadd.f32 %v71, %v142
    %144 = vmatmul.f32.gmra.mxu0 %v81
    %v145 = vpop.f32.mrf.mxu0
    %v146 = vadd.f32 %v71, %v145
    %147 = vmatmul.f32.gmra.mxu0 %v84
    %v148 = vpop.f32.mrf.mxu0
    %v149 = vadd.f32 %v71, %v148
    %150 = vmatmul.f32.gmra.mxu0 %v87
    %v151 = vpop.f32.mrf.mxu0
    %v152 = vadd.f32 %v71, %v151
    %153 = vmatmul.f32.gmra.mxu0 %v90
    %v154 = vpop.f32.mrf.mxu0
    %v155 = vadd.f32 %v71, %v154
    %156 = vmatmul.f32.gmra.mxu0 %v93
    %v157 = vpop.f32.mrf.mxu0
    %v158 = vadd.f32 %v71, %v157
    %159 = vmatmul.f32.gmra.mxu0 %v96
    %v160 = vpop.f32.mrf.mxu0
    %v161 = vadd.f32 %v71, %v160
    %162 = vmatmul.f32.gmra.mxu0 %v99
    %v163 = vpop.f32.mrf.mxu0
    %v164 = vadd.f32 %v71, %v163
    %165 = vmatmul.f32.gmra.mxu0 %v102
    %v166 = vpop.f32.mrf.mxu0
    %v167 = vadd.f32 %v71, %v166
    %168 = vmatmul.f32.gmra.mxu0 %v105
    %v169 = vpop.f32.mrf.mxu0
    %v170 = vadd.f32 %v71, %v169
    %171 = vmatmul.f32.gmra.mxu0 %v108
    %v172 = vpop.f32.mrf.mxu0
    %v173 = vadd.f32 %v71, %v172
    %174 = vmatmul.f32.gmra.mxu0 %v111
    %v175 = vpop.f32.mrf.mxu0
    %v176 = vadd.f32 %v71, %v175
    %177 = vmatmul.f32.gmra.mxu0 %v114
    %v178 = vpop.f32.mrf.mxu0
    %v179 = vadd.f32 %v71, %v178
    %180 = vmatmul.f32.gmra.mxu0 %v117
    %v181 = vpop.f32.mrf.mxu0
    %v182 = vadd.f32 %v71, %v181
    %183 = vmatmul.f32.gmra.mxu0 %v120
    %v184 = vpop.f32.mrf.mxu0
    %v185 = vadd.f32 %v71, %v184
    %186 = vdwg.mxu0
    %187 = vst [vmem:[#allocation2] sm:$0xff] %v140
    %188 = vst [vmem:[#allocation2 + $0x8] sm:$0xff] %v143
    %189 = vst [vmem:[#allocation2 + $0x10] sm:$0xff] %v146
    %190 = vst [vmem:[#allocation2 + $0x18] sm:$0xff] %v149
    %191 = vst [vmem:[#allocation2 + $0x20] sm:$0xff] %v152
    %192 = vst [vmem:[#allocation2 + $0x28] sm:$0xff] %v155
    %193 = vst [vmem:[#allocation2 + $0x30] sm:$0xff] %v158
    %194 = vst [vmem:[#allocation2 + $0x38] sm:$0xff] %v161
    %195 = vst [vmem:[#allocation2 + $0x40] sm:$0xff] %v164
    %196 = vst [vmem:[#allocation2 + $0x48] sm:$0xff] %v167
    %197 = vst [vmem:[#allocation2 + $0x50] sm:$0xff] %v170
    %198 = vst [vmem:[#allocation2 + $0x58] sm:$0xff] %v173
    %199 = vst [vmem:[#allocation2 + $0x60] sm:$0xff] %v176
    %200 = vst [vmem:[#allocation2 + $0x68] sm:$0xff] %v179
    %201 = vst [vmem:[#allocation2 + $0x70] sm:$0xff] %v182
    %202 = vst [vmem:[#allocation2 + $0x78] sm:$0xff] %v185
    %v203 = vld [vmem:[%s2] sm:$0xff]
    %v204 = vld [vmem:[%s2 + $0x8] sm:$0xff]
    %v205 = vld [vmem:[%s2 + $0x10] sm:$0xff]
    %v206 = vld [vmem:[%s2 + $0x18] sm:$0xff]
    %v207 = vld [vmem:[%s4] sm:$0x1]
    %v209 = vperm.slane %v207, 0
    %v211 = vld [vmem:[%s6] sm:$0xff]
    %v212 = vld [vmem:[%s6 + $0x8] sm:$0xff]
    %v213 = vld [vmem:[%s6 + $0x10] sm:$0xff]
    %v214 = vld [vmem:[%s6 + $0x18] sm:$0xff]
    %v215 = vld [vmem:[%s8] sm:$0x1]
    %v217 = vperm.slane %v215, 0
    %v219 = vld [vmem:[%s5] sm:$0xff]
    %v220 = vld [vmem:[%s5 + $0x8] sm:$0xff]
    %v221 = vld [vmem:[%s5 + $0x10] sm:$0xff]
    %v222 = vld [vmem:[%s5 + $0x18] sm:$0xff]
    %v223 = vld [vmem:[%s7] sm:$0x1]
    %v225 = vperm.slane %v223, 0
    %v227 = vld [vmem:[#allocation2] sm:$0xff]
    %vm228 = vcmask 261120
    %v230 = vsel %vm228, 0.0, 0
    %232 = vmatpush.msra.mxu0 0.0
    %233 = vmatpush.msra.mxu0 0.0
    %234 = vmatpush.msra.mxu0 0.0
    %235 = vmatpush.msra.mxu0 0.0
    %236 = vmatpush.msra.mxu0 0.0
    %237 = vmatpush.msra.mxu0 0.0
    %238 = vmatpush.msra.mxu0 0.0
    %239 = vmatpush.msra.mxu0 0.0
    %240 = vmatpush.msra.mxu0 0.0
    %241 = vmatpush.msra.mxu0 0.0
    %242 = vmatpush.msra.mxu0 0.0
    %243 = vmatpush.msra.mxu0 0.0
    %244 = vmatpush.msra.mxu0 %v206
    %245 = vmatpush.msra.mxu0 %v205
    %246 = vmatpush.msra.mxu0 %v204
    %247 = vmatpush.msra.mxu0 %v203
    %248 = vmatmul.f32.gmra.mxu0 %v230
    %v249 = vpop.f32.mrf.mxu0
    %v250 = vadd.f32 0.0, %v249
    %251 = vdwg.mxu0
    %v252 = vadd.f32 %v227, %v250
    %v253 = vxor.u32 %v252, 2147483648
    %v254 = vmul.f32 %v253, 1.442695
    %v255 = vpow.pop %v254
    %v256 = vadd.f32 %v255, 1.0
    %v257 = vrcp.pop %v256
    %v258 = vmul.f32 %v256, %v257
    %v259 = vsub.f32 1.0, %v258
    %v260 = vmul.f32 %v257, %v259
    %v261 = vadd.f32 %v257, %v260
    %vm262 = vweird.f32 %v256
    %vm263 = vweird.f32 %v257
    %vm264 = vmor %vm262, %vm263
    %v265 = vsel %vm264, %v257, %v261
    %v266 = vand.u32 2147483647, %v256
    %vm267 = vcmp.eq.f32.partialorder %v266, 8.507059e+37
    %v268 = vand.u32 %v256, 2147483648
    %v269 = vor.u32 1.1754944e-38, %v268
    %v270 = vsel %vm267, %v269, %v265
    %v271 = vmul.f32 1.0, %v270
    %272 = vrot.lane.b32.xlu0 %v271, 64
    %v273 = vpop.permute.xlu0 %272
    %v274 = vadd.f32 %v250, %v209
    %v275 = vmul.f32 %v273, %v274
    %v276 = vadd.f32 %v227, %v275
    %v277 = vtanh.pop %v276
    %278 = vrot.lane.b32.xlu0 %v277, 64
    %v279 = vpop.permute.xlu0 %278
    %v280 = vsub.f32 1.0, %v271
    %282 = vrot.lane.b32.xlu0 %v279, 32
    %v283 = vpop.permute.xlu0 %282
    %v285 = vmul.f32 %v280, %v283
    %v286 = vmul.f32 %v271, 0.0
    %v287 = vadd.f32 %v285, %v286
    %289 = vrot.lane.b32.xlu0 %v287, 96
    %v290 = vpop.permute.xlu0 %289
    %v291 = vsel %vm228, %v290, 0
    %293 = vmatpush.msra.mxu0 0.0
    %294 = vmatpush.msra.mxu0 0.0
    %295 = vmatpush.msra.mxu0 0.0
    %296 = vmatpush.msra.mxu0 0.0
    %297 = vmatpush.msra.mxu0 0.0
    %298 = vmatpush.msra.mxu0 0.0
    %299 = vmatpush.msra.mxu0 0.0
    %300 = vmatpush.msra.mxu0 0.0
    %301 = vmatpush.msra.mxu0 0.0
    %302 = vmatpush.msra.mxu0 0.0
    %303 = vmatpush.msra.mxu0 0.0
    %304 = vmatpush.msra.mxu0 0.0
    %305 = vmatpush.msra.mxu0 %v222
    %306 = vmatpush.msra.mxu0 %v221
    %307 = vmatpush.msra.mxu0 %v220
    %308 = vmatpush.msra.mxu0 %v219
    %309 = vmatmul.f32.gmra.mxu0 %v291
    %v310 = vpop.f32.mrf.mxu0
    %v311 = vadd.f32 %v225, %v310
    %312 = vdwg.mxu0
    %313 = vmatpush.msra.mxu0 0.0
    %314 = vmatpush.msra.mxu0 0.0
    %315 = vmatpush.msra.mxu0 0.0
    %316 = vmatpush.msra.mxu0 0.0
    %317 = vmatpush.msra.mxu0 0.0
    %318 = vmatpush.msra.mxu0 0.0
    %319 = vmatpush.msra.mxu0 0.0
    %320 = vmatpush.msra.mxu0 0.0
    %321 = vmatpush.msra.mxu0 0.0
    %322 = vmatpush.msra.mxu0 0.0
    %323 = vmatpush.msra.mxu0 0.0
    %324 = vmatpush.msra.mxu0 0.0
    %325 = vmatpush.msra.mxu0 %v214
    %326 = vmatpush.msra.mxu0 %v213
    %327 = vmatpush.msra.mxu0 %v212
    %328 = vmatpush.msra.mxu0 %v211
    %329 = vmatmul.f32.gmra.mxu0 %v230
    %v330 = vpop.f32.mrf.mxu0
    %v331 = vadd.f32 0.0, %v330
    %332 = vdwg.mxu0
    %v333 = vadd.f32 %v311, %v331
    %v334 = vxor.u32 %v333, 2147483648
    %v335 = vmul.f32 %v334, 1.442695
    %v336 = vpow.pop %v335
    %v337 = vadd.f32 %v336, 1.0
    %v338 = vrcp.pop %v337
    %v339 = vmul.f32 %v337, %v338
    %v340 = vsub.f32 1.0, %v339
    %v341 = vmul.f32 %v338, %v340
    %v342 = vadd.f32 %v338, %v341
    %vm343 = vweird.f32 %v337
    %vm344 = vweird.f32 %v338
    %vm345 = vmor %vm343, %vm344
    %v346 = vsel %vm345, %v338, %v342
    %v347 = vand.u32 2147483647, %v337
    %vm348 = vcmp.eq.f32.partialorder %v347, 8.507059e+37
    %v349 = vand.u32 %v337, 2147483648
    %v350 = vor.u32 1.1754944e-38, %v349
    %v351 = vsel %vm348, %v350, %v346
    %v352 = vmul.f32 1.0, %v351
    %353 = vrot.lane.b32.xlu0 %v352, 64
    %v354 = vpop.permute.xlu0 %353
    %v355 = vadd.f32 %v331, %v217
    %v356 = vmul.f32 %v354, %v355
    %v357 = vadd.f32 %v311, %v356
    %v358 = vtanh.pop %v357
    %359 = vrot.lane.b32.xlu0 %v358, 64
    %v360 = vpop.permute.xlu0 %359
    %v361 = vsub.f32 1.0, %v352
    %363 = vrot.lane.b32.xlu0 %v360, 32
    %v364 = vpop.permute.xlu0 %363
    %v366 = vmul.f32 %v361, %v364
    %v367 = vmul.f32 %v352, 0.0
    %v368 = vadd.f32 %v366, %v367
    %v369 = vld [vmem:[#allocation2 + $0x8] sm:$0xff]
    %370 = vmatpush.msra.mxu0 0.0
    %371 = vmatpush.msra.mxu0 0.0
    %372 = vmatpush.msra.mxu0 0.0
    %373 = vmatpush.msra.mxu0 0.0
    %374 = vmatpush.msra.mxu0 0.0
    %375 = vmatpush.msra.mxu0 0.0
    %376 = vmatpush.msra.mxu0 0.0
    %377 = vmatpush.msra.mxu0 0.0
    %378 = vmatpush.msra.mxu0 0.0
    %379 = vmatpush.msra.mxu0 0.0
    %380 = vmatpush.msra.mxu0 0.0
    %381 = vmatpush.msra.mxu0 0.0
    %382 = vmatpush.msra.mxu0 %v206
    %383 = vmatpush.msra.mxu0 %v205
    %384 = vmatpush.msra.mxu0 %v204
    %385 = vmatpush.msra.mxu0 %v203
    %386 = vmatmul.f32.gmra.mxu0 %v291
    %v387 = vpop.f32.mrf.mxu0
    %v388 = vadd.f32 0.0, %v387
    %389 = vdwg.mxu0
    %v390 = vadd.f32 %v369, %v388
    %v391 = vxor.u32 %v390, 2147483648
    %v392 = vmul.f32 %v391, 1.442695
    %v393 = vpow.pop %v392
    %v394 = vadd.f32 %v393, 1.0
    %v395 = vrcp.pop %v394
    %v396 = vmul.f32 %v394, %v395
    %v397 = vsub.f32 1.0, %v396
    %v398 = vmul.f32 %v395, %v397
    %v399 = vadd.f32 %v395, %v398
    %vm400 = vweird.f32 %v394
    %vm401 = vweird.f32 %v395
    %vm402 = vmor %vm400, %vm401
    %v403 = vsel %vm402, %v395, %v399
    %v404 = vand.u32 2147483647, %v394
    %vm405 = vcmp.eq.f32.partialorder %v404, 8.507059e+37
    %v406 = vand.u32 %v394, 2147483648
    %v407 = vor.u32 1.1754944e-38, %v406
    %v408 = vsel %vm405, %v407, %v403
    %v409 = vmul.f32 1.0, %v408
    %410 = vrot.lane.b32.xlu0 %v409, 64
    %v411 = vpop.permute.xlu0 %410
    %v412 = vadd.f32 %v388, %v209
    %v413 = vmul.f32 %v411, %v412
    %v414 = vadd.f32 %v369, %v413
    %v415 = vtanh.pop %v414
    %416 = vrot.lane.b32.xlu0 %v415, 64
    %v417 = vpop.permute.xlu0 %416
    %v418 = vsub.f32 1.0, %v409
    %420 = vrot.lane.b32.xlu0 %v417, 32
    %v421 = vpop.permute.xlu0 %420
    %v423 = vmul.f32 %v418, %v421
    %v424 = vmul.f32 %v409, %v287
    %v425 = vadd.f32 %v423, %v424
    %427 = vrot.lane.b32.xlu0 %v425, 96
    %v428 = vpop.permute.xlu0 %427
    %v429 = vsel %vm228, %v428, 0
    %431 = vmatpush.msra.mxu0 0.0
    %432 = vmatpush.msra.mxu0 0.0
    %433 = vmatpush.msra.mxu0 0.0
    %434 = vmatpush.msra.mxu0 0.0
    %435 = vmatpush.msra.mxu0 0.0
    %436 = vmatpush.msra.mxu0 0.0
    %437 = vmatpush.msra.mxu0 0.0
    %438 = vmatpush.msra.mxu0 0.0
    %439 = vmatpush.msra.mxu0 0.0
    %440 = vmatpush.msra.mxu0 0.0
    %441 = vmatpush.msra.mxu0 0.0
    %442 = vmatpush.msra.mxu0 0.0
    %443 = vmatpush.msra.mxu0 %v222
    %444 = vmatpush.msra.mxu0 %v221
    %445 = vmatpush.msra.mxu0 %v220
    %446 = vmatpush.msra.mxu0 %v219
    %447 = vmatmul.f32.gmra.mxu0 %v429
    %v448 = vpop.f32.mrf.mxu0
    %v449 = vadd.f32 %v225, %v448
    %450 = vdwg.mxu0
    %452 = vrot.lane.b32.xlu0 %v368, 96
    %v453 = vpop.permute.xlu0 %452
    %v454 = vsel %vm228, %v453, 0
    %456 = vmatpush.msra.mxu0 0.0
    %457 = vmatpush.msra.mxu0 0.0
    %458 = vmatpush.msra.mxu0 0.0
    %459 = vmatpush.msra.mxu0 0.0
    %460 = vmatpush.msra.mxu0 0.0
    %461 = vmatpush.msra.mxu0 0.0
    %462 = vmatpush.msra.mxu0 0.0
    %463 = vmatpush.msra.mxu0 0.0
    %464 = vmatpush.msra.mxu0 0.0
    %465 = vmatpush.msra.mxu0 0.0
    %466 = vmatpush.msra.mxu0 0.0
    %467 = vmatpush.msra.mxu0 0.0
    %468 = vmatpush.msra.mxu0 %v214
    %469 = vmatpush.msra.mxu0 %v213
    %470 = vmatpush.msra.mxu0 %v212
    %471 = vmatpush.msra.mxu0 %v211
    %472 = vmatmul.f32.gmra.mxu0 %v454
    %v473 = vpop.f32.mrf.mxu0
    %v474 = vadd.f32 0.0, %v473
    %475 = vdwg.mxu0
    %v476 = vadd.f32 %v449, %v474
    %v477 = vxor.u32 %v476, 2147483648
    %v478 = vmul.f32 %v477, 1.442695
    %v479 = vpow.pop %v478
    %v480 = vadd.f32 %v479, 1.0
    %v481 = vrcp.pop %v480
    %v482 = vmul.f32 %v480, %v481
    %v483 = vsub.f32 1.0, %v482
    %v484 = vmul.f32 %v481, %v483
    %v485 = vadd.f32 %v481, %v484
    %vm486 = vweird.f32 %v480
    %vm487 = vweird.f32 %v481
    %vm488 = vmor %vm486, %vm487
    %v489 = vsel %vm488, %v481, %v485
    %v490 = vand.u32 2147483647, %v480
    %vm491 = vcmp.eq.f32.partialorder %v490, 8.507059e+37
    %v492 = vand.u32 %v480, 2147483648
    %v493 = vor.u32 1.1754944e-38, %v492
    %v494 = vsel %vm491, %v493, %v489
    %v495 = vmul.f32 1.0, %v494
    %496 = vrot.lane.b32.xlu0 %v495, 64
    %v497 = vpop.permute.xlu0 %496
    %v498 = vadd.f32 %v474, %v217
    %v499 = vmul.f32 %v497, %v498
    %v500 = vadd.f32 %v449, %v499
    %v501 = vtanh.pop %v500
    %502 = vrot.lane.b32.xlu0 %v501, 64
    %v503 = vpop.permute.xlu0 %502
    %v504 = vsub.f32 1.0, %v495
    %506 = vrot.lane.b32.xlu0 %v503, 32
    %v507 = vpop.permute.xlu0 %506
    %v509 = vmul.f32 %v504, %v507
    %v510 = vmul.f32 %v495, %v368
    %v511 = vadd.f32 %v509, %v510
    %v512 = vld [vmem:[#allocation2 + $0x10] sm:$0xff]
    %513 = vmatpush.msra.mxu0 0.0
    %514 = vmatpush.msra.mxu0 0.0
    %515 = vmatpush.msra.mxu0 0.0
    %516 = vmatpush.msra.mxu0 0.0
    %517 = vmatpush.msra.mxu0 0.0
    %518 = vmatpush.msra.mxu0 0.0
    %519 = vmatpush.msra.mxu0 0.0
    %520 = vmatpush.msra.mxu0 0.0
    %521 = vmatpush.msra.mxu0 0.0
    %522 = vmatpush.msra.mxu0 0.0
    %523 = vmatpush.msra.mxu0 0.0
    %524 = vmatpush.msra.mxu0 0.0
    %525 = vmatpush.msra.mxu0 %v206
    %526 = vmatpush.msra.mxu0 %v205
    %527 = vmatpush.msra.mxu0 %v204
    %528 = vmatpush.msra.mxu0 %v203
    %529 = vmatmul.f32.gmra.mxu0 %v429
    %v530 = vpop.f32.mrf.mxu0
    %v531 = vadd.f32 0.0, %v530
    %532 = vdwg.mxu0
    %v533 = vadd.f32 %v512, %v531
    %v534 = vxor.u32 %v533, 2147483648
    %v535 = vmul.f32 %v534, 1.442695
    %v536 = vpow.pop %v535
    %v537 = vadd.f32 %v536, 1.0
    %v538 = vrcp.pop %v537
    %v539 = vmul.f32 %v537, %v538
    %v540 = vsub.f32 1.0, %v539
    %v541 = vmul.f32 %v538, %v540
    %v542 = vadd.f32 %v538, %v541
    %vm543 = vweird.f32 %v537
    %vm544 = vweird.f32 %v538
    %vm545 = vmor %vm543, %vm544
    %v546 = vsel %vm545, %v538, %v542
    %v547 = vand.u32 2147483647, %v537
    %vm548 = vcmp.eq.f32.partialorder %v547, 8.507059e+37
    %v549 = vand.u32 %v537, 2147483648
    %v550 = vor.u32 1.1754944e-38, %v549
    %v551 = vsel %vm548, %v550, %v546
    %v552 = vmul.f32 1.0, %v551
    %553 = vrot.lane.b32.xlu0 %v552, 64
    %v554 = vpop.permute.xlu0 %553
    %v555 = vadd.f32 %v531, %v209
    %v556 = vmul.f32 %v554, %v555
    %v557 = vadd.f32 %v512, %v556
    %v558 = vtanh.pop %v557
    %559 = vrot.lane.b32.xlu0 %v558, 64
    %v560 = vpop.permute.xlu0 %559
    %v561 = vsub.f32 1.0, %v552
    %563 = vrot.lane.b32.xlu0 %v560, 32
    %v564 = vpop.permute.xlu0 %563
    %v566 = vmul.f32 %v561, %v564
    %v567 = vmul.f32 %v552, %v425
    %v568 = vadd.f32 %v566, %v567
    %570 = vrot.lane.b32.xlu0 %v568, 96
    %v571 = vpop.permute.xlu0 %570
    %v572 = vsel %vm228, %v571, 0
    %574 = vmatpush.msra.mxu0 0.0
    %575 = vmatpush.msra.mxu0 0.0
    %576 = vmatpush.msra.mxu0 0.0
    %577 = vmatpush.msra.mxu0 0.0
    %578 = vmatpush.msra.mxu0 0.0
    %579 = vmatpush.msra.mxu0 0.0
    %580 = vmatpush.msra.mxu0 0.0
    %581 = vmatpush.msra.mxu0 0.0
    %582 = vmatpush.msra.mxu0 0.0
    %583 = vmatpush.msra.mxu0 0.0
    %584 = vmatpush.msra.mxu0 0.0
    %585 = vmatpush.msra.mxu0 0.0
    %586 = vmatpush.msra.mxu0 %v222
    %587 = vmatpush.msra.mxu0 %v221
    %588 = vmatpush.msra.mxu0 %v220
    %589 = vmatpush.msra.mxu0 %v219
    %590 = vmatmul.f32.gmra.mxu0 %v572
    %v591 = vpop.f32.mrf.mxu0
    %v592 = vadd.f32 %v225, %v591
    %593 = vdwg.mxu0
    %595 = vrot.lane.b32.xlu0 %v511, 96
    %v596 = vpop.permute.xlu0 %595
    %v597 = vsel %vm228, %v596, 0
    %599 = vmatpush.msra.mxu0 0.0
    %600 = vmatpush.msra.mxu0 0.0
    %601 = vmatpush.msra.mxu0 0.0
    %602 = vmatpush.msra.mxu0 0.0
    %603 = vmatpush.msra.mxu0 0.0
    %604 = vmatpush.msra.mxu0 0.0
    %605 = vmatpush.msra.mxu0 0.0
    %606 = vmatpush.msra.mxu0 0.0
    %607 = vmatpush.msra.mxu0 0.0
    %608 = vmatpush.msra.mxu0 0.0
    %609 = vmatpush.msra.mxu0 0.0
    %610 = vmatpush.msra.mxu0 0.0
    %611 = vmatpush.msra.mxu0 %v214
    %612 = vmatpush.msra.mxu0 %v213
    %613 = vmatpush.msra.mxu0 %v212
    %614 = vmatpush.msra.mxu0 %v211
    %615 = vmatmul.f32.gmra.mxu0 %v597
    %v616 = vpop.f32.mrf.mxu0
    %v617 = vadd.f32 0.0, %v616
    %618 = vdwg.mxu0
    %v619 = vadd.f32 %v592, %v617
    %v620 = vxor.u32 %v619, 2147483648
    %v621 = vmul.f32 %v620, 1.442695
    %v622 = vpow.pop %v621
    %v623 = vadd.f32 %v622, 1.0
    %v624 = vrcp.pop %v623
    %v625 = vmul.f32 %v623, %v624
    %v626 = vsub.f32 1.0, %v625
    %v627 = vmul.f32 %v624, %v626
    %v628 = vadd.f32 %v624, %v627
    %vm629 = vweird.f32 %v623
    %vm630 = vweird.f32 %v624
    %vm631 = vmor %vm629, %vm630
    %v632 = vsel %vm631, %v624, %v628
    %v633 = vand.u32 2147483647, %v623
    %vm634 = vcmp.eq.f32.partialorder %v633, 8.507059e+37
    %v635 = vand.u32 %v623, 2147483648
    %v636 = vor.u32 1.1754944e-38, %v635
    %v637 = vsel %vm634, %v636, %v632
    %v638 = vmul.f32 1.0, %v637
    %639 = vrot.lane.b32.xlu0 %v638, 64
    %v640 = vpop.permute.xlu0 %639
    %v641 = vadd.f32 %v617, %v217
    %v642 = vmul.f32 %v640, %v641
    %v643 = vadd.f32 %v592, %v642
    %v644 = vtanh.pop %v643
    %645 = vrot.lane.b32.xlu0 %v644, 64
    %v646 = vpop.permute.xlu0 %645
    %v647 = vsub.f32 1.0, %v638
    %649 = vrot.lane.b32.xlu0 %v646, 32
    %v650 = vpop.permute.xlu0 %649
    %v652 = vmul.f32 %v647, %v650
    %v653 = vmul.f32 %v638, %v511
    %v654 = vadd.f32 %v652, %v653
    %v655 = vld [vmem:[#allocation2 + $0x18] sm:$0xff]
    %656 = vmatpush.msra.mxu0 0.0
    %657 = vmatpush.msra.mxu0 0.0
    %658 = vmatpush.msra.mxu0 0.0
    %659 = vmatpush.msra.mxu0 0.0
    %660 = vmatpush.msra.mxu0 0.0
    %661 = vmatpush.msra.mxu0 0.0
    %662 = vmatpush.msra.mxu0 0.0
    %663 = vmatpush.msra.mxu0 0.0
    %664 = vmatpush.msra.mxu0 0.0
    %665 = vmatpush.msra.mxu0 0.0
    %666 = vmatpush.msra.mxu0 0.0
    %667 = vmatpush.msra.mxu0 0.0
    %668 = vmatpush.msra.mxu0 %v206
    %669 = vmatpush.msra.mxu0 %v205
    %670 = vmatpush.msra.mxu0 %v204
    %671 = vmatpush.msra.mxu0 %v203
    %672 = vmatmul.f32.gmra.mxu0 %v572
    %v673 = vpop.f32.mrf.mxu0
    %v674 = vadd.f32 0.0, %v673
    %675 = vdwg.mxu0
    %v676 = vadd.f32 %v655, %v674
    %v677 = vxor.u32 %v676, 2147483648
    %v678 = vmul.f32 %v677, 1.442695
    %v679 = vpow.pop %v678
    %v680 = vadd.f32 %v679, 1.0
    %v681 = vrcp.pop %v680
    %v682 = vmul.f32 %v680, %v681
    %v683 = vsub.f32 1.0, %v682
    %v684 = vmul.f32 %v681, %v683
    %v685 = vadd.f32 %v681, %v684
    %vm686 = vweird.f32 %v680
    %vm687 = vweird.f32 %v681
    %vm688 = vmor %vm686, %vm687
    %v689 = vsel %vm688, %v681, %v685
    %v690 = vand.u32 2147483647, %v680
    %vm691 = vcmp.eq.f32.partialorder %v690, 8.507059e+37
    %v692 = vand.u32 %v680, 2147483648
    %v693 = vor.u32 1.1754944e-38, %v692
    %v694 = vsel %vm691, %v693, %v689
    %v695 = vmul.f32 1.0, %v694
    %696 = vrot.lane.b32.xlu0 %v695, 64
    %v697 = vpop.permute.xlu0 %696
    %v698 = vadd.f32 %v674, %v209
    %v699 = vmul.f32 %v697, %v698
    %v700 = vadd.f32 %v655, %v699
    %v701 = vtanh.pop %v700
    %702 = vrot.lane.b32.xlu0 %v701, 64
    %v703 = vpop.permute.xlu0 %702
    %v704 = vsub.f32 1.0, %v695
    %706 = vrot.lane.b32.xlu0 %v703, 32
    %v707 = vpop.permute.xlu0 %706
    %v709 = vmul.f32 %v704, %v707
    %v710 = vmul.f32 %v695, %v568
    %v711 = vadd.f32 %v709, %v710
    %713 = vrot.lane.b32.xlu0 %v711, 96
    %v714 = vpop.permute.xlu0 %713
    %v715 = vsel %vm228, %v714, 0
    %717 = vmatpush.msra.mxu0 0.0
    %718 = vmatpush.msra.mxu0 0.0
    %719 = vmatpush.msra.mxu0 0.0
    %720 = vmatpush.msra.mxu0 0.0
    %721 = vmatpush.msra.mxu0 0.0
    %722 = vmatpush.msra.mxu0 0.0
    %723 = vmatpush.msra.mxu0 0.0
    %724 = vmatpush.msra.mxu0 0.0
    %725 = vmatpush.msra.mxu0 0.0
    %726 = vmatpush.msra.mxu0 0.0
    %727 = vmatpush.msra.mxu0 0.0
    %728 = vmatpush.msra.mxu0 0.0
    %729 = vmatpush.msra.mxu0 %v222
    %730 = vmatpush.msra.mxu0 %v221
    %731 = vmatpush.msra.mxu0 %v220
    %732 = vmatpush.msra.mxu0 %v219
    %733 = vmatmul.f32.gmra.mxu0 %v715
    %v734 = vpop.f32.mrf.mxu0
    %v735 = vadd.f32 %v225, %v734
    %736 = vdwg.mxu0
    %738 = vrot.lane.b32.xlu0 %v654, 96
    %v739 = vpop.permute.xlu0 %738
    %v740 = vsel %vm228, %v739, 0
    %742 = vmatpush.msra.mxu0 0.0
    %743 = vmatpush.msra.mxu0 0.0
    %744 = vmatpush.msra.mxu0 0.0
    %745 = vmatpush.msra.mxu0 0.0
    %746 = vmatpush.msra.mxu0 0.0
    %747 = vmatpush.msra.mxu0 0.0
    %748 = vmatpush.msra.mxu0 0.0
    %749 = vmatpush.msra.mxu0 0.0
    %750 = vmatpush.msra.mxu0 0.0
    %751 = vmatpush.msra.mxu0 0.0
    %752 = vmatpush.msra.mxu0 0.0
    %753 = vmatpush.msra.mxu0 0.0
    %754 = vmatpush.msra.mxu0 %v214
    %755 = vmatpush.msra.mxu0 %v213
    %756 = vmatpush.msra.mxu0 %v212
    %757 = vmatpush.msra.mxu0 %v211
    %758 = vmatmul.f32.gmra.mxu0 %v740
    %v759 = vpop.f32.mrf.mxu0
    %v760 = vadd.f32 0.0, %v759
    %761 = vdwg.mxu0
    %v762 = vadd.f32 %v735, %v760
    %v763 = vxor.u32 %v762, 2147483648
    %v764 = vmul.f32 %v763, 1.442695
    %v765 = vpow.pop %v764
    %v766 = vadd.f32 %v765, 1.0
    %v767 = vrcp.pop %v766
    %v768 = vmul.f32 %v766, %v767
    %v769 = vsub.f32 1.0, %v768
    %v770 = vmul.f32 %v767, %v769
    %v771 = vadd.f32 %v767, %v770
    %vm772 = vweird.f32 %v766
    %vm773 = vweird.f32 %v767
    %vm774 = vmor %vm772, %vm773
    %v775 = vsel %vm774, %v767, %v771
    %v776 = vand.u32 2147483647, %v766
    %vm777 = vcmp.eq.f32.partialorder %v776, 8.507059e+37
    %v778 = vand.u32 %v766, 2147483648
    %v779 = vor.u32 1.1754944e-38, %v778
    %v780 = vsel %vm777, %v779, %v775
    %v781 = vmul.f32 1.0, %v780
    %782 = vrot.lane.b32.xlu0 %v781, 64
    %v783 = vpop.permute.xlu0 %782
    %v784 = vadd.f32 %v760, %v217
    %v785 = vmul.f32 %v783, %v784
    %v786 = vadd.f32 %v735, %v785
    %v787 = vtanh.pop %v786
    %788 = vrot.lane.b32.xlu0 %v787, 64
    %v789 = vpop.permute.xlu0 %788
    %v790 = vsub.f32 1.0, %v781
    %792 = vrot.lane.b32.xlu0 %v789, 32
    %v793 = vpop.permute.xlu0 %792
    %v795 = vmul.f32 %v790, %v793
    %v796 = vmul.f32 %v781, %v654
    %v797 = vadd.f32 %v795, %v796
    %v798 = vld [vmem:[#allocation2 + $0x20] sm:$0xff]
    %799 = vmatpush.msra.mxu0 0.0
    %800 = vmatpush.msra.mxu0 0.0
    %801 = vmatpush.msra.mxu0 0.0
    %802 = vmatpush.msra.mxu0 0.0
    %803 = vmatpush.msra.mxu0 0.0
    %804 = vmatpush.msra.mxu0 0.0
    %805 = vmatpush.msra.mxu0 0.0
    %806 = vmatpush.msra.mxu0 0.0
    %807 = vmatpush.msra.mxu0 0.0
    %808 = vmatpush.msra.mxu0 0.0
    %809 = vmatpush.msra.mxu0 0.0
    %810 = vmatpush.msra.mxu0 0.0
    %811 = vmatpush.msra.mxu0 %v206
    %812 = vmatpush.msra.mxu0 %v205
    %813 = vmatpush.msra.mxu0 %v204
    %814 = vmatpush.msra.mxu0 %v203
    %815 = vmatmul.f32.gmra.mxu0 %v715
    %v816 = vpop.f32.mrf.mxu0
    %v817 = vadd.f32 0.0, %v816
    %818 = vdwg.mxu0
    %v819 = vadd.f32 %v798, %v817
    %v820 = vxor.u32 %v819, 2147483648
    %v821 = vmul.f32 %v820, 1.442695
    %v822 = vpow.pop %v821
    %v823 = vadd.f32 %v822, 1.0
    %v824 = vrcp.pop %v823
    %v825 = vmul.f32 %v823, %v824
    %v826 = vsub.f32 1.0, %v825
    %v827 = vmul.f32 %v824, %v826
    %v828 = vadd.f32 %v824, %v827
    %vm829 = vweird.f32 %v823
    %vm830 = vweird.f32 %v824
    %vm831 = vmor %vm829, %vm830
    %v832 = vsel %vm831, %v824, %v828
    %v833 = vand.u32 2147483647, %v823
    %vm834 = vcmp.eq.f32.partialorder %v833, 8.507059e+37
    %v835 = vand.u32 %v823, 2147483648
    %v836 = vor.u32 1.1754944e-38, %v835
    %v837 = vsel %vm834, %v836, %v832
    %v838 = vmul.f32 1.0, %v837
    %839 = vrot.lane.b32.xlu0 %v838, 64
    %v840 = vpop.permute.xlu0 %839
    %v841 = vadd.f32 %v817, %v209
    %v842 = vmul.f32 %v840, %v841
    %v843 = vadd.f32 %v798, %v842
    %v844 = vtanh.pop %v843
    %845 = vrot.lane.b32.xlu0 %v844, 64
    %v846 = vpop.permute.xlu0 %845
    %v847 = vsub.f32 1.0, %v838
    %849 = vrot.lane.b32.xlu0 %v846, 32
    %v850 = vpop.permute.xlu0 %849
    %v852 = vmul.f32 %v847, %v850
    %v853 = vmul.f32 %v838, %v711
    %v854 = vadd.f32 %v852, %v853
    %856 = vrot.lane.b32.xlu0 %v854, 96
    %v857 = vpop.permute.xlu0 %856
    %v858 = vsel %vm228, %v857, 0
    %860 = vmatpush.msra.mxu0 0.0
    %861 = vmatpush.msra.mxu0 0.0
    %862 = vmatpush.msra.mxu0 0.0
    %863 = vmatpush.msra.mxu0 0.0
    %864 = vmatpush.msra.mxu0 0.0
    %865 = vmatpush.msra.mxu0 0.0
    %866 = vmatpush.msra.mxu0 0.0
    %867 = vmatpush.msra.mxu0 0.0
    %868 = vmatpush.msra.mxu0 0.0
    %869 = vmatpush.msra.mxu0 0.0
    %870 = vmatpush.msra.mxu0 0.0
    %871 = vmatpush.msra.mxu0 0.0
    %872 = vmatpush.msra.mxu0 %v222
    %873 = vmatpush.msra.mxu0 %v221
    %874 = vmatpush.msra.mxu0 %v220
    %875 = vmatpush.msra.mxu0 %v219
    %876 = vmatmul.f32.gmra.mxu0 %v858
    %v877 = vpop.f32.mrf.mxu0
    %v878 = vadd.f32 %v225, %v877
    %879 = vdwg.mxu0
    %881 = vrot.lane.b32.xlu0 %v797, 96
    %v882 = vpop.permute.xlu0 %881
    %v883 = vsel %vm228, %v882, 0
    %885 = vmatpush.msra.mxu0 0.0
    %886 = vmatpush.msra.mxu0 0.0
    %887 = vmatpush.msra.mxu0 0.0
    %888 = vmatpush.msra.mxu0 0.0
    %889 = vmatpush.msra.mxu0 0.0
    %890 = vmatpush.msra.mxu0 0.0
    %891 = vmatpush.msra.mxu0 0.0
    %892 = vmatpush.msra.mxu0 0.0
    %893 = vmatpush.msra.mxu0 0.0
    %894 = vmatpush.msra.mxu0 0.0
    %895 = vmatpush.msra.mxu0 0.0
    %896 = vmatpush.msra.mxu0 0.0
    %897 = vmatpush.msra.mxu0 %v214
    %898 = vmatpush.msra.mxu0 %v213
    %899 = vmatpush.msra.mxu0 %v212
    %900 = vmatpush.msra.mxu0 %v211
    %901 = vmatmul.f32.gmra.mxu0 %v883
    %v902 = vpop.f32.mrf.mxu0
    %v903 = vadd.f32 0.0, %v902
    %904 = vdwg.mxu0
    %v905 = vadd.f32 %v878, %v903
    %v906 = vxor.u32 %v905, 2147483648
    %v907 = vmul.f32 %v906, 1.442695
    %v908 = vpow.pop %v907
    %v909 = vadd.f32 %v908, 1.0
    %v910 = vrcp.pop %v909
    %v911 = vmul.f32 %v909, %v910
    %v912 = vsub.f32 1.0, %v911
    %v913 = vmul.f32 %v910, %v912
    %v914 = vadd.f32 %v910, %v913
    %vm915 = vweird.f32 %v909
    %vm916 = vweird.f32 %v910
    %vm917 = vmor %vm915, %vm916
    %v918 = vsel %vm917, %v910, %v914
    %v919 = vand.u32 2147483647, %v909
    %vm920 = vcmp.eq.f32.partialorder %v919, 8.507059e+37
    %v921 = vand.u32 %v909, 2147483648
    %v922 = vor.u32 1.1754944e-38, %v921
    %v923 = vsel %vm920, %v922, %v918
    %v924 = vmul.f32 1.0, %v923
    %925 = vrot.lane.b32.xlu0 %v924, 64
    %v926 = vpop.permute.xlu0 %925
    %v927 = vadd.f32 %v903, %v217
    %v928 = vmul.f32 %v926, %v927
    %v929 = vadd.f32 %v878, %v928
    %v930 = vtanh.pop %v929
    %931 = vrot.lane.b32.xlu0 %v930, 64
    %v932 = vpop.permute.xlu0 %931
    %v933 = vsub.f32 1.0, %v924
    %935 = vrot.lane.b32.xlu0 %v932, 32
    %v936 = vpop.permute.xlu0 %935
    %v938 = vmul.f32 %v933, %v936
    %v939 = vmul.f32 %v924, %v797
    %v940 = vadd.f32 %v938, %v939
    %v941 = vld [vmem:[#allocation2 + $0x28] sm:$0xff]
    %942 = vmatpush.msra.mxu0 0.0
    %943 = vmatpush.msra.mxu0 0.0
    %944 = vmatpush.msra.mxu0 0.0
    %945 = vmatpush.msra.mxu0 0.0
    %946 = vmatpush.msra.mxu0 0.0
    %947 = vmatpush.msra.mxu0 0.0
    %948 = vmatpush.msra.mxu0 0.0
    %949 = vmatpush.msra.mxu0 0.0
    %950 = vmatpush.msra.mxu0 0.0
    %951 = vmatpush.msra.mxu0 0.0
    %952 = vmatpush.msra.mxu0 0.0
    %953 = vmatpush.msra.mxu0 0.0
    %954 = vmatpush.msra.mxu0 %v206
    %955 = vmatpush.msra.mxu0 %v205
    %956 = vmatpush.msra.mxu0 %v204
    %957 = vmatpush.msra.mxu0 %v203
    %958 = vmatmul.f32.gmra.mxu0 %v858
    %v959 = vpop.f32.mrf.mxu0
    %v960 = vadd.f32 0.0, %v959
    %961 = vdwg.mxu0
    %v962 = vadd.f32 %v941, %v960
    %v963 = vxor.u32 %v962, 2147483648
    %v964 = vmul.f32 %v963, 1.442695
    %v965 = vpow.pop %v964
    %v966 = vadd.f32 %v965, 1.0
    %v967 = vrcp.pop %v966
    %v968 = vmul.f32 %v966, %v967
    %v969 = vsub.f32 1.0, %v968
    %v970 = vmul.f32 %v967, %v969
    %v971 = vadd.f32 %v967, %v970
    %vm972 = vweird.f32 %v966
    %vm973 = vweird.f32 %v967
    %vm974 = vmor %vm972, %vm973
    %v975 = vsel %vm974, %v967, %v971
    %v976 = vand.u32 2147483647, %v966
    %vm977 = vcmp.eq.f32.partialorder %v976, 8.507059e+37
    %v978 = vand.u32 %v966, 2147483648
    %v979 = vor.u32 1.1754944e-38, %v978
    %v980 = vsel %vm977, %v979, %v975
    %v981 = vmul.f32 1.0, %v980
    %982 = vrot.lane.b32.xlu0 %v981, 64
    %v983 = vpop.permute.xlu0 %982
    %v984 = vadd.f32 %v960, %v209
    %v985 = vmul.f32 %v983, %v984
    %v986 = vadd.f32 %v941, %v985
    %v987 = vtanh.pop %v986
    %988 = vrot.lane.b32.xlu0 %v987, 64
    %v989 = vpop.permute.xlu0 %988
    %v990 = vsub.f32 1.0, %v981
    %992 = vrot.lane.b32.xlu0 %v989, 32
    %v993 = vpop.permute.xlu0 %992
    %v995 = vmul.f32 %v990, %v993
    %v996 = vmul.f32 %v981, %v854
    %v997 = vadd.f32 %v995, %v996
    %999 = vrot.lane.b32.xlu0 %v997, 96
    %v1000 = vpop.permute.xlu0 %999
    %v1001 = vsel %vm228, %v1000, 0
    %1003 = vmatpush.msra.mxu0 0.0
    %1004 = vmatpush.msra.mxu0 0.0
    %1005 = vmatpush.msra.mxu0 0.0
    %1006 = vmatpush.msra.mxu0 0.0
    %1007 = vmatpush.msra.mxu0 0.0
    %1008 = vmatpush.msra.mxu0 0.0
    %1009 = vmatpush.msra.mxu0 0.0
    %1010 = vmatpush.msra.mxu0 0.0
    %1011 = vmatpush.msra.mxu0 0.0
    %1012 = vmatpush.msra.mxu0 0.0
    %1013 = vmatpush.msra.mxu0 0.0
    %1014 = vmatpush.msra.mxu0 0.0
    %1015 = vmatpush.msra.mxu0 %v222
    %1016 = vmatpush.msra.mxu0 %v221
    %1017 = vmatpush.msra.mxu0 %v220
    %1018 = vmatpush.msra.mxu0 %v219
    %1019 = vmatmul.f32.gmra.mxu0 %v1001
    %v1020 = vpop.f32.mrf.mxu0
    %v1021 = vadd.f32 %v225, %v1020
    %1022 = vdwg.mxu0
    %1024 = vrot.lane.b32.xlu0 %v940, 96
    %v1025 = vpop.permute.xlu0 %1024
    %v1026 = vsel %vm228, %v1025, 0
    %1028 = vmatpush.msra.mxu0 0.0
    %1029 = vmatpush.msra.mxu0 0.0
    %1030 = vmatpush.msra.mxu0 0.0
    %1031 = vmatpush.msra.mxu0 0.0
    %1032 = vmatpush.msra.mxu0 0.0
    %1033 = vmatpush.msra.mxu0 0.0
    %1034 = vmatpush.msra.mxu0 0.0
    %1035 = vmatpush.msra.mxu0 0.0
    %1036 = vmatpush.msra.mxu0 0.0
    %1037 = vmatpush.msra.mxu0 0.0
    %1038 = vmatpush.msra.mxu0 0.0
    %1039 = vmatpush.msra.mxu0 0.0
    %1040 = vmatpush.msra.mxu0 %v214
    %1041 = vmatpush.msra.mxu0 %v213
    %1042 = vmatpush.msra.mxu0 %v212
    %1043 = vmatpush.msra.mxu0 %v211
    %1044 = vmatmul.f32.gmra.mxu0 %v1026
    %v1045 = vpop.f32.mrf.mxu0
    %v1046 = vadd.f32 0.0, %v1045
    %1047 = vdwg.mxu0
    %v1048 = vadd.f32 %v1021, %v1046
    %v1049 = vxor.u32 %v1048, 2147483648
    %v1050 = vmul.f32 %v1049, 1.442695
    %v1051 = vpow.pop %v1050
    %v1052 = vadd.f32 %v1051, 1.0
    %v1053 = vrcp.pop %v1052
    %v1054 = vmul.f32 %v1052, %v1053
    %v1055 = vsub.f32 1.0, %v1054
    %v1056 = vmul.f32 %v1053, %v1055
    %v1057 = vadd.f32 %v1053, %v1056
    %vm1058 = vweird.f32 %v1052
    %vm1059 = vweird.f32 %v1053
    %vm1060 = vmor %vm1058, %vm1059
    %v1061 = vsel %vm1060, %v1053, %v1057
    %v1062 = vand.u32 2147483647, %v1052
    %vm1063 = vcmp.eq.f32.partialorder %v1062, 8.507059e+37
    %v1064 = vand.u32 %v1052, 2147483648
    %v1065 = vor.u32 1.1754944e-38, %v1064
    %v1066 = vsel %vm1063, %v1065, %v1061
    %v1067 = vmul.f32 1.0, %v1066
    %1068 = vrot.lane.b32.xlu0 %v1067, 64
    %v1069 = vpop.permute.xlu0 %1068
    %v1070 = vadd.f32 %v1046, %v217
    %v1071 = vmul.f32 %v1069, %v1070
    %v1072 = vadd.f32 %v1021, %v1071
    %v1073 = vtanh.pop %v1072
    %1074 = vrot.lane.b32.xlu0 %v1073, 64
    %v1075 = vpop.permute.xlu0 %1074
    %v1076 = vsub.f32 1.0, %v1067
    %1078 = vrot.lane.b32.xlu0 %v1075, 32
    %v1079 = vpop.permute.xlu0 %1078
    %v1081 = vmul.f32 %v1076, %v1079
    %v1082 = vmul.f32 %v1067, %v940
    %v1083 = vadd.f32 %v1081, %v1082
    %v1084 = vld [vmem:[#allocation2 + $0x30] sm:$0xff]
    %1085 = vmatpush.msra.mxu0 0.0
    %1086 = vmatpush.msra.mxu0 0.0
    %1087 = vmatpush.msra.mxu0 0.0
    %1088 = vmatpush.msra.mxu0 0.0
    %1089 = vmatpush.msra.mxu0 0.0
    %1090 = vmatpush.msra.mxu0 0.0
    %1091 = vmatpush.msra.mxu0 0.0
    %1092 = vmatpush.msra.mxu0 0.0
    %1093 = vmatpush.msra.mxu0 0.0
    %1094 = vmatpush.msra.mxu0 0.0
    %1095 = vmatpush.msra.mxu0 0.0
    %1096 = vmatpush.msra.mxu0 0.0
    %1097 = vmatpush.msra.mxu0 %v206
    %1098 = vmatpush.msra.mxu0 %v205
    %1099 = vmatpush.msra.mxu0 %v204
    %1100 = vmatpush.msra.mxu0 %v203
    %1101 = vmatmul.f32.gmra.mxu0 %v1001
    %v1102 = vpop.f32.mrf.mxu0
    %v1103 = vadd.f32 0.0, %v1102
    %1104 = vdwg.mxu0
    %v1105 = vadd.f32 %v1084, %v1103
    %v1106 = vxor.u32 %v1105, 2147483648
    %v1107 = vmul.f32 %v1106, 1.442695
    %v1108 = vpow.pop %v1107
    %v1109 = vadd.f32 %v1108, 1.0
    %v1110 = vrcp.pop %v1109
    %v1111 = vmul.f32 %v1109, %v1110
    %v1112 = vsub.f32 1.0, %v1111
    %v1113 = vmul.f32 %v1110, %v1112
    %v1114 = vadd.f32 %v1110, %v1113
    %vm1115 = vweird.f32 %v1109
    %vm1116 = vweird.f32 %v1110
    %vm1117 = vmor %vm1115, %vm1116
    %v1118 = vsel %vm1117, %v1110, %v1114
    %v1119 = vand.u32 2147483647, %v1109
    %vm1120 = vcmp.eq.f32.partialorder %v1119, 8.507059e+37
    %v1121 = vand.u32 %v1109, 2147483648
    %v1122 = vor.u32 1.1754944e-38, %v1121
    %v1123 = vsel %vm1120, %v1122, %v1118
    %v1124 = vmul.f32 1.0, %v1123
    %1125 = vrot.lane.b32.xlu0 %v1124, 64
    %v1126 = vpop.permute.xlu0 %1125
    %v1127 = vadd.f32 %v1103, %v209
    %v1128 = vmul.f32 %v1126, %v1127
    %v1129 = vadd.f32 %v1084, %v1128
    %v1130 = vtanh.pop %v1129
    %1131 = vrot.lane.b32.xlu0 %v1130, 64
    %v1132 = vpop.permute.xlu0 %1131
    %v1133 = vsub.f32 1.0, %v1124
    %1135 = vrot.lane.b32.xlu0 %v1132, 32
    %v1136 = vpop.permute.xlu0 %1135
    %v1138 = vmul.f32 %v1133, %v1136
    %v1139 = vmul.f32 %v1124, %v997
    %v1140 = vadd.f32 %v1138, %v1139
    %1142 = vrot.lane.b32.xlu0 %v1140, 96
    %v1143 = vpop.permute.xlu0 %1142
    %v1144 = vsel %vm228, %v1143, 0
    %1146 = vmatpush.msra.mxu0 0.0
    %1147 = vmatpush.msra.mxu0 0.0
    %1148 = vmatpush.msra.mxu0 0.0
    %1149 = vmatpush.msra.mxu0 0.0
    %1150 = vmatpush.msra.mxu0 0.0
    %1151 = vmatpush.msra.mxu0 0.0
    %1152 = vmatpush.msra.mxu0 0.0
    %1153 = vmatpush.msra.mxu0 0.0
    %1154 = vmatpush.msra.mxu0 0.0
    %1155 = vmatpush.msra.mxu0 0.0
    %1156 = vmatpush.msra.mxu0 0.0
    %1157 = vmatpush.msra.mxu0 0.0
    %1158 = vmatpush.msra.mxu0 %v222
    %1159 = vmatpush.msra.mxu0 %v221
    %1160 = vmatpush.msra.mxu0 %v220
    %1161 = vmatpush.msra.mxu0 %v219
    %1162 = vmatmul.f32.gmra.mxu0 %v1144
    %v1163 = vpop.f32.mrf.mxu0
    %v1164 = vadd.f32 %v225, %v1163
    %1165 = vdwg.mxu0
    %1167 = vrot.lane.b32.xlu0 %v1083, 96
    %v1168 = vpop.permute.xlu0 %1167
    %v1169 = vsel %vm228, %v1168, 0
    %1171 = vmatpush.msra.mxu0 0.0
    %1172 = vmatpush.msra.mxu0 0.0
    %1173 = vmatpush.msra.mxu0 0.0
    %1174 = vmatpush.msra.mxu0 0.0
    %1175 = vmatpush.msra.mxu0 0.0
    %1176 = vmatpush.msra.mxu0 0.0
    %1177 = vmatpush.msra.mxu0 0.0
    %1178 = vmatpush.msra.mxu0 0.0
    %1179 = vmatpush.msra.mxu0 0.0
    %1180 = vmatpush.msra.mxu0 0.0
    %1181 = vmatpush.msra.mxu0 0.0
    %1182 = vmatpush.msra.mxu0 0.0
    %1183 = vmatpush.msra.mxu0 %v214
    %1184 = vmatpush.msra.mxu0 %v213
    %1185 = vmatpush.msra.mxu0 %v212
    %1186 = vmatpush.msra.mxu0 %v211
    %1187 = vmatmul.f32.gmra.mxu0 %v1169
    %v1188 = vpop.f32.mrf.mxu0
    %v1189 = vadd.f32 0.0, %v1188
    %1190 = vdwg.mxu0
    %v1191 = vadd.f32 %v1164, %v1189
    %v1192 = vxor.u32 %v1191, 2147483648
    %v1193 = vmul.f32 %v1192, 1.442695
    %v1194 = vpow.pop %v1193
    %v1195 = vadd.f32 %v1194, 1.0
    %v1196 = vrcp.pop %v1195
    %v1197 = vmul.f32 %v1195, %v1196
    %v1198 = vsub.f32 1.0, %v1197
    %v1199 = vmul.f32 %v1196, %v1198
    %v1200 = vadd.f32 %v1196, %v1199
    %vm1201 = vweird.f32 %v1195
    %vm1202 = vweird.f32 %v1196
    %vm1203 = vmor %vm1201, %vm1202
    %v1204 = vsel %vm1203, %v1196, %v1200
    %v1205 = vand.u32 2147483647, %v1195
    %vm1206 = vcmp.eq.f32.partialorder %v1205, 8.507059e+37
    %v1207 = vand.u32 %v1195, 2147483648
    %v1208 = vor.u32 1.1754944e-38, %v1207
    %v1209 = vsel %vm1206, %v1208, %v1204
    %v1210 = vmul.f32 1.0, %v1209
    %1211 = vrot.lane.b32.xlu0 %v1210, 64
    %v1212 = vpop.permute.xlu0 %1211
    %v1213 = vadd.f32 %v1189, %v217
    %v1214 = vmul.f32 %v1212, %v1213
    %v1215 = vadd.f32 %v1164, %v1214
    %v1216 = vtanh.pop %v1215
    %1217 = vrot.lane.b32.xlu0 %v1216, 64
    %v1218 = vpop.permute.xlu0 %1217
    %v1219 = vsub.f32 1.0, %v1210
    %1221 = vrot.lane.b32.xlu0 %v1218, 32
    %v1222 = vpop.permute.xlu0 %1221
    %v1224 = vmul.f32 %v1219, %v1222
    %v1225 = vmul.f32 %v1210, %v1083
    %v1226 = vadd.f32 %v1224, %v1225
    %v1227 = vld [vmem:[#allocation2 + $0x38] sm:$0xff]
    %1228 = vmatpush.msra.mxu0 0.0
    %1229 = vmatpush.msra.mxu0 0.0
    %1230 = vmatpush.msra.mxu0 0.0
    %1231 = vmatpush.msra.mxu0 0.0
    %1232 = vmatpush.msra.mxu0 0.0
    %1233 = vmatpush.msra.mxu0 0.0
    %1234 = vmatpush.msra.mxu0 0.0
    %1235 = vmatpush.msra.mxu0 0.0
    %1236 = vmatpush.msra.mxu0 0.0
    %1237 = vmatpush.msra.mxu0 0.0
    %1238 = vmatpush.msra.mxu0 0.0
    %1239 = vmatpush.msra.mxu0 0.0
    %1240 = vmatpush.msra.mxu0 %v206
    %1241 = vmatpush.msra.mxu0 %v205
    %1242 = vmatpush.msra.mxu0 %v204
    %1243 = vmatpush.msra.mxu0 %v203
    %1244 = vmatmul.f32.gmra.mxu0 %v1144
    %v1245 = vpop.f32.mrf.mxu0
    %v1246 = vadd.f32 0.0, %v1245
    %1247 = vdwg.mxu0
    %v1248 = vadd.f32 %v1227, %v1246
    %v1249 = vxor.u32 %v1248, 2147483648
    %v1250 = vmul.f32 %v1249, 1.442695
    %v1251 = vpow.pop %v1250
    %v1252 = vadd.f32 %v1251, 1.0
    %v1253 = vrcp.pop %v1252
    %v1254 = vmul.f32 %v1252, %v1253
    %v1255 = vsub.f32 1.0, %v1254
    %v1256 = vmul.f32 %v1253, %v1255
    %v1257 = vadd.f32 %v1253, %v1256
    %vm1258 = vweird.f32 %v1252
    %vm1259 = vweird.f32 %v1253
    %vm1260 = vmor %vm1258, %vm1259
    %v1261 = vsel %vm1260, %v1253, %v1257
    %v1262 = vand.u32 2147483647, %v1252
    %vm1263 = vcmp.eq.f32.partialorder %v1262, 8.507059e+37
    %v1264 = vand.u32 %v1252, 2147483648
    %v1265 = vor.u32 1.1754944e-38, %v1264
    %v1266 = vsel %vm1263, %v1265, %v1261
    %v1267 = vmul.f32 1.0, %v1266
    %1268 = vrot.lane.b32.xlu0 %v1267, 64
    %v1269 = vpop.permute.xlu0 %1268
    %v1270 = vadd.f32 %v1246, %v209
    %v1271 = vmul.f32 %v1269, %v1270
    %v1272 = vadd.f32 %v1227, %v1271
    %v1273 = vtanh.pop %v1272
    %1274 = vrot.lane.b32.xlu0 %v1273, 64
    %v1275 = vpop.permute.xlu0 %1274
    %v1276 = vsub.f32 1.0, %v1267
    %1278 = vrot.lane.b32.xlu0 %v1275, 32
    %v1279 = vpop.permute.xlu0 %1278
    %v1281 = vmul.f32 %v1276, %v1279
    %v1282 = vmul.f32 %v1267, %v1140
    %v1283 = vadd.f32 %v1281, %v1282
    %1285 = vrot.lane.b32.xlu0 %v1283, 96
    %v1286 = vpop.permute.xlu0 %1285
    %v1287 = vsel %vm228, %v1286, 0
    %1289 = vmatpush.msra.mxu0 0.0
    %1290 = vmatpush.msra.mxu0 0.0
    %1291 = vmatpush.msra.mxu0 0.0
    %1292 = vmatpush.msra.mxu0 0.0
    %1293 = vmatpush.msra.mxu0 0.0
    %1294 = vmatpush.msra.mxu0 0.0
    %1295 = vmatpush.msra.mxu0 0.0
    %1296 = vmatpush.msra.mxu0 0.0
    %1297 = vmatpush.msra.mxu0 0.0
    %1298 = vmatpush.msra.mxu0 0.0
    %1299 = vmatpush.msra.mxu0 0.0
    %1300 = vmatpush.msra.mxu0 0.0
    %1301 = vmatpush.msra.mxu0 %v222
    %1302 = vmatpush.msra.mxu0 %v221
    %1303 = vmatpush.msra.mxu0 %v220
    %1304 = vmatpush.msra.mxu0 %v219
    %1305 = vmatmul.f32.gmra.mxu0 %v1287
    %v1306 = vpop.f32.mrf.mxu0
    %v1307 = vadd.f32 %v225, %v1306
    %1308 = vdwg.mxu0
    %1310 = vrot.lane.b32.xlu0 %v1226, 96
    %v1311 = vpop.permute.xlu0 %1310
    %v1312 = vsel %vm228, %v1311, 0
    %1314 = vmatpush.msra.mxu0 0.0
    %1315 = vmatpush.msra.mxu0 0.0
    %1316 = vmatpush.msra.mxu0 0.0
    %1317 = vmatpush.msra.mxu0 0.0
    %1318 = vmatpush.msra.mxu0 0.0
    %1319 = vmatpush.msra.mxu0 0.0
    %1320 = vmatpush.msra.mxu0 0.0
    %1321 = vmatpush.msra.mxu0 0.0
    %1322 = vmatpush.msra.mxu0 0.0
    %1323 = vmatpush.msra.mxu0 0.0
    %1324 = vmatpush.msra.mxu0 0.0
    %1325 = vmatpush.msra.mxu0 0.0
    %1326 = vmatpush.msra.mxu0 %v214
    %1327 = vmatpush.msra.mxu0 %v213
    %1328 = vmatpush.msra.mxu0 %v212
    %1329 = vmatpush.msra.mxu0 %v211
    %1330 = vmatmul.f32.gmra.mxu0 %v1312
    %v1331 = vpop.f32.mrf.mxu0
    %v1332 = vadd.f32 0.0, %v1331
    %1333 = vdwg.mxu0
    %v1334 = vadd.f32 %v1307, %v1332
    %v1335 = vxor.u32 %v1334, 2147483648
    %v1336 = vmul.f32 %v1335, 1.442695
    %v1337 = vpow.pop %v1336
    %v1338 = vadd.f32 %v1337, 1.0
    %v1339 = vrcp.pop %v1338
    %v1340 = vmul.f32 %v1338, %v1339
    %v1341 = vsub.f32 1.0, %v1340
    %v1342 = vmul.f32 %v1339, %v1341
    %v1343 = vadd.f32 %v1339, %v1342
    %vm1344 = vweird.f32 %v1338
    %vm1345 = vweird.f32 %v1339
    %vm1346 = vmor %vm1344, %vm1345
    %v1347 = vsel %vm1346, %v1339, %v1343
    %v1348 = vand.u32 2147483647, %v1338
    %vm1349 = vcmp.eq.f32.partialorder %v1348, 8.507059e+37
    %v1350 = vand.u32 %v1338, 2147483648
    %v1351 = vor.u32 1.1754944e-38, %v1350
    %v1352 = vsel %vm1349, %v1351, %v1347
    %v1353 = vmul.f32 1.0, %v1352
    %1354 = vrot.lane.b32.xlu0 %v1353, 64
    %v1355 = vpop.permute.xlu0 %1354
    %v1356 = vadd.f32 %v1332, %v217
    %v1357 = vmul.f32 %v1355, %v1356
    %v1358 = vadd.f32 %v1307, %v1357
    %v1359 = vtanh.pop %v1358
    %1360 = vrot.lane.b32.xlu0 %v1359, 64
    %v1361 = vpop.permute.xlu0 %1360
    %v1362 = vsub.f32 1.0, %v1353
    %1364 = vrot.lane.b32.xlu0 %v1361, 32
    %v1365 = vpop.permute.xlu0 %1364
    %v1367 = vmul.f32 %v1362, %v1365
    %v1368 = vmul.f32 %v1353, %v1226
    %v1369 = vadd.f32 %v1367, %v1368
    %v1370 = vld [vmem:[#allocation2 + $0x40] sm:$0xff]
    %1371 = vmatpush.msra.mxu0 0.0
    %1372 = vmatpush.msra.mxu0 0.0
    %1373 = vmatpush.msra.mxu0 0.0
    %1374 = vmatpush.msra.mxu0 0.0
    %1375 = vmatpush.msra.mxu0 0.0
    %1376 = vmatpush.msra.mxu0 0.0
    %1377 = vmatpush.msra.mxu0 0.0
    %1378 = vmatpush.msra.mxu0 0.0
    %1379 = vmatpush.msra.mxu0 0.0
    %1380 = vmatpush.msra.mxu0 0.0
    %1381 = vmatpush.msra.mxu0 0.0
    %1382 = vmatpush.msra.mxu0 0.0
    %1383 = vmatpush.msra.mxu0 %v206
    %1384 = vmatpush.msra.mxu0 %v205
    %1385 = vmatpush.msra.mxu0 %v204
    %1386 = vmatpush.msra.mxu0 %v203
    %1387 = vmatmul.f32.gmra.mxu0 %v1287
    %v1388 = vpop.f32.mrf.mxu0
    %v1389 = vadd.f32 0.0, %v1388
    %1390 = vdwg.mxu0
    %v1391 = vadd.f32 %v1370, %v1389
    %v1392 = vxor.u32 %v1391, 2147483648
    %v1393 = vmul.f32 %v1392, 1.442695
    %v1394 = vpow.pop %v1393
    %v1395 = vadd.f32 %v1394, 1.0
    %v1396 = vrcp.pop %v1395
    %v1397 = vmul.f32 %v1395, %v1396
    %v1398 = vsub.f32 1.0, %v1397
    %v1399 = vmul.f32 %v1396, %v1398
    %v1400 = vadd.f32 %v1396, %v1399
    %vm1401 = vweird.f32 %v1395
    %vm1402 = vweird.f32 %v1396
    %vm1403 = vmor %vm1401, %vm1402
    %v1404 = vsel %vm1403, %v1396, %v1400
    %v1405 = vand.u32 2147483647, %v1395
    %vm1406 = vcmp.eq.f32.partialorder %v1405, 8.507059e+37
    %v1407 = vand.u32 %v1395, 2147483648
    %v1408 = vor.u32 1.1754944e-38, %v1407
    %v1409 = vsel %vm1406, %v1408, %v1404
    %v1410 = vmul.f32 1.0, %v1409
    %1411 = vrot.lane.b32.xlu0 %v1410, 64
    %v1412 = vpop.permute.xlu0 %1411
    %v1413 = vadd.f32 %v1389, %v209
    %v1414 = vmul.f32 %v1412, %v1413
    %v1415 = vadd.f32 %v1370, %v1414
    %v1416 = vtanh.pop %v1415
    %1417 = vrot.lane.b32.xlu0 %v1416, 64
    %v1418 = vpop.permute.xlu0 %1417
    %v1419 = vsub.f32 1.0, %v1410
    %1421 = vrot.lane.b32.xlu0 %v1418, 32
    %v1422 = vpop.permute.xlu0 %1421
    %v1424 = vmul.f32 %v1419, %v1422
    %v1425 = vmul.f32 %v1410, %v1283
    %v1426 = vadd.f32 %v1424, %v1425
    %1428 = vrot.lane.b32.xlu0 %v1426, 96
    %v1429 = vpop.permute.xlu0 %1428
    %v1430 = vsel %vm228, %v1429, 0
    %1432 = vmatpush.msra.mxu0 0.0
    %1433 = vmatpush.msra.mxu0 0.0
    %1434 = vmatpush.msra.mxu0 0.0
    %1435 = vmatpush.msra.mxu0 0.0
    %1436 = vmatpush.msra.mxu0 0.0
    %1437 = vmatpush.msra.mxu0 0.0
    %1438 = vmatpush.msra.mxu0 0.0
    %1439 = vmatpush.msra.mxu0 0.0
    %1440 = vmatpush.msra.mxu0 0.0
    %1441 = vmatpush.msra.mxu0 0.0
    %1442 = vmatpush.msra.mxu0 0.0
    %1443 = vmatpush.msra.mxu0 0.0
    %1444 = vmatpush.msra.mxu0 %v222
    %1445 = vmatpush.msra.mxu0 %v221
    %1446 = vmatpush.msra.mxu0 %v220
    %1447 = vmatpush.msra.mxu0 %v219
    %1448 = vmatmul.f32.gmra.mxu0 %v1430
    %v1449 = vpop.f32.mrf.mxu0
    %v1450 = vadd.f32 %v225, %v1449
    %1451 = vdwg.mxu0
    %1453 = vrot.lane.b32.xlu0 %v1369, 96
    %v1454 = vpop.permute.xlu0 %1453
    %v1455 = vsel %vm228, %v1454, 0
    %1457 = vmatpush.msra.mxu0 0.0
    %1458 = vmatpush.msra.mxu0 0.0
    %1459 = vmatpush.msra.mxu0 0.0
    %1460 = vmatpush.msra.mxu0 0.0
    %1461 = vmatpush.msra.mxu0 0.0
    %1462 = vmatpush.msra.mxu0 0.0
    %1463 = vmatpush.msra.mxu0 0.0
    %1464 = vmatpush.msra.mxu0 0.0
    %1465 = vmatpush.msra.mxu0 0.0
    %1466 = vmatpush.msra.mxu0 0.0
    %1467 = vmatpush.msra.mxu0 0.0
    %1468 = vmatpush.msra.mxu0 0.0
    %1469 = vmatpush.msra.mxu0 %v214
    %1470 = vmatpush.msra.mxu0 %v213
    %1471 = vmatpush.msra.mxu0 %v212
    %1472 = vmatpush.msra.mxu0 %v211
    %1473 = vmatmul.f32.gmra.mxu0 %v1455
    %v1474 = vpop.f32.mrf.mxu0
    %v1475 = vadd.f32 0.0, %v1474
    %1476 = vdwg.mxu0
    %v1477 = vadd.f32 %v1450, %v1475
    %v1478 = vxor.u32 %v1477, 2147483648
    %v1479 = vmul.f32 %v1478, 1.442695
    %v1480 = vpow.pop %v1479
    %v1481 = vadd.f32 %v1480, 1.0
    %v1482 = vrcp.pop %v1481
    %v1483 = vmul.f32 %v1481, %v1482
    %v1484 = vsub.f32 1.0, %v1483
    %v1485 = vmul.f32 %v1482, %v1484
    %v1486 = vadd.f32 %v1482, %v1485
    %vm1487 = vweird.f32 %v1481
    %vm1488 = vweird.f32 %v1482
    %vm1489 = vmor %vm1487, %vm1488
    %v1490 = vsel %vm1489, %v1482, %v1486
    %v1491 = vand.u32 2147483647, %v1481
    %vm1492 = vcmp.eq.f32.partialorder %v1491, 8.507059e+37
    %v1493 = vand.u32 %v1481, 2147483648
    %v1494 = vor.u32 1.1754944e-38, %v1493
    %v1495 = vsel %vm1492, %v1494, %v1490
    %v1496 = vmul.f32 1.0, %v1495
    %1497 = vrot.lane.b32.xlu0 %v1496, 64
    %v1498 = vpop.permute.xlu0 %1497
    %v1499 = vadd.f32 %v1475, %v217
    %v1500 = vmul.f32 %v1498, %v1499
    %v1501 = vadd.f32 %v1450, %v1500
    %v1502 = vtanh.pop %v1501
    %1503 = vrot.lane.b32.xlu0 %v1502, 64
    %v1504 = vpop.permute.xlu0 %1503
    %v1505 = vsub.f32 1.0, %v1496
    %1507 = vrot.lane.b32.xlu0 %v1504, 32
    %v1508 = vpop.permute.xlu0 %1507
    %v1510 = vmul.f32 %v1505, %v1508
    %v1511 = vmul.f32 %v1496, %v1369
    %v1512 = vadd.f32 %v1510, %v1511
    %v1513 = vld [vmem:[#allocation2 + $0x48] sm:$0xff]
    %1514 = vmatpush.msra.mxu0 0.0
    %1515 = vmatpush.msra.mxu0 0.0
    %1516 = vmatpush.msra.mxu0 0.0
    %1517 = vmatpush.msra.mxu0 0.0
    %1518 = vmatpush.msra.mxu0 0.0
    %1519 = vmatpush.msra.mxu0 0.0
    %1520 = vmatpush.msra.mxu0 0.0
    %1521 = vmatpush.msra.mxu0 0.0
    %1522 = vmatpush.msra.mxu0 0.0
    %1523 = vmatpush.msra.mxu0 0.0
    %1524 = vmatpush.msra.mxu0 0.0
    %1525 = vmatpush.msra.mxu0 0.0
    %1526 = vmatpush.msra.mxu0 %v206
    %1527 = vmatpush.msra.mxu0 %v205
    %1528 = vmatpush.msra.mxu0 %v204
    %1529 = vmatpush.msra.mxu0 %v203
    %1530 = vmatmul.f32.gmra.mxu0 %v1430
    %v1531 = vpop.f32.mrf.mxu0
    %v1532 = vadd.f32 0.0, %v1531
    %1533 = vdwg.mxu0
    %v1534 = vadd.f32 %v1513, %v1532
    %v1535 = vxor.u32 %v1534, 2147483648
    %v1536 = vmul.f32 %v1535, 1.442695
    %v1537 = vpow.pop %v1536
    %v1538 = vadd.f32 %v1537, 1.0
    %v1539 = vrcp.pop %v1538
    %v1540 = vmul.f32 %v1538, %v1539
    %v1541 = vsub.f32 1.0, %v1540
    %v1542 = vmul.f32 %v1539, %v1541
    %v1543 = vadd.f32 %v1539, %v1542
    %vm1544 = vweird.f32 %v1538
    %vm1545 = vweird.f32 %v1539
    %vm1546 = vmor %vm1544, %vm1545
    %v1547 = vsel %vm1546, %v1539, %v1543
    %v1548 = vand.u32 2147483647, %v1538
    %vm1549 = vcmp.eq.f32.partialorder %v1548, 8.507059e+37
    %v1550 = vand.u32 %v1538, 2147483648
    %v1551 = vor.u32 1.1754944e-38, %v1550
    %v1552 = vsel %vm1549, %v1551, %v1547
    %v1553 = vmul.f32 1.0, %v1552
    %1554 = vrot.lane.b32.xlu0 %v1553, 64
    %v1555 = vpop.permute.xlu0 %1554
    %v1556 = vadd.f32 %v1532, %v209
    %v1557 = vmul.f32 %v1555, %v1556
    %v1558 = vadd.f32 %v1513, %v1557
    %v1559 = vtanh.pop %v1558
    %1560 = vrot.lane.b32.xlu0 %v1559, 64
    %v1561 = vpop.permute.xlu0 %1560
    %v1562 = vsub.f32 1.0, %v1553
    %1564 = vrot.lane.b32.xlu0 %v1561, 32
    %v1565 = vpop.permute.xlu0 %1564
    %v1567 = vmul.f32 %v1562, %v1565
    %v1568 = vmul.f32 %v1553, %v1426
    %v1569 = vadd.f32 %v1567, %v1568
    %1571 = vrot.lane.b32.xlu0 %v1569, 96
    %v1572 = vpop.permute.xlu0 %1571
    %v1573 = vsel %vm228, %v1572, 0
    %1575 = vmatpush.msra.mxu0 0.0
    %1576 = vmatpush.msra.mxu0 0.0
    %1577 = vmatpush.msra.mxu0 0.0
    %1578 = vmatpush.msra.mxu0 0.0
    %1579 = vmatpush.msra.mxu0 0.0
    %1580 = vmatpush.msra.mxu0 0.0
    %1581 = vmatpush.msra.mxu0 0.0
    %1582 = vmatpush.msra.mxu0 0.0
    %1583 = vmatpush.msra.mxu0 0.0
    %1584 = vmatpush.msra.mxu0 0.0
    %1585 = vmatpush.msra.mxu0 0.0
    %1586 = vmatpush.msra.mxu0 0.0
    %1587 = vmatpush.msra.mxu0 %v222
    %1588 = vmatpush.msra.mxu0 %v221
    %1589 = vmatpush.msra.mxu0 %v220
    %1590 = vmatpush.msra.mxu0 %v219
    %1591 = vmatmul.f32.gmra.mxu0 %v1573
    %v1592 = vpop.f32.mrf.mxu0
    %v1593 = vadd.f32 %v225, %v1592
    %1594 = vdwg.mxu0
    %1596 = vrot.lane.b32.xlu0 %v1512, 96
    %v1597 = vpop.permute.xlu0 %1596
    %v1598 = vsel %vm228, %v1597, 0
    %1600 = vmatpush.msra.mxu0 0.0
    %1601 = vmatpush.msra.mxu0 0.0
    %1602 = vmatpush.msra.mxu0 0.0
    %1603 = vmatpush.msra.mxu0 0.0
    %1604 = vmatpush.msra.mxu0 0.0
    %1605 = vmatpush.msra.mxu0 0.0
    %1606 = vmatpush.msra.mxu0 0.0
    %1607 = vmatpush.msra.mxu0 0.0
    %1608 = vmatpush.msra.mxu0 0.0
    %1609 = vmatpush.msra.mxu0 0.0
    %1610 = vmatpush.msra.mxu0 0.0
    %1611 = vmatpush.msra.mxu0 0.0
    %1612 = vmatpush.msra.mxu0 %v214
    %1613 = vmatpush.msra.mxu0 %v213
    %1614 = vmatpush.msra.mxu0 %v212
    %1615 = vmatpush.msra.mxu0 %v211
    %1616 = vmatmul.f32.gmra.mxu0 %v1598
    %v1617 = vpop.f32.mrf.mxu0
    %v1618 = vadd.f32 0.0, %v1617
    %1619 = vdwg.mxu0
    %v1620 = vadd.f32 %v1593, %v1618
    %v1621 = vxor.u32 %v1620, 2147483648
    %v1622 = vmul.f32 %v1621, 1.442695
    %v1623 = vpow.pop %v1622
    %v1624 = vadd.f32 %v1623, 1.0
    %v1625 = vrcp.pop %v1624
    %v1626 = vmul.f32 %v1624, %v1625
    %v1627 = vsub.f32 1.0, %v1626
    %v1628 = vmul.f32 %v1625, %v1627
    %v1629 = vadd.f32 %v1625, %v1628
    %vm1630 = vweird.f32 %v1624
    %vm1631 = vweird.f32 %v1625
    %vm1632 = vmor %vm1630, %vm1631
    %v1633 = vsel %vm1632, %v1625, %v1629
    %v1634 = vand.u32 2147483647, %v1624
    %vm1635 = vcmp.eq.f32.partialorder %v1634, 8.507059e+37
    %v1636 = vand.u32 %v1624, 2147483648
    %v1637 = vor.u32 1.1754944e-38, %v1636
    %v1638 = vsel %vm1635, %v1637, %v1633
    %v1639 = vmul.f32 1.0, %v1638
    %1640 = vrot.lane.b32.xlu0 %v1639, 64
    %v1641 = vpop.permute.xlu0 %1640
    %v1642 = vadd.f32 %v1618, %v217
    %v1643 = vmul.f32 %v1641, %v1642
    %v1644 = vadd.f32 %v1593, %v1643
    %v1645 = vtanh.pop %v1644
    %1646 = vrot.lane.b32.xlu0 %v1645, 64
    %v1647 = vpop.permute.xlu0 %1646
    %v1648 = vsub.f32 1.0, %v1639
    %1650 = vrot.lane.b32.xlu0 %v1647, 32
    %v1651 = vpop.permute.xlu0 %1650
    %v1653 = vmul.f32 %v1648, %v1651
    %v1654 = vmul.f32 %v1639, %v1512
    %v1655 = vadd.f32 %v1653, %v1654
    %v1656 = vld [vmem:[#allocation2 + $0x50] sm:$0xff]
    %1657 = vmatpush.msra.mxu0 0.0
    %1658 = vmatpush.msra.mxu0 0.0
    %1659 = vmatpush.msra.mxu0 0.0
    %1660 = vmatpush.msra.mxu0 0.0
    %1661 = vmatpush.msra.mxu0 0.0
    %1662 = vmatpush.msra.mxu0 0.0
    %1663 = vmatpush.msra.mxu0 0.0
    %1664 = vmatpush.msra.mxu0 0.0
    %1665 = vmatpush.msra.mxu0 0.0
    %1666 = vmatpush.msra.mxu0 0.0
    %1667 = vmatpush.msra.mxu0 0.0
    %1668 = vmatpush.msra.mxu0 0.0
    %1669 = vmatpush.msra.mxu0 %v206
    %1670 = vmatpush.msra.mxu0 %v205
    %1671 = vmatpush.msra.mxu0 %v204
    %1672 = vmatpush.msra.mxu0 %v203
    %1673 = vmatmul.f32.gmra.mxu0 %v1573
    %v1674 = vpop.f32.mrf.mxu0
    %v1675 = vadd.f32 0.0, %v1674
    %1676 = vdwg.mxu0
    %v1677 = vadd.f32 %v1656, %v1675
    %v1678 = vxor.u32 %v1677, 2147483648
    %v1679 = vmul.f32 %v1678, 1.442695
    %v1680 = vpow.pop %v1679
    %v1681 = vadd.f32 %v1680, 1.0
    %v1682 = vrcp.pop %v1681
    %v1683 = vmul.f32 %v1681, %v1682
    %v1684 = vsub.f32 1.0, %v1683
    %v1685 = vmul.f32 %v1682, %v1684
    %v1686 = vadd.f32 %v1682, %v1685
    %vm1687 = vweird.f32 %v1681
    %vm1688 = vweird.f32 %v1682
    %vm1689 = vmor %vm1687, %vm1688
    %v1690 = vsel %vm1689, %v1682, %v1686
    %v1691 = vand.u32 2147483647, %v1681
    %vm1692 = vcmp.eq.f32.partialorder %v1691, 8.507059e+37
    %v1693 = vand.u32 %v1681, 2147483648
    %v1694 = vor.u32 1.1754944e-38, %v1693
    %v1695 = vsel %vm1692, %v1694, %v1690
    %v1696 = vmul.f32 1.0, %v1695
    %1697 = vrot.lane.b32.xlu0 %v1696, 64
    %v1698 = vpop.permute.xlu0 %1697
    %v1699 = vadd.f32 %v1675, %v209
    %v1700 = vmul.f32 %v1698, %v1699
    %v1701 = vadd.f32 %v1656, %v1700
    %v1702 = vtanh.pop %v1701
    %1703 = vrot.lane.b32.xlu0 %v1702, 64
    %v1704 = vpop.permute.xlu0 %1703
    %v1705 = vsub.f32 1.0, %v1696
    %1707 = vrot.lane.b32.xlu0 %v1704, 32
    %v1708 = vpop.permute.xlu0 %1707
    %v1710 = vmul.f32 %v1705, %v1708
    %v1711 = vmul.f32 %v1696, %v1569
    %v1712 = vadd.f32 %v1710, %v1711
    %1714 = vrot.lane.b32.xlu0 %v1712, 96
    %v1715 = vpop.permute.xlu0 %1714
    %v1716 = vsel %vm228, %v1715, 0
    %1718 = vmatpush.msra.mxu0 0.0
    %1719 = vmatpush.msra.mxu0 0.0
    %1720 = vmatpush.msra.mxu0 0.0
    %1721 = vmatpush.msra.mxu0 0.0
    %1722 = vmatpush.msra.mxu0 0.0
    %1723 = vmatpush.msra.mxu0 0.0
    %1724 = vmatpush.msra.mxu0 0.0
    %1725 = vmatpush.msra.mxu0 0.0
    %1726 = vmatpush.msra.mxu0 0.0
    %1727 = vmatpush.msra.mxu0 0.0
    %1728 = vmatpush.msra.mxu0 0.0
    %1729 = vmatpush.msra.mxu0 0.0
    %1730 = vmatpush.msra.mxu0 %v222
    %1731 = vmatpush.msra.mxu0 %v221
    %1732 = vmatpush.msra.mxu0 %v220
    %1733 = vmatpush.msra.mxu0 %v219
    %1734 = vmatmul.f32.gmra.mxu0 %v1716
    %v1735 = vpop.f32.mrf.mxu0
    %v1736 = vadd.f32 %v225, %v1735
    %1737 = vdwg.mxu0
    %1739 = vrot.lane.b32.xlu0 %v1655, 96
    %v1740 = vpop.permute.xlu0 %1739
    %v1741 = vsel %vm228, %v1740, 0
    %1743 = vmatpush.msra.mxu0 0.0
    %1744 = vmatpush.msra.mxu0 0.0
    %1745 = vmatpush.msra.mxu0 0.0
    %1746 = vmatpush.msra.mxu0 0.0
    %1747 = vmatpush.msra.mxu0 0.0
    %1748 = vmatpush.msra.mxu0 0.0
    %1749 = vmatpush.msra.mxu0 0.0
    %1750 = vmatpush.msra.mxu0 0.0
    %1751 = vmatpush.msra.mxu0 0.0
    %1752 = vmatpush.msra.mxu0 0.0
    %1753 = vmatpush.msra.mxu0 0.0
    %1754 = vmatpush.msra.mxu0 0.0
    %1755 = vmatpush.msra.mxu0 %v214
    %1756 = vmatpush.msra.mxu0 %v213
    %1757 = vmatpush.msra.mxu0 %v212
    %1758 = vmatpush.msra.mxu0 %v211
    %1759 = vmatmul.f32.gmra.mxu0 %v1741
    %v1760 = vpop.f32.mrf.mxu0
    %v1761 = vadd.f32 0.0, %v1760
    %1762 = vdwg.mxu0
    %v1763 = vadd.f32 %v1736, %v1761
    %v1764 = vxor.u32 %v1763, 2147483648
    %v1765 = vmul.f32 %v1764, 1.442695
    %v1766 = vpow.pop %v1765
    %v1767 = vadd.f32 %v1766, 1.0
    %v1768 = vrcp.pop %v1767
    %v1769 = vmul.f32 %v1767, %v1768
    %v1770 = vsub.f32 1.0, %v1769
    %v1771 = vmul.f32 %v1768, %v1770
    %v1772 = vadd.f32 %v1768, %v1771
    %vm1773 = vweird.f32 %v1767
    %vm1774 = vweird.f32 %v1768
    %vm1775 = vmor %vm1773, %vm1774
    %v1776 = vsel %vm1775, %v1768, %v1772
    %v1777 = vand.u32 2147483647, %v1767
    %vm1778 = vcmp.eq.f32.partialorder %v1777, 8.507059e+37
    %v1779 = vand.u32 %v1767, 2147483648
    %v1780 = vor.u32 1.1754944e-38, %v1779
    %v1781 = vsel %vm1778, %v1780, %v1776
    %v1782 = vmul.f32 1.0, %v1781
    %1783 = vrot.lane.b32.xlu0 %v1782, 64
    %v1784 = vpop.permute.xlu0 %1783
    %v1785 = vadd.f32 %v1761, %v217
    %v1786 = vmul.f32 %v1784, %v1785
    %v1787 = vadd.f32 %v1736, %v1786
    %v1788 = vtanh.pop %v1787
    %1789 = vrot.lane.b32.xlu0 %v1788, 64
    %v1790 = vpop.permute.xlu0 %1789
    %v1791 = vsub.f32 1.0, %v1782
    %1793 = vrot.lane.b32.xlu0 %v1790, 32
    %v1794 = vpop.permute.xlu0 %1793
    %v1796 = vmul.f32 %v1791, %v1794
    %v1797 = vmul.f32 %v1782, %v1655
    %v1798 = vadd.f32 %v1796, %v1797
    %v1799 = vld [vmem:[#allocation2 + $0x58] sm:$0xff]
    %1800 = vmatpush.msra.mxu0 0.0
    %1801 = vmatpush.msra.mxu0 0.0
    %1802 = vmatpush.msra.mxu0 0.0
    %1803 = vmatpush.msra.mxu0 0.0
    %1804 = vmatpush.msra.mxu0 0.0
    %1805 = vmatpush.msra.mxu0 0.0
    %1806 = vmatpush.msra.mxu0 0.0
    %1807 = vmatpush.msra.mxu0 0.0
    %1808 = vmatpush.msra.mxu0 0.0
    %1809 = vmatpush.msra.mxu0 0.0
    %1810 = vmatpush.msra.mxu0 0.0
    %1811 = vmatpush.msra.mxu0 0.0
    %1812 = vmatpush.msra.mxu0 %v206
    %1813 = vmatpush.msra.mxu0 %v205
    %1814 = vmatpush.msra.mxu0 %v204
    %1815 = vmatpush.msra.mxu0 %v203
    %1816 = vmatmul.f32.gmra.mxu0 %v1716
    %v1817 = vpop.f32.mrf.mxu0
    %v1818 = vadd.f32 0.0, %v1817
    %1819 = vdwg.mxu0
    %v1820 = vadd.f32 %v1799, %v1818
    %v1821 = vxor.u32 %v1820, 2147483648
    %v1822 = vmul.f32 %v1821, 1.442695
    %v1823 = vpow.pop %v1822
    %v1824 = vadd.f32 %v1823, 1.0
    %v1825 = vrcp.pop %v1824
    %v1826 = vmul.f32 %v1824, %v1825
    %v1827 = vsub.f32 1.0, %v1826
    %v1828 = vmul.f32 %v1825, %v1827
    %v1829 = vadd.f32 %v1825, %v1828
    %vm1830 = vweird.f32 %v1824
    %vm1831 = vweird.f32 %v1825
    %vm1832 = vmor %vm1830, %vm1831
    %v1833 = vsel %vm1832, %v1825, %v1829
    %v1834 = vand.u32 2147483647, %v1824
    %vm1835 = vcmp.eq.f32.partialorder %v1834, 8.507059e+37
    %v1836 = vand.u32 %v1824, 2147483648
    %v1837 = vor.u32 1.1754944e-38, %v1836
    %v1838 = vsel %vm1835, %v1837, %v1833
    %v1839 = vmul.f32 1.0, %v1838
    %1840 = vrot.lane.b32.xlu0 %v1839, 64
    %v1841 = vpop.permute.xlu0 %1840
    %v1842 = vadd.f32 %v1818, %v209
    %v1843 = vmul.f32 %v1841, %v1842
    %v1844 = vadd.f32 %v1799, %v1843
    %v1845 = vtanh.pop %v1844
    %1846 = vrot.lane.b32.xlu0 %v1845, 64
    %v1847 = vpop.permute.xlu0 %1846
    %v1848 = vsub.f32 1.0, %v1839
    %1850 = vrot.lane.b32.xlu0 %v1847, 32
    %v1851 = vpop.permute.xlu0 %1850
    %v1853 = vmul.f32 %v1848, %v1851
    %v1854 = vmul.f32 %v1839, %v1712
    %v1855 = vadd.f32 %v1853, %v1854
    %1857 = vrot.lane.b32.xlu0 %v1855, 96
    %v1858 = vpop.permute.xlu0 %1857
    %v1859 = vsel %vm228, %v1858, 0
    %1861 = vmatpush.msra.mxu0 0.0
    %1862 = vmatpush.msra.mxu0 0.0
    %1863 = vmatpush.msra.mxu0 0.0
    %1864 = vmatpush.msra.mxu0 0.0
    %1865 = vmatpush.msra.mxu0 0.0
    %1866 = vmatpush.msra.mxu0 0.0
    %1867 = vmatpush.msra.mxu0 0.0
    %1868 = vmatpush.msra.mxu0 0.0
    %1869 = vmatpush.msra.mxu0 0.0
    %1870 = vmatpush.msra.mxu0 0.0
    %1871 = vmatpush.msra.mxu0 0.0
    %1872 = vmatpush.msra.mxu0 0.0
    %1873 = vmatpush.msra.mxu0 %v222
    %1874 = vmatpush.msra.mxu0 %v221
    %1875 = vmatpush.msra.mxu0 %v220
    %1876 = vmatpush.msra.mxu0 %v219
    %1877 = vmatmul.f32.gmra.mxu0 %v1859
    %v1878 = vpop.f32.mrf.mxu0
    %v1879 = vadd.f32 %v225, %v1878
    %1880 = vdwg.mxu0
    %1882 = vrot.lane.b32.xlu0 %v1798, 96
    %v1883 = vpop.permute.xlu0 %1882
    %v1884 = vsel %vm228, %v1883, 0
    %1886 = vmatpush.msra.mxu0 0.0
    %1887 = vmatpush.msra.mxu0 0.0
    %1888 = vmatpush.msra.mxu0 0.0
    %1889 = vmatpush.msra.mxu0 0.0
    %1890 = vmatpush.msra.mxu0 0.0
    %1891 = vmatpush.msra.mxu0 0.0
    %1892 = vmatpush.msra.mxu0 0.0
    %1893 = vmatpush.msra.mxu0 0.0
    %1894 = vmatpush.msra.mxu0 0.0
    %1895 = vmatpush.msra.mxu0 0.0
    %1896 = vmatpush.msra.mxu0 0.0
    %1897 = vmatpush.msra.mxu0 0.0
    %1898 = vmatpush.msra.mxu0 %v214
    %1899 = vmatpush.msra.mxu0 %v213
    %1900 = vmatpush.msra.mxu0 %v212
    %1901 = vmatpush.msra.mxu0 %v211
    %1902 = vmatmul.f32.gmra.mxu0 %v1884
    %v1903 = vpop.f32.mrf.mxu0
    %v1904 = vadd.f32 0.0, %v1903
    %1905 = vdwg.mxu0
    %v1906 = vadd.f32 %v1879, %v1904
    %v1907 = vxor.u32 %v1906, 2147483648
    %v1908 = vmul.f32 %v1907, 1.442695
    %v1909 = vpow.pop %v1908
    %v1910 = vadd.f32 %v1909, 1.0
    %v1911 = vrcp.pop %v1910
    %v1912 = vmul.f32 %v1910, %v1911
    %v1913 = vsub.f32 1.0, %v1912
    %v1914 = vmul.f32 %v1911, %v1913
    %v1915 = vadd.f32 %v1911, %v1914
    %vm1916 = vweird.f32 %v1910
    %vm1917 = vweird.f32 %v1911
    %vm1918 = vmor %vm1916, %vm1917
    %v1919 = vsel %vm1918, %v1911, %v1915
    %v1920 = vand.u32 2147483647, %v1910
    %vm1921 = vcmp.eq.f32.partialorder %v1920, 8.507059e+37
    %v1922 = vand.u32 %v1910, 2147483648
    %v1923 = vor.u32 1.1754944e-38, %v1922
    %v1924 = vsel %vm1921, %v1923, %v1919
    %v1925 = vmul.f32 1.0, %v1924
    %1926 = vrot.lane.b32.xlu0 %v1925, 64
    %v1927 = vpop.permute.xlu0 %1926
    %v1928 = vadd.f32 %v1904, %v217
    %v1929 = vmul.f32 %v1927, %v1928
    %v1930 = vadd.f32 %v1879, %v1929
    %v1931 = vtanh.pop %v1930
    %1932 = vrot.lane.b32.xlu0 %v1931, 64
    %v1933 = vpop.permute.xlu0 %1932
    %v1934 = vsub.f32 1.0, %v1925
    %1936 = vrot.lane.b32.xlu0 %v1933, 32
    %v1937 = vpop.permute.xlu0 %1936
    %v1939 = vmul.f32 %v1934, %v1937
    %v1940 = vmul.f32 %v1925, %v1798
    %v1941 = vadd.f32 %v1939, %v1940
    %v1942 = vld [vmem:[#allocation2 + $0x60] sm:$0xff]
    %1943 = vmatpush.msra.mxu0 0.0
    %1944 = vmatpush.msra.mxu0 0.0
    %1945 = vmatpush.msra.mxu0 0.0
    %1946 = vmatpush.msra.mxu0 0.0
    %1947 = vmatpush.msra.mxu0 0.0
    %1948 = vmatpush.msra.mxu0 0.0
    %1949 = vmatpush.msra.mxu0 0.0
    %1950 = vmatpush.msra.mxu0 0.0
    %1951 = vmatpush.msra.mxu0 0.0
    %1952 = vmatpush.msra.mxu0 0.0
    %1953 = vmatpush.msra.mxu0 0.0
    %1954 = vmatpush.msra.mxu0 0.0
    %1955 = vmatpush.msra.mxu0 %v206
    %1956 = vmatpush.msra.mxu0 %v205
    %1957 = vmatpush.msra.mxu0 %v204
    %1958 = vmatpush.msra.mxu0 %v203
    %1959 = vmatmul.f32.gmra.mxu0 %v1859
    %v1960 = vpop.f32.mrf.mxu0
    %v1961 = vadd.f32 0.0, %v1960
    %1962 = vdwg.mxu0
    %v1963 = vadd.f32 %v1942, %v1961
    %v1964 = vxor.u32 %v1963, 2147483648
    %v1965 = vmul.f32 %v1964, 1.442695
    %v1966 = vpow.pop %v1965
    %v1967 = vadd.f32 %v1966, 1.0
    %v1968 = vrcp.pop %v1967
    %v1969 = vmul.f32 %v1967, %v1968
    %v1970 = vsub.f32 1.0, %v1969
    %v1971 = vmul.f32 %v1968, %v1970
    %v1972 = vadd.f32 %v1968, %v1971
    %vm1973 = vweird.f32 %v1967
    %vm1974 = vweird.f32 %v1968
    %vm1975 = vmor %vm1973, %vm1974
    %v1976 = vsel %vm1975, %v1968, %v1972
    %v1977 = vand.u32 2147483647, %v1967
    %vm1978 = vcmp.eq.f32.partialorder %v1977, 8.507059e+37
    %v1979 = vand.u32 %v1967, 2147483648
    %v1980 = vor.u32 1.1754944e-38, %v1979
    %v1981 = vsel %vm1978, %v1980, %v1976
    %v1982 = vmul.f32 1.0, %v1981
    %1983 = vrot.lane.b32.xlu0 %v1982, 64
    %v1984 = vpop.permute.xlu0 %1983
    %v1985 = vadd.f32 %v1961, %v209
    %v1986 = vmul.f32 %v1984, %v1985
    %v1987 = vadd.f32 %v1942, %v1986
    %v1988 = vtanh.pop %v1987
    %1989 = vrot.lane.b32.xlu0 %v1988, 64
    %v1990 = vpop.permute.xlu0 %1989
    %v1991 = vsub.f32 1.0, %v1982
    %1993 = vrot.lane.b32.xlu0 %v1990, 32
    %v1994 = vpop.permute.xlu0 %1993
    %v1996 = vmul.f32 %v1991, %v1994
    %v1997 = vmul.f32 %v1982, %v1855
    %v1998 = vadd.f32 %v1996, %v1997
    %2000 = vrot.lane.b32.xlu0 %v1998, 96
    %v2001 = vpop.permute.xlu0 %2000
    %v2002 = vsel %vm228, %v2001, 0
    %2004 = vmatpush.msra.mxu0 0.0
    %2005 = vmatpush.msra.mxu0 0.0
    %2006 = vmatpush.msra.mxu0 0.0
    %2007 = vmatpush.msra.mxu0 0.0
    %2008 = vmatpush.msra.mxu0 0.0
    %2009 = vmatpush.msra.mxu0 0.0
    %2010 = vmatpush.msra.mxu0 0.0
    %2011 = vmatpush.msra.mxu0 0.0
    %2012 = vmatpush.msra.mxu0 0.0
    %2013 = vmatpush.msra.mxu0 0.0
    %2014 = vmatpush.msra.mxu0 0.0
    %2015 = vmatpush.msra.mxu0 0.0
    %2016 = vmatpush.msra.mxu0 %v222
    %2017 = vmatpush.msra.mxu0 %v221
    %2018 = vmatpush.msra.mxu0 %v220
    %2019 = vmatpush.msra.mxu0 %v219
    %2020 = vmatmul.f32.gmra.mxu0 %v2002
    %v2021 = vpop.f32.mrf.mxu0
    %v2022 = vadd.f32 %v225, %v2021
    %2023 = vdwg.mxu0
    %2025 = vrot.lane.b32.xlu0 %v1941, 96
    %v2026 = vpop.permute.xlu0 %2025
    %v2027 = vsel %vm228, %v2026, 0
    %2029 = vmatpush.msra.mxu0 0.0
    %2030 = vmatpush.msra.mxu0 0.0
    %2031 = vmatpush.msra.mxu0 0.0
    %2032 = vmatpush.msra.mxu0 0.0
    %2033 = vmatpush.msra.mxu0 0.0
    %2034 = vmatpush.msra.mxu0 0.0
    %2035 = vmatpush.msra.mxu0 0.0
    %2036 = vmatpush.msra.mxu0 0.0
    %2037 = vmatpush.msra.mxu0 0.0
    %2038 = vmatpush.msra.mxu0 0.0
    %2039 = vmatpush.msra.mxu0 0.0
    %2040 = vmatpush.msra.mxu0 0.0
    %2041 = vmatpush.msra.mxu0 %v214
    %2042 = vmatpush.msra.mxu0 %v213
    %2043 = vmatpush.msra.mxu0 %v212
    %2044 = vmatpush.msra.mxu0 %v211
    %2045 = vmatmul.f32.gmra.mxu0 %v2027
    %v2046 = vpop.f32.mrf.mxu0
    %v2047 = vadd.f32 0.0, %v2046
    %2048 = vdwg.mxu0
    %v2049 = vadd.f32 %v2022, %v2047
    %v2050 = vxor.u32 %v2049, 2147483648
    %v2051 = vmul.f32 %v2050, 1.442695
    %v2052 = vpow.pop %v2051
    %v2053 = vadd.f32 %v2052, 1.0
    %v2054 = vrcp.pop %v2053
    %v2055 = vmul.f32 %v2053, %v2054
    %v2056 = vsub.f32 1.0, %v2055
    %v2057 = vmul.f32 %v2054, %v2056
    %v2058 = vadd.f32 %v2054, %v2057
    %vm2059 = vweird.f32 %v2053
    %vm2060 = vweird.f32 %v2054
    %vm2061 = vmor %vm2059, %vm2060
    %v2062 = vsel %vm2061, %v2054, %v2058
    %v2063 = vand.u32 2147483647, %v2053
    %vm2064 = vcmp.eq.f32.partialorder %v2063, 8.507059e+37
    %v2065 = vand.u32 %v2053, 2147483648
    %v2066 = vor.u32 1.1754944e-38, %v2065
    %v2067 = vsel %vm2064, %v2066, %v2062
    %v2068 = vmul.f32 1.0, %v2067
    %2069 = vrot.lane.b32.xlu0 %v2068, 64
    %v2070 = vpop.permute.xlu0 %2069
    %v2071 = vadd.f32 %v2047, %v217
    %v2072 = vmul.f32 %v2070, %v2071
    %v2073 = vadd.f32 %v2022, %v2072
    %v2074 = vtanh.pop %v2073
    %2075 = vrot.lane.b32.xlu0 %v2074, 64
    %v2076 = vpop.permute.xlu0 %2075
    %v2077 = vsub.f32 1.0, %v2068
    %2079 = vrot.lane.b32.xlu0 %v2076, 32
    %v2080 = vpop.permute.xlu0 %2079
    %v2082 = vmul.f32 %v2077, %v2080
    %v2083 = vmul.f32 %v2068, %v1941
    %v2084 = vadd.f32 %v2082, %v2083
    %v2085 = vld [vmem:[#allocation2 + $0x68] sm:$0xff]
    %2086 = vmatpush.msra.mxu0 0.0
    %2087 = vmatpush.msra.mxu0 0.0
    %2088 = vmatpush.msra.mxu0 0.0
    %2089 = vmatpush.msra.mxu0 0.0
    %2090 = vmatpush.msra.mxu0 0.0
    %2091 = vmatpush.msra.mxu0 0.0
    %2092 = vmatpush.msra.mxu0 0.0
    %2093 = vmatpush.msra.mxu0 0.0
    %2094 = vmatpush.msra.mxu0 0.0
    %2095 = vmatpush.msra.mxu0 0.0
    %2096 = vmatpush.msra.mxu0 0.0
    %2097 = vmatpush.msra.mxu0 0.0
    %2098 = vmatpush.msra.mxu0 %v206
    %2099 = vmatpush.msra.mxu0 %v205
    %2100 = vmatpush.msra.mxu0 %v204
    %2101 = vmatpush.msra.mxu0 %v203
    %2102 = vmatmul.f32.gmra.mxu0 %v2002
    %v2103 = vpop.f32.mrf.mxu0
    %v2104 = vadd.f32 0.0, %v2103
    %2105 = vdwg.mxu0
    %v2106 = vadd.f32 %v2085, %v2104
    %v2107 = vxor.u32 %v2106, 2147483648
    %v2108 = vmul.f32 %v2107, 1.442695
    %v2109 = vpow.pop %v2108
    %v2110 = vadd.f32 %v2109, 1.0
    %v2111 = vrcp.pop %v2110
    %v2112 = vmul.f32 %v2110, %v2111
    %v2113 = vsub.f32 1.0, %v2112
    %v2114 = vmul.f32 %v2111, %v2113
    %v2115 = vadd.f32 %v2111, %v2114
    %vm2116 = vweird.f32 %v2110
    %vm2117 = vweird.f32 %v2111
    %vm2118 = vmor %vm2116, %vm2117
    %v2119 = vsel %vm2118, %v2111, %v2115
    %v2120 = vand.u32 2147483647, %v2110
    %vm2121 = vcmp.eq.f32.partialorder %v2120, 8.507059e+37
    %v2122 = vand.u32 %v2110, 2147483648
    %v2123 = vor.u32 1.1754944e-38, %v2122
    %v2124 = vsel %vm2121, %v2123, %v2119
    %v2125 = vmul.f32 1.0, %v2124
    %2126 = vrot.lane.b32.xlu0 %v2125, 64
    %v2127 = vpop.permute.xlu0 %2126
    %v2128 = vadd.f32 %v2104, %v209
    %v2129 = vmul.f32 %v2127, %v2128
    %v2130 = vadd.f32 %v2085, %v2129
    %v2131 = vtanh.pop %v2130
    %2132 = vrot.lane.b32.xlu0 %v2131, 64
    %v2133 = vpop.permute.xlu0 %2132
    %v2134 = vsub.f32 1.0, %v2125
    %2136 = vrot.lane.b32.xlu0 %v2133, 32
    %v2137 = vpop.permute.xlu0 %2136
    %v2139 = vmul.f32 %v2134, %v2137
    %v2140 = vmul.f32 %v2125, %v1998
    %v2141 = vadd.f32 %v2139, %v2140
    %2143 = vrot.lane.b32.xlu0 %v2141, 96
    %v2144 = vpop.permute.xlu0 %2143
    %v2145 = vsel %vm228, %v2144, 0
    %2147 = vmatpush.msra.mxu0 0.0
    %2148 = vmatpush.msra.mxu0 0.0
    %2149 = vmatpush.msra.mxu0 0.0
    %2150 = vmatpush.msra.mxu0 0.0
    %2151 = vmatpush.msra.mxu0 0.0
    %2152 = vmatpush.msra.mxu0 0.0
    %2153 = vmatpush.msra.mxu0 0.0
    %2154 = vmatpush.msra.mxu0 0.0
    %2155 = vmatpush.msra.mxu0 0.0
    %2156 = vmatpush.msra.mxu0 0.0
    %2157 = vmatpush.msra.mxu0 0.0
    %2158 = vmatpush.msra.mxu0 0.0
    %2159 = vmatpush.msra.mxu0 %v222
    %2160 = vmatpush.msra.mxu0 %v221
    %2161 = vmatpush.msra.mxu0 %v220
    %2162 = vmatpush.msra.mxu0 %v219
    %2163 = vmatmul.f32.gmra.mxu0 %v2145
    %v2164 = vpop.f32.mrf.mxu0
    %v2165 = vadd.f32 %v225, %v2164
    %2166 = vdwg.mxu0
    %2168 = vrot.lane.b32.xlu0 %v2084, 96
    %v2169 = vpop.permute.xlu0 %2168
    %v2170 = vsel %vm228, %v2169, 0
    %2172 = vmatpush.msra.mxu0 0.0
    %2173 = vmatpush.msra.mxu0 0.0
    %2174 = vmatpush.msra.mxu0 0.0
    %2175 = vmatpush.msra.mxu0 0.0
    %2176 = vmatpush.msra.mxu0 0.0
    %2177 = vmatpush.msra.mxu0 0.0
    %2178 = vmatpush.msra.mxu0 0.0
    %2179 = vmatpush.msra.mxu0 0.0
    %2180 = vmatpush.msra.mxu0 0.0
    %2181 = vmatpush.msra.mxu0 0.0
    %2182 = vmatpush.msra.mxu0 0.0
    %2183 = vmatpush.msra.mxu0 0.0
    %2184 = vmatpush.msra.mxu0 %v214
    %2185 = vmatpush.msra.mxu0 %v213
    %2186 = vmatpush.msra.mxu0 %v212
    %2187 = vmatpush.msra.mxu0 %v211
    %2188 = vmatmul.f32.gmra.mxu0 %v2170
    %v2189 = vpop.f32.mrf.mxu0
    %v2190 = vadd.f32 0.0, %v2189
    %2191 = vdwg.mxu0
    %v2192 = vadd.f32 %v2165, %v2190
    %v2193 = vxor.u32 %v2192, 2147483648
    %v2194 = vmul.f32 %v2193, 1.442695
    %v2195 = vpow.pop %v2194
    %v2196 = vadd.f32 %v2195, 1.0
    %v2197 = vrcp.pop %v2196
    %v2198 = vmul.f32 %v2196, %v2197
    %v2199 = vsub.f32 1.0, %v2198
    %v2200 = vmul.f32 %v2197, %v2199
    %v2201 = vadd.f32 %v2197, %v2200
    %vm2202 = vweird.f32 %v2196
    %vm2203 = vweird.f32 %v2197
    %vm2204 = vmor %vm2202, %vm2203
    %v2205 = vsel %vm2204, %v2197, %v2201
    %v2206 = vand.u32 2147483647, %v2196
    %vm2207 = vcmp.eq.f32.partialorder %v2206, 8.507059e+37
    %v2208 = vand.u32 %v2196, 2147483648
    %v2209 = vor.u32 1.1754944e-38, %v2208
    %v2210 = vsel %vm2207, %v2209, %v2205
    %v2211 = vmul.f32 1.0, %v2210
    %2212 = vrot.lane.b32.xlu0 %v2211, 64
    %v2213 = vpop.permute.xlu0 %2212
    %v2214 = vadd.f32 %v2190, %v217
    %v2215 = vmul.f32 %v2213, %v2214
    %v2216 = vadd.f32 %v2165, %v2215
    %v2217 = vtanh.pop %v2216
    %2218 = vrot.lane.b32.xlu0 %v2217, 64
    %v2219 = vpop.permute.xlu0 %2218
    %v2220 = vsub.f32 1.0, %v2211
    %2222 = vrot.lane.b32.xlu0 %v2219, 32
    %v2223 = vpop.permute.xlu0 %2222
    %v2225 = vmul.f32 %v2220, %v2223
    %v2226 = vmul.f32 %v2211, %v2084
    %v2227 = vadd.f32 %v2225, %v2226
    %v2228 = vld [vmem:[#allocation2 + $0x70] sm:$0xff]
    %2229 = vmatpush.msra.mxu0 0.0
    %2230 = vmatpush.msra.mxu0 0.0
    %2231 = vmatpush.msra.mxu0 0.0
    %2232 = vmatpush.msra.mxu0 0.0
    %2233 = vmatpush.msra.mxu0 0.0
    %2234 = vmatpush.msra.mxu0 0.0
    %2235 = vmatpush.msra.mxu0 0.0
    %2236 = vmatpush.msra.mxu0 0.0
    %2237 = vmatpush.msra.mxu0 0.0
    %2238 = vmatpush.msra.mxu0 0.0
    %2239 = vmatpush.msra.mxu0 0.0
    %2240 = vmatpush.msra.mxu0 0.0
    %2241 = vmatpush.msra.mxu0 %v206
    %2242 = vmatpush.msra.mxu0 %v205
    %2243 = vmatpush.msra.mxu0 %v204
    %2244 = vmatpush.msra.mxu0 %v203
    %2245 = vmatmul.f32.gmra.mxu0 %v2145
    %v2246 = vpop.f32.mrf.mxu0
    %v2247 = vadd.f32 0.0, %v2246
    %2248 = vdwg.mxu0
    %v2249 = vadd.f32 %v2228, %v2247
    %v2250 = vxor.u32 %v2249, 2147483648
    %v2251 = vmul.f32 %v2250, 1.442695
    %v2252 = vpow.pop %v2251
    %v2253 = vadd.f32 %v2252, 1.0
    %v2254 = vrcp.pop %v2253
    %v2255 = vmul.f32 %v2253, %v2254
    %v2256 = vsub.f32 1.0, %v2255
    %v2257 = vmul.f32 %v2254, %v2256
    %v2258 = vadd.f32 %v2254, %v2257
    %vm2259 = vweird.f32 %v2253
    %vm2260 = vweird.f32 %v2254
    %vm2261 = vmor %vm2259, %vm2260
    %v2262 = vsel %vm2261, %v2254, %v2258
    %v2263 = vand.u32 2147483647, %v2253
    %vm2264 = vcmp.eq.f32.partialorder %v2263, 8.507059e+37
    %v2265 = vand.u32 %v2253, 2147483648
    %v2266 = vor.u32 1.1754944e-38, %v2265
    %v2267 = vsel %vm2264, %v2266, %v2262
    %v2268 = vmul.f32 1.0, %v2267
    %2269 = vrot.lane.b32.xlu0 %v2268, 64
    %v2270 = vpop.permute.xlu0 %2269
    %v2271 = vadd.f32 %v2247, %v209
    %v2272 = vmul.f32 %v2270, %v2271
    %v2273 = vadd.f32 %v2228, %v2272
    %v2274 = vtanh.pop %v2273
    %2275 = vrot.lane.b32.xlu0 %v2274, 64
    %v2276 = vpop.permute.xlu0 %2275
    %v2277 = vsub.f32 1.0, %v2268
    %2279 = vrot.lane.b32.xlu0 %v2276, 32
    %v2280 = vpop.permute.xlu0 %2279
    %v2282 = vmul.f32 %v2277, %v2280
    %v2283 = vmul.f32 %v2268, %v2141
    %v2284 = vadd.f32 %v2282, %v2283
    %2286 = vrot.lane.b32.xlu0 %v2284, 96
    %v2287 = vpop.permute.xlu0 %2286
    %v2288 = vsel %vm228, %v2287, 0
    %2290 = vmatpush.msra.mxu0 0.0
    %2291 = vmatpush.msra.mxu0 0.0
    %2292 = vmatpush.msra.mxu0 0.0
    %2293 = vmatpush.msra.mxu0 0.0
    %2294 = vmatpush.msra.mxu0 0.0
    %2295 = vmatpush.msra.mxu0 0.0
    %2296 = vmatpush.msra.mxu0 0.0
    %2297 = vmatpush.msra.mxu0 0.0
    %2298 = vmatpush.msra.mxu0 0.0
    %2299 = vmatpush.msra.mxu0 0.0
    %2300 = vmatpush.msra.mxu0 0.0
    %2301 = vmatpush.msra.mxu0 0.0
    %2302 = vmatpush.msra.mxu0 %v222
    %2303 = vmatpush.msra.mxu0 %v221
    %2304 = vmatpush.msra.mxu0 %v220
    %2305 = vmatpush.msra.mxu0 %v219
    %2306 = vmatmul.f32.gmra.mxu0 %v2288
    %v2307 = vpop.f32.mrf.mxu0
    %v2308 = vadd.f32 %v225, %v2307
    %2309 = vdwg.mxu0
    %2311 = vrot.lane.b32.xlu0 %v2227, 96
    %v2312 = vpop.permute.xlu0 %2311
    %v2313 = vsel %vm228, %v2312, 0
    %2315 = vmatpush.msra.mxu0 0.0
    %2316 = vmatpush.msra.mxu0 0.0
    %2317 = vmatpush.msra.mxu0 0.0
    %2318 = vmatpush.msra.mxu0 0.0
    %2319 = vmatpush.msra.mxu0 0.0
    %2320 = vmatpush.msra.mxu0 0.0
    %2321 = vmatpush.msra.mxu0 0.0
    %2322 = vmatpush.msra.mxu0 0.0
    %2323 = vmatpush.msra.mxu0 0.0
    %2324 = vmatpush.msra.mxu0 0.0
    %2325 = vmatpush.msra.mxu0 0.0
    %2326 = vmatpush.msra.mxu0 0.0
    %2327 = vmatpush.msra.mxu0 %v214
    %2328 = vmatpush.msra.mxu0 %v213
    %2329 = vmatpush.msra.mxu0 %v212
    %2330 = vmatpush.msra.mxu0 %v211
    %2331 = vmatmul.f32.gmra.mxu0 %v2313
    %v2332 = vpop.f32.mrf.mxu0
    %v2333 = vadd.f32 0.0, %v2332
    %2334 = vdwg.mxu0
    %v2335 = vadd.f32 %v2308, %v2333
    %v2336 = vxor.u32 %v2335, 2147483648
    %v2337 = vmul.f32 %v2336, 1.442695
    %v2338 = vpow.pop %v2337
    %v2339 = vadd.f32 %v2338, 1.0
    %v2340 = vrcp.pop %v2339
    %v2341 = vmul.f32 %v2339, %v2340
    %v2342 = vsub.f32 1.0, %v2341
    %v2343 = vmul.f32 %v2340, %v2342
    %v2344 = vadd.f32 %v2340, %v2343
    %vm2345 = vweird.f32 %v2339
    %vm2346 = vweird.f32 %v2340
    %vm2347 = vmor %vm2345, %vm2346
    %v2348 = vsel %vm2347, %v2340, %v2344
    %v2349 = vand.u32 2147483647, %v2339
    %vm2350 = vcmp.eq.f32.partialorder %v2349, 8.507059e+37
    %v2351 = vand.u32 %v2339, 2147483648
    %v2352 = vor.u32 1.1754944e-38, %v2351
    %v2353 = vsel %vm2350, %v2352, %v2348
    %v2354 = vmul.f32 1.0, %v2353
    %2355 = vrot.lane.b32.xlu0 %v2354, 64
    %v2356 = vpop.permute.xlu0 %2355
    %v2357 = vadd.f32 %v2333, %v217
    %v2358 = vmul.f32 %v2356, %v2357
    %v2359 = vadd.f32 %v2308, %v2358
    %v2360 = vtanh.pop %v2359
    %2361 = vrot.lane.b32.xlu0 %v2360, 64
    %v2362 = vpop.permute.xlu0 %2361
    %v2363 = vsub.f32 1.0, %v2354
    %2365 = vrot.lane.b32.xlu0 %v2362, 32
    %v2366 = vpop.permute.xlu0 %2365
    %v2368 = vmul.f32 %v2363, %v2366
    %v2369 = vmul.f32 %v2354, %v2227
    %v2370 = vadd.f32 %v2368, %v2369
    %v2371 = vld [vmem:[#allocation2 + $0x78] sm:$0xff]
    %2372 = vmatpush.msra.mxu0 0.0
    %2373 = vmatpush.msra.mxu0 0.0
    %2374 = vmatpush.msra.mxu0 0.0
    %2375 = vmatpush.msra.mxu0 0.0
    %2376 = vmatpush.msra.mxu0 0.0
    %2377 = vmatpush.msra.mxu0 0.0
    %2378 = vmatpush.msra.mxu0 0.0
    %2379 = vmatpush.msra.mxu0 0.0
    %2380 = vmatpush.msra.mxu0 0.0
    %2381 = vmatpush.msra.mxu0 0.0
    %2382 = vmatpush.msra.mxu0 0.0
    %2383 = vmatpush.msra.mxu0 0.0
    %2384 = vmatpush.msra.mxu0 %v206
    %2385 = vmatpush.msra.mxu0 %v205
    %2386 = vmatpush.msra.mxu0 %v204
    %2387 = vmatpush.msra.mxu0 %v203
    %2388 = vmatmul.f32.gmra.mxu0 %v2288
    %v2389 = vpop.f32.mrf.mxu0
    %v2390 = vadd.f32 0.0, %v2389
    %2391 = vdwg.mxu0
    %v2392 = vadd.f32 %v2371, %v2390
    %v2393 = vxor.u32 %v2392, 2147483648
    %v2394 = vmul.f32 %v2393, 1.442695
    %v2395 = vpow.pop %v2394
    %v2396 = vadd.f32 %v2395, 1.0
    %v2397 = vrcp.pop %v2396
    %v2398 = vmul.f32 %v2396, %v2397
    %v2399 = vsub.f32 1.0, %v2398
    %v2400 = vmul.f32 %v2397, %v2399
    %v2401 = vadd.f32 %v2397, %v2400
    %vm2402 = vweird.f32 %v2396
    %vm2403 = vweird.f32 %v2397
    %vm2404 = vmor %vm2402, %vm2403
    %v2405 = vsel %vm2404, %v2397, %v2401
    %v2406 = vand.u32 2147483647, %v2396
    %vm2407 = vcmp.eq.f32.partialorder %v2406, 8.507059e+37
    %v2408 = vand.u32 %v2396, 2147483648
    %v2409 = vor.u32 1.1754944e-38, %v2408
    %v2410 = vsel %vm2407, %v2409, %v2405
    %v2411 = vmul.f32 1.0, %v2410
    %2412 = vrot.lane.b32.xlu0 %v2411, 64
    %v2413 = vpop.permute.xlu0 %2412
    %v2414 = vadd.f32 %v2390, %v209
    %v2415 = vmul.f32 %v2413, %v2414
    %v2416 = vadd.f32 %v2371, %v2415
    %v2417 = vtanh.pop %v2416
    %2418 = vrot.lane.b32.xlu0 %v2417, 64
    %v2419 = vpop.permute.xlu0 %2418
    %v2420 = vsub.f32 1.0, %v2411
    %2422 = vrot.lane.b32.xlu0 %v2419, 32
    %v2423 = vpop.permute.xlu0 %2422
    %v2425 = vmul.f32 %v2420, %v2423
    %v2426 = vmul.f32 %v2411, %v2284
    %v2427 = vadd.f32 %v2425, %v2426
    %2429 = vrot.lane.b32.xlu0 %v2427, 96
    %v2430 = vpop.permute.xlu0 %2429
    %v2431 = vsel %vm228, %v2430, 0
    %2433 = vmatpush.msra.mxu0 0.0
    %2434 = vmatpush.msra.mxu0 0.0
    %2435 = vmatpush.msra.mxu0 0.0
    %2436 = vmatpush.msra.mxu0 0.0
    %2437 = vmatpush.msra.mxu0 0.0
    %2438 = vmatpush.msra.mxu0 0.0
    %2439 = vmatpush.msra.mxu0 0.0
    %2440 = vmatpush.msra.mxu0 0.0
    %2441 = vmatpush.msra.mxu0 0.0
    %2442 = vmatpush.msra.mxu0 0.0
    %2443 = vmatpush.msra.mxu0 0.0
    %2444 = vmatpush.msra.mxu0 0.0
    %2445 = vmatpush.msra.mxu0 %v222
    %2446 = vmatpush.msra.mxu0 %v221
    %2447 = vmatpush.msra.mxu0 %v220
    %2448 = vmatpush.msra.mxu0 %v219
    %2449 = vmatmul.f32.gmra.mxu0 %v2431
    %v2450 = vpop.f32.mrf.mxu0
    %v2451 = vadd.f32 %v225, %v2450
    %2452 = vdwg.mxu0
    %2454 = vrot.lane.b32.xlu0 %v2370, 96
    %v2455 = vpop.permute.xlu0 %2454
    %v2456 = vsel %vm228, %v2455, 0
    %2458 = vmatpush.msra.mxu0 0.0
    %2459 = vmatpush.msra.mxu0 0.0
    %2460 = vmatpush.msra.mxu0 0.0
    %2461 = vmatpush.msra.mxu0 0.0
    %2462 = vmatpush.msra.mxu0 0.0
    %2463 = vmatpush.msra.mxu0 0.0
    %2464 = vmatpush.msra.mxu0 0.0
    %2465 = vmatpush.msra.mxu0 0.0
    %2466 = vmatpush.msra.mxu0 0.0
    %2467 = vmatpush.msra.mxu0 0.0
    %2468 = vmatpush.msra.mxu0 0.0
    %2469 = vmatpush.msra.mxu0 0.0
    %2470 = vmatpush.msra.mxu0 %v214
    %2471 = vmatpush.msra.mxu0 %v213
    %2472 = vmatpush.msra.mxu0 %v212
    %2473 = vmatpush.msra.mxu0 %v211
    %2474 = vmatmul.f32.gmra.mxu0 %v2456
    %v2475 = vpop.f32.mrf.mxu0
    %v2476 = vadd.f32 0.0, %v2475
    %2477 = vdwg.mxu0
    %v2478 = vadd.f32 %v2451, %v2476
    %v2479 = vxor.u32 %v2478, 2147483648
    %v2480 = vmul.f32 %v2479, 1.442695
    %v2481 = vpow.pop %v2480
    %v2482 = vadd.f32 %v2481, 1.0
    %v2483 = vrcp.pop %v2482
    %v2484 = vmul.f32 %v2482, %v2483
    %v2485 = vsub.f32 1.0, %v2484
    %v2486 = vmul.f32 %v2483, %v2485
    %v2487 = vadd.f32 %v2483, %v2486
    %vm2488 = vweird.f32 %v2482
    %vm2489 = vweird.f32 %v2483
    %vm2490 = vmor %vm2488, %vm2489
    %v2491 = vsel %vm2490, %v2483, %v2487
    %v2492 = vand.u32 2147483647, %v2482
    %vm2493 = vcmp.eq.f32.partialorder %v2492, 8.507059e+37
    %v2494 = vand.u32 %v2482, 2147483648
    %v2495 = vor.u32 1.1754944e-38, %v2494
    %v2496 = vsel %vm2493, %v2495, %v2491
    %v2497 = vmul.f32 1.0, %v2496
    %2498 = vrot.lane.b32.xlu0 %v2497, 64
    %v2499 = vpop.permute.xlu0 %2498
    %v2500 = vadd.f32 %v2476, %v217
    %v2501 = vmul.f32 %v2499, %v2500
    %v2502 = vadd.f32 %v2451, %v2501
    %v2503 = vtanh.pop %v2502
    %2504 = vrot.lane.b32.xlu0 %v2503, 64
    %v2505 = vpop.permute.xlu0 %2504
    %v2506 = vsub.f32 1.0, %v2497
    %2508 = vrot.lane.b32.xlu0 %v2505, 32
    %v2509 = vpop.permute.xlu0 %2508
    %v2511 = vmul.f32 %v2506, %v2509
    %v2512 = vmul.f32 %v2497, %v2370
    %v2513 = vadd.f32 %v2511, %v2512
    %v2514 = vld [vmem:[%s9] sm:$0xff]
    %v2515 = vld [vmem:[%s9 + $0x8] sm:$0xff]
    %v2516 = vld [vmem:[%s9 + $0x10] sm:$0xff]
    %v2517 = vld [vmem:[%s9 + $0x18] sm:$0xff]
    %v2518 = vld [vmem:[%s10] sm:$0x1]
    %v2520 = vperm.slane %v2518, 0
    %2523 = vrot.lane.b32.xlu0 %v2513, 96
    %v2524 = vpop.permute.xlu0 %2523
    %v2525 = vsel %vm228, %v2524, 0
    %2527 = vmatpush.msra.mxu0 0.0
    %2528 = vmatpush.msra.mxu0 0.0
    %2529 = vmatpush.msra.mxu0 0.0
    %2530 = vmatpush.msra.mxu0 0.0
    %2531 = vmatpush.msra.mxu0 0.0
    %2532 = vmatpush.msra.mxu0 0.0
    %2533 = vmatpush.msra.mxu0 0.0
    %2534 = vmatpush.msra.mxu0 0.0
    %2535 = vmatpush.msra.mxu0 0.0
    %2536 = vmatpush.msra.mxu0 0.0
    %2537 = vmatpush.msra.mxu0 0.0
    %2538 = vmatpush.msra.mxu0 0.0
    %2539 = vmatpush.msra.mxu0 %v2517
    %2540 = vmatpush.msra.mxu0 %v2516
    %2541 = vmatpush.msra.mxu0 %v2515
    %2542 = vmatpush.msra.mxu0 %v2514
    %2543 = vmatmul.f32.gmra.mxu0 %v2525
    %v2544 = vpop.f32.mrf.mxu0
    %v2545 = vadd.f32 %v2520, %v2544
    %2546 = vdwg.mxu0
    %v2547 = vmax.f32 %v2545, 0.0
    %v2548 = vld [vmem:[%s11] sm:$0xff]
    %v2549 = vld [vmem:[%s11 + $0x8] sm:$0xff]
    %v2550 = vld [vmem:[%s11 + $0x10] sm:$0xff]
    %v2551 = vld [vmem:[%s11 + $0x18] sm:$0xff]
    %v2552 = vld [vmem:[%s12] sm:$0x1]
    %v2554 = vperm.slane %v2552, 0
    %v2557 = vsel %vm228, %v2547, 0
    %2559 = vmatpush.msra.mxu0 0.0
    %2560 = vmatpush.msra.mxu0 0.0
    %2561 = vmatpush.msra.mxu0 0.0
    %2562 = vmatpush.msra.mxu0 0.0
    %2563 = vmatpush.msra.mxu0 0.0
    %2564 = vmatpush.msra.mxu0 0.0
    %2565 = vmatpush.msra.mxu0 0.0
    %2566 = vmatpush.msra.mxu0 0.0
    %2567 = vmatpush.msra.mxu0 0.0
    %2568 = vmatpush.msra.mxu0 0.0
    %2569 = vmatpush.msra.mxu0 0.0
    %2570 = vmatpush.msra.mxu0 0.0
    %2571 = vmatpush.msra.mxu0 %v2551
    %2572 = vmatpush.msra.mxu0 %v2550
    %2573 = vmatpush.msra.mxu0 %v2549
    %2574 = vmatpush.msra.mxu0 %v2548
    %2575 = vmatmul.f32.gmra.mxu0 %v2557
    %v2576 = vpop.f32.mrf.mxu0
    %v2577 = vadd.f32 %v2554, %v2576
    %2578 = vdwg.mxu0
    %vm2579 = vcmask 56320
    %2580 = vst.msk [vmem:[#allocation3] sm:$0xff] %vm2579, %v2577
    // Predicated region
    $region54: #{tpu_custom_call.1} parent=1 // pred_check
      _
    $region55: #{tpu_custom_call.1} parent=1 // pred_check_branch
      %2582 = sbr.rel (0) target = $region57
    $region56: #{tpu_custom_call.1} parent=1 // pred_region
      %2584 = vsyncadd [#allocation4], 0
      %s2586 = sshll.u32 [#allocation3], 4
      %s2587 = int_to_ptr.vmem [resolvable:$true] %s2586
      %s2588 = sshll.u32 %s13, 4
      %s2589 = int_to_ptr.hbm [resolvable:$true] %s2588
      %2591 = dma.vmem_to_hbm [thread:$0]  %s2587, 128, %s2589, [#allocation4]
    $region57: #{tpu_custom_call.1} parent=1 // pred_fallthru
      _
    // Predicated region
    $region58: #{tpu_custom_call.1} parent=1 // pred_check
      _
    $region59: #{tpu_custom_call.1} parent=1 // pred_check_branch
      %2593 = sbr.rel (0) target = $region61
    $region60: #{tpu_custom_call.1} parent=1 // pred_region
      %2595 = dma.done [#allocation4], 128
    $region61: #{tpu_custom_call.1} parent=1 // pred_fallthru
      _
    %2596 = vsyncpa [#allocation4], 1

</llo_original>
